<compile_context>
chip_gen: v6e
topology: v6e:2x2x1
jax: 0.10.0
libtpu: 0.0.40
codegen_flags: <defaults>
</compile_context>

<pallas_src>
import functools

import jax
import jax.numpy as jnp
from jax.experimental import pallas as pl
from jax.experimental.pallas import tpu as pltpu

_LANE = 128


# ---------------------------------------------------------------------------
# Kernels
# ---------------------------------------------------------------------------
def _com_layer_kernel(has_residual, *refs):
    """Fused complex layer: r = Xr@Wr+br, i = Xi@Wi+bi, ComReLU, (+residual)."""
    if has_residual:
        (xr_ref, xi_ref, wr_ref, wi_ref, br_ref, bi_ref, rres_ref, ires_ref,
         or_sum_ref, oi_sum_ref, or_act_ref, oi_act_ref,
         accr_ref, acci_ref) = refs
    else:
        (xr_ref, xi_ref, wr_ref, wi_ref, br_ref, bi_ref,
         or_act_ref, oi_act_ref, accr_ref, acci_ref) = refs
        rres_ref = ires_ref = or_sum_ref = oi_sum_ref = None

    k = pl.program_id(2)

    @pl.when(k == 0)
    def _():
        accr_ref[...] = jnp.zeros_like(accr_ref)
        acci_ref[...] = jnp.zeros_like(acci_ref)

    accr_ref[...] += jnp.dot(xr_ref[...], wr_ref[...],
                             preferred_element_type=jnp.float32)
    acci_ref[...] += jnp.dot(xi_ref[...], wi_ref[...],
                             preferred_element_type=jnp.float32)

    @pl.when(k == pl.num_programs(2) - 1)
    def _():
        r = accr_ref[...] + br_ref[...]
        im = acci_ref[...] + bi_ref[...]
        mask = r >= 0.0                      # ComReLU: real sign gates both
        r_act = jnp.where(mask, r, 0.0)
        i_act = jnp.where(mask, im, 0.0)
        or_act_ref[...] = r_act.astype(or_act_ref.dtype)
        oi_act_ref[...] = i_act.astype(oi_act_ref.dtype)
        if has_residual:
            or_sum_ref[...] = (r_act + rres_ref[...]).astype(or_sum_ref.dtype)
            oi_sum_ref[...] = (i_act + ires_ref[...]).astype(oi_sum_ref.dtype)


def _concat_linear_kernel(xr_ref, xi_ref, wr_ref, wi_ref, b_ref,
                          o_ref, acc_ref):
    """out = concat([xr, xi], -1) @ W + b  ==  xr @ W[:H] + xi @ W[H:] + b."""
    k = pl.program_id(2)

    @pl.when(k == 0)
    def _():
        acc_ref[...] = jnp.zeros_like(acc_ref)

    acc_ref[...] += jnp.dot(xr_ref[...], wr_ref[...],
                            preferred_element_type=jnp.float32)
    acc_ref[...] += jnp.dot(xi_ref[...], wi_ref[...],
                            preferred_element_type=jnp.float32)

    @pl.when(k == pl.num_programs(2) - 1)
    def _():
        o_ref[...] = (acc_ref[...] + b_ref[...]).astype(o_ref.dtype)


# ---------------------------------------------------------------------------
# Wrapper helpers
# ---------------------------------------------------------------------------
def _round_up(v, m):
    return -(-v // m) * m


def _pad2d(x, rows, cols):
    r, c = x.shape
    if (r, c) == (rows, cols):
        return x
    return jnp.pad(x, ((0, rows - r), (0, cols - c)))


def _pick_k_tile(kp):
    for cand in (512, 256, 128):
        if kp % cand == 0:
            return cand
    return kp


def _layer_call(xr, xi, wr, wi, br, bi, rres=None, ires=None):
    mp, kp = xr.shape
    np_ = wr.shape[1]
    tm = min(_LANE, mp)
    tn = min(_LANE, np_)
    tk = _pick_k_tile(kp)
    grid = (mp // tm, np_ // tn, kp // tk)

    x_spec = pl.BlockSpec((tm, tk), lambda i, j, k: (i, k))
    w_spec = pl.BlockSpec((tk, tn), lambda i, j, k: (k, j))
    b_spec = pl.BlockSpec((1, tn), lambda i, j, k: (0, j))
    mn_spec = pl.BlockSpec((tm, tn), lambda i, j, k: (i, j))

    has_res = rres is not None
    in_specs = [x_spec, x_spec, w_spec, w_spec, b_spec, b_spec]
    inputs = [xr, xi, wr, wi, br, bi]
    n_out = 2
    if has_res:
        in_specs += [mn_spec, mn_spec]
        inputs += [rres, ires]
        n_out = 4

    out_shape = tuple(jax.ShapeDtypeStruct((mp, np_), jnp.float32)
                      for _ in range(n_out))
    out_specs = [mn_spec] * n_out

    return pl.pallas_call(
        functools.partial(_com_layer_kernel, has_res),
        out_shape=out_shape,
        grid_spec=pltpu.PrefetchScalarGridSpec(
            num_scalar_prefetch=0,
            grid=grid,
            in_specs=in_specs,
            out_specs=out_specs,
            scratch_shapes=[pltpu.VMEM((tm, tn), jnp.float32),
                            pltpu.VMEM((tm, tn), jnp.float32)],
        ),
        compiler_params=pltpu.CompilerParams(
            dimension_semantics=("parallel", "parallel", "arbitrary")),
    )(*inputs)


def _out_call(xr, xi, wr_part, wi_part, b):
    mp, kp = xr.shape
    np_ = wr_part.shape[1]
    tm = min(_LANE, mp)
    tn = min(_LANE, np_)
    tk = _pick_k_tile(kp)
    grid = (mp // tm, np_ // tn, kp // tk)

    x_spec = pl.BlockSpec((tm, tk), lambda i, j, k: (i, k))
    w_spec = pl.BlockSpec((tk, tn), lambda i, j, k: (k, j))
    b_spec = pl.BlockSpec((1, tn), lambda i, j, k: (0, j))
    mn_spec = pl.BlockSpec((tm, tn), lambda i, j, k: (i, j))

    return pl.pallas_call(
        _concat_linear_kernel,
        out_shape=jax.ShapeDtypeStruct((mp, np_), jnp.float32),
        grid_spec=pltpu.PrefetchScalarGridSpec(
            num_scalar_prefetch=0,
            grid=grid,
            in_specs=[x_spec, x_spec, w_spec, w_spec, b_spec],
            out_specs=mn_spec,
            scratch_shapes=[pltpu.VMEM((tm, tn), jnp.float32)],
        ),
        compiler_params=pltpu.CompilerParams(
            dimension_semantics=("parallel", "parallel", "arbitrary")),
    )(xr, xi, wr_part, wi_part, b)


# ---------------------------------------------------------------------------
# Full forward (query_edges=None, bn=False, eval-mode dropout)
# ---------------------------------------------------------------------------
def com_res_mlp_forward(real_feature, imag_feature,
                        real_fcs, imag_fcs, out_w, out_b):
    """real_fcs / imag_fcs: lists of (W, b) with W of shape (in_dim, out_dim).
       out_w: (2*hidden, output_dim); out_b: (output_dim,)."""
    m, _feat = real_feature.shape
    hidden = real_fcs[0][0].shape[1]
    out_dim = out_w.shape[1]
    num_layers = len(real_fcs) + 1

    mp = _round_up(m, _LANE)
    fp = _round_up(_feat, _LANE)
    hp = _round_up(hidden, _LANE)
    op = _round_up(out_dim, _LANE)

    xr = _pad2d(real_feature.astype(jnp.float32), mp, fp)
    xi = _pad2d(imag_feature.astype(jnp.float32), mp, fp)

    # Layer 0: Linear + ComReLU (dropout is identity at inference).
    wr, br = real_fcs[0]
    wi, bi = imag_fcs[0]
    r_act, i_act = _layer_call(
        xr, xi,
        _pad2d(wr, fp, hp), _pad2d(wi, fp, hp),
        _pad2d(br[None, :], 1, hp), _pad2d(bi[None, :], 1, hp))
    r, im = r_act, i_act
    r_res, i_res = r_act, i_act

    # Middle layers: Linear + ComReLU + residual, all fused per layer.
    for l in range(1, num_layers - 1):
        wr, br = real_fcs[l]
        wi, bi = imag_fcs[l]
        r, im, r_res, i_res = _layer_call(
            r, im,
            _pad2d(wr, hp, hp), _pad2d(wi, hp, hp),
            _pad2d(br[None, :], 1, hp), _pad2d(bi[None, :], 1, hp),
            r_res, i_res)

    # Output head: one_dim_conv(concat([r, i], -1)) without materializing concat.
    out = _out_call(
        r, im,
        _pad2d(out_w[:hidden, :], hp, op),
        _pad2d(out_w[hidden:, :], hp, op),
        _pad2d(out_b[None, :], 1, op))
    return out[:m, :out_dim]


# ---------------------------------------------------------------------------
# Pure-JAX reference (mirrors the PyTorch forward in eval mode)
# ---------------------------------------------------------------------------
def _reference_forward(real_feature, imag_feature,
                       real_fcs, imag_fcs, out_w, out_b):
    num_layers = len(real_fcs) + 1
    wr, br = real_fcs[0]
    wi, bi = imag_fcs[0]
    r = real_feature @ wr + br
    im = imag_feature @ wi + bi
    mask = (r >= 0).astype(r.dtype)
    r, im = r * mask, im * mask
    r_res, i_res = r, im
    for l in range(1, num_layers - 1):
        wr, br = real_fcs[l]
        wi, bi = imag_fcs[l]
        r2 = r @ wr + br
        i2 = im @ wi + bi
        mask = (r2 >= 0).astype(r2.dtype)
        r_, i_ = r2 * mask, i2 * mask
        r, im = r_ + r_res, i_ + i_res
        r_res, i_res = r_, i_
    x = jnp.concatenate([r, im], axis=-1)
    return x @ out_w + out_b


# ---------------------------------------------------------------------------
# Demo / self-test
# ---------------------------------------------------------------------------
if __name__ == "__main__":
    key = jax.random.PRNGKey(0)

    n_nodes, feat_dim, hidden_dim, num_layers, output_dim = 64, 64, 32, 4, 16

    keys = jax.random.split(key, 2 * (num_layers - 1) + 2)

    def make_linear(k, fan_in, fan_out):
        kw, kb = jax.random.split(k)
        w = jax.random.normal(kw, (fan_in, fan_out), jnp.float32) / jnp.sqrt(fan_in)
        b = jax.random.normal(kb, (fan_out,), jnp.float32) * 0.1
        return w, b

    idx = 0
    real_fcs = [make_linear(keys[idx], feat_dim, hidden_dim)]; idx += 1
    imag_fcs = [make_linear(keys[idx], feat_dim, hidden_dim)]; idx += 1
    for _ in range(num_layers - 2):
        real_fcs.append(make_linear(keys[idx], hidden_dim, hidden_dim)); idx += 1
        imag_fcs.append(make_linear(keys[idx], hidden_dim, hidden_dim)); idx += 1
    out_w, out_b = make_linear(keys[idx], 2 * hidden_dim, output_dim); idx += 1

    kx_r, kx_i = jax.random.split(keys[idx])
    real_feature = jax.random.normal(kx_r, (n_nodes, feat_dim), jnp.float32)
    imag_feature = jax.random.normal(kx_i, (n_nodes, feat_dim), jnp.float32)

    forward = jax.jit(com_res_mlp_forward)
    out = forward(real_feature, imag_feature, real_fcs, imag_fcs, out_w, out_b)
    out = jax.block_until_ready(out)

    ref = _reference_forward(real_feature, imag_feature,
                             real_fcs, imag_fcs, out_w, out_b)
    ref = jax.block_until_ready(ref)

    assert out.shape == (n_nodes, output_dim), out.shape
    assert out.dtype == jnp.float32
    assert bool(jnp.all(jnp.isfinite(out)))
    max_err = float(jnp.max(jnp.abs(out - ref)))
    assert bool(jnp.allclose(out, ref, rtol=2e-2, atol=2e-2)), max_err

    print("KERNEL_OK")
</pallas_src>

<mosaic_0001>
module attributes {stable_mosaic.version = 11 : i64} {
  func.func @_com_layer_kernel(%arg0: i32, %arg1: i32, %arg2: i32, %arg3: memref<128x128xf32, #tpu.memory_space<vmem>>, %arg4: memref<128x128xf32, #tpu.memory_space<vmem>>, %arg5: memref<128x128xf32, #tpu.memory_space<vmem>>, %arg6: memref<128x128xf32, #tpu.memory_space<vmem>>, %arg7: memref<1x128xf32, #tpu.memory_space<vmem>>, %arg8: memref<1x128xf32, #tpu.memory_space<vmem>>, %arg9: memref<128x128xf32, #tpu.memory_space<vmem>>, %arg10: memref<128x128xf32, #tpu.memory_space<vmem>>, %arg11: memref<128x128xf32, #tpu.memory_space<vmem>>, %arg12: memref<128x128xf32, #tpu.memory_space<vmem>>, %arg13: memref<128x128xf32, #tpu.memory_space<vmem>>, %arg14: memref<128x128xf32, #tpu.memory_space<vmem>>, %arg15: memref<128x128xf32, #tpu.memory_space<vmem>>, %arg16: memref<128x128xf32, #tpu.memory_space<vmem>>) attributes {dimension_semantics = [#tpu.dimension_semantics<parallel>, #tpu.dimension_semantics<parallel>, #tpu.dimension_semantics<arbitrary>], iteration_bounds = array<i64: 1, 1, 1>, scalar_prefetch = 0 : i64, scratch_operands = 2 : i64, tpu.core_type = #tpu.core_type<tc>, window_params = [{transform_indices = @transform_0, window_bounds = array<i64: 128, 128>}, {transform_indices = @transform_1, window_bounds = array<i64: 128, 128>}, {transform_indices = @transform_2, window_bounds = array<i64: 128, 128>}, {transform_indices = @transform_3, window_bounds = array<i64: 128, 128>}, {transform_indices = @transform_4, window_bounds = array<i64: 1, 128>}, {transform_indices = @transform_5, window_bounds = array<i64: 1, 128>}, {transform_indices = @transform_6, window_bounds = array<i64: 128, 128>}, {transform_indices = @transform_7, window_bounds = array<i64: 128, 128>}, {transform_indices = @transform_8, window_bounds = array<i64: 128, 128>}, {transform_indices = @transform_9, window_bounds = array<i64: 128, 128>}, {transform_indices = @transform_10, window_bounds = array<i64: 128, 128>}, {transform_indices = @transform_11, window_bounds = array<i64: 128, 128>}]} {
    %c0_i32 = arith.constant 0 : i32
    %0 = arith.cmpi eq, %arg2, %c0_i32 : i32
    %1 = arith.extui %0 : i1 to i32
    %c0_i32_0 = arith.constant 0 : i32
    %2 = arith.cmpi ne, %1, %c0_i32_0 : i32
    scf.if %2 {
      %cst_19 = arith.constant 0.000000e+00 : f32
      %18 = vector.broadcast %cst_19 : f32 to vector<128x128xf32>
      %c0_20 = arith.constant 0 : index
      %c0_21 = arith.constant 0 : index
      %19 = vector.load %arg15[%c0_20, %c0_21] : memref<128x128xf32, #tpu.memory_space<vmem>>, vector<128x128xf32>
      tpu.vector_store %arg15[%c0_20, %c0_21], %18 {strides = array<i32>} : memref<128x128xf32, #tpu.memory_space<vmem>>, vector<128x128xf32>,
      %cst_22 = arith.constant 0.000000e+00 : f32
      %20 = vector.broadcast %cst_22 : f32 to vector<128x128xf32>
      %c0_23 = arith.constant 0 : index
      %c0_24 = arith.constant 0 : index
      %21 = vector.load %arg16[%c0_23, %c0_24] : memref<128x128xf32, #tpu.memory_space<vmem>>, vector<128x128xf32>
      tpu.vector_store %arg16[%c0_23, %c0_24], %20 {strides = array<i32>} : memref<128x128xf32, #tpu.memory_space<vmem>>, vector<128x128xf32>,
    } else {
    }
    %c0 = arith.constant 0 : index
    %c0_1 = arith.constant 0 : index
    %3 = vector.load %arg15[%c0, %c0_1] : memref<128x128xf32, #tpu.memory_space<vmem>>, vector<128x128xf32>
    %c0_2 = arith.constant 0 : index
    %c0_3 = arith.constant 0 : index
    %4 = vector.load %arg3[%c0_2, %c0_3] : memref<128x128xf32, #tpu.memory_space<vmem>>, vector<128x128xf32>
    %c0_4 = arith.constant 0 : index
    %c0_5 = arith.constant 0 : index
    %5 = vector.load %arg5[%c0_4, %c0_5] : memref<128x128xf32, #tpu.memory_space<vmem>>, vector<128x128xf32>
    %cst = arith.constant dense<0.000000e+00> : vector<128x128xf32>
    %6 = tpu.matmul %4, %5, %cst {dimension_numbers = #tpu.dot_dimension_numbers<[1], [0], [0], [1], [0, 0, 1, 1], [], []>} : vector<128x128xf32>, vector<128x128xf32>, vector<128x128xf32> -> vector<128x128xf32>
    %7 = arith.addf %3, %6 : vector<128x128xf32>
    %c0_6 = arith.constant 0 : index
    %c0_7 = arith.constant 0 : index
    %8 = vector.load %arg15[%c0_6, %c0_7] : memref<128x128xf32, #tpu.memory_space<vmem>>, vector<128x128xf32>
    tpu.vector_store %arg15[%c0_6, %c0_7], %7 {strides = array<i32>} : memref<128x128xf32, #tpu.memory_space<vmem>>, vector<128x128xf32>,
    %c0_8 = arith.constant 0 : index
    %c0_9 = arith.constant 0 : index
    %9 = vector.load %arg16[%c0_8, %c0_9] : memref<128x128xf32, #tpu.memory_space<vmem>>, vector<128x128xf32>
    %c0_10 = arith.constant 0 : index
    %c0_11 = arith.constant 0 : index
    %10 = vector.load %arg4[%c0_10, %c0_11] : memref<128x128xf32, #tpu.memory_space<vmem>>, vector<128x128xf32>
    %c0_12 = arith.constant 0 : index
    %c0_13 = arith.constant 0 : index
    %11 = vector.load %arg6[%c0_12, %c0_13] : memref<128x128xf32, #tpu.memory_space<vmem>>, vector<128x128xf32>
    %cst_14 = arith.constant dense<0.000000e+00> : vector<128x128xf32>
    %12 = tpu.matmul %10, %11, %cst_14 {dimension_numbers = #tpu.dot_dimension_numbers<[1], [0], [0], [1], [0, 0, 1, 1], [], []>} : vector<128x128xf32>, vector<128x128xf32>, vector<128x128xf32> -> vector<128x128xf32>
    %13 = arith.addf %9, %12 : vector<128x128xf32>
    %c0_15 = arith.constant 0 : index
    %c0_16 = arith.constant 0 : index
    %14 = vector.load %arg16[%c0_15, %c0_16] : memref<128x128xf32, #tpu.memory_space<vmem>>, vector<128x128xf32>
    tpu.vector_store %arg16[%c0_15, %c0_16], %13 {strides = array<i32>} : memref<128x128xf32, #tpu.memory_space<vmem>>, vector<128x128xf32>,
    %c0_i32_17 = arith.constant 0 : i32
    %15 = arith.cmpi eq, %arg2, %c0_i32_17 : i32
    %16 = arith.extui %15 : i1 to i32
    %c0_i32_18 = arith.constant 0 : i32
    %17 = arith.cmpi ne, %16, %c0_i32_18 : i32
    scf.if %17 {
      %c0_19 = arith.constant 0 : index
      %c0_20 = arith.constant 0 : index
      %18 = vector.load %arg15[%c0_19, %c0_20] : memref<128x128xf32, #tpu.memory_space<vmem>>, vector<128x128xf32>
      %c0_21 = arith.constant 0 : index
      %c0_22 = arith.constant 0 : index
      %19 = vector.load %arg7[%c0_21, %c0_22] : memref<1x128xf32, #tpu.memory_space<vmem>>, vector<1x128xf32>
      %20 = vector.broadcast %19 : vector<1x128xf32> to vector<128x128xf32>
      %21 = arith.addf %18, %20 : vector<128x128xf32>
      %c0_23 = arith.constant 0 : index
      %c0_24 = arith.constant 0 : index
      %22 = vector.load %arg16[%c0_23, %c0_24] : memref<128x128xf32, #tpu.memory_space<vmem>>, vector<128x128xf32>
      %c0_25 = arith.constant 0 : index
      %c0_26 = arith.constant 0 : index
      %23 = vector.load %arg8[%c0_25, %c0_26] : memref<1x128xf32, #tpu.memory_space<vmem>>, vector<1x128xf32>
      %24 = vector.broadcast %23 : vector<1x128xf32> to vector<128x128xf32>
      %25 = arith.addf %22, %24 : vector<128x128xf32>
      %cst_27 = arith.constant 0.000000e+00 : f32
      %26 = vector.broadcast %cst_27 : f32 to vector<128x128xf32>
      %27 = arith.cmpf oge, %21, %26 : vector<128x128xf32>
      %cst_28 = arith.constant 0.000000e+00 : f32
      %28 = vector.broadcast %cst_28 : f32 to vector<128x128xf32>
      %29 = arith.select %27, %21, %28 : vector<128x128xi1>, vector<128x128xf32>
      %cst_29 = arith.constant 0.000000e+00 : f32
      %30 = vector.broadcast %cst_29 : f32 to vector<128x128xf32>
      %31 = arith.select %27, %25, %30 : vector<128x128xi1>, vector<128x128xf32>
      %c0_30 = arith.constant 0 : index
      %c0_31 = arith.constant 0 : index
      %32 = vector.load %arg13[%c0_30, %c0_31] : memref<128x128xf32, #tpu.memory_space<vmem>>, vector<128x128xf32>
      tpu.vector_store %arg13[%c0_30, %c0_31], %29 {strides = array<i32>} : memref<128x128xf32, #tpu.memory_space<vmem>>, vector<128x128xf32>,
      %c0_32 = arith.constant 0 : index
      %c0_33 = arith.constant 0 : index
      %33 = vector.load %arg14[%c0_32, %c0_33] : memref<128x128xf32, #tpu.memory_space<vmem>>, vector<128x128xf32>
      tpu.vector_store %arg14[%c0_32, %c0_33], %31 {strides = array<i32>} : memref<128x128xf32, #tpu.memory_space<vmem>>, vector<128x128xf32>,
      %c0_34 = arith.constant 0 : index
      %c0_35 = arith.constant 0 : index
      %34 = vector.load %arg9[%c0_34, %c0_35] : memref<128x128xf32, #tpu.memory_space<vmem>>, vector<128x128xf32>
      %35 = arith.addf %29, %34 : vector<128x128xf32>
      %c0_36 = arith.constant 0 : index
      %c0_37 = arith.constant 0 : index
      %36 = vector.load %arg11[%c0_36, %c0_37] : memref<128x128xf32, #tpu.memory_space<vmem>>, vector<128x128xf32>
      tpu.vector_store %arg11[%c0_36, %c0_37], %35 {strides = array<i32>} : memref<128x128xf32, #tpu.memory_space<vmem>>, vector<128x128xf32>,
      %c0_38 = arith.constant 0 : index
      %c0_39 = arith.constant 0 : index
      %37 = vector.load %arg10[%c0_38, %c0_39] : memref<128x128xf32, #tpu.memory_space<vmem>>, vector<128x128xf32>
      %38 = arith.addf %31, %37 : vector<128x128xf32>
      %c0_40 = arith.constant 0 : index
      %c0_41 = arith.constant 0 : index
      %39 = vector.load %arg12[%c0_40, %c0_41] : memref<128x128xf32, #tpu.memory_space<vmem>>, vector<128x128xf32>
      tpu.vector_store %arg12[%c0_40, %c0_41], %38 {strides = array<i32>} : memref<128x128xf32, #tpu.memory_space<vmem>>, vector<128x128xf32>,
    } else {
    }
    return
  }
  func.func @transform_0(%arg0: i32, %arg1: i32, %arg2: i32) -> (i32, i32) {
    %c0_i32 = arith.constant 0 : i32
    return %arg0, %arg2 : i32, i32
  }
  func.func @transform_1(%arg0: i32, %arg1: i32, %arg2: i32) -> (i32, i32) {
    %c0_i32 = arith.constant 0 : i32
    return %arg0, %arg2 : i32, i32
  }
  func.func @transform_2(%arg0: i32, %arg1: i32, %arg2: i32) -> (i32, i32) {
    %c0_i32 = arith.constant 0 : i32
    return %arg2, %arg1 : i32, i32
  }
  func.func @transform_3(%arg0: i32, %arg1: i32, %arg2: i32) -> (i32, i32) {
    %c0_i32 = arith.constant 0 : i32
    return %arg2, %arg1 : i32, i32
  }
  func.func @transform_4(%arg0: i32, %arg1: i32, %arg2: i32) -> (i32, i32) {
    %c0_i32 = arith.constant 0 : i32
    %c0_i32_0 = arith.constant 0 : i32
    return %c0_i32, %arg1 : i32, i32
  }
  func.func @transform_5(%arg0: i32, %arg1: i32, %arg2: i32) -> (i32, i32) {
    %c0_i32 = arith.constant 0 : i32
    %c0_i32_0 = arith.constant 0 : i32
    return %c0_i32, %arg1 : i32, i32
  }
  func.func @transform_6(%arg0: i32, %arg1: i32, %arg2: i32) -> (i32, i32) {
    %c0_i32 = arith.constant 0 : i32
    return %arg0, %arg1 : i32, i32
  }
  func.func @transform_7(%arg0: i32, %arg1: i32, %arg2: i32) -> (i32, i32) {
    %c0_i32 = arith.constant 0 : i32
    return %arg0, %arg1 : i32, i32
  }
  func.func @transform_8(%arg0: i32, %arg1: i32, %arg2: i32) -> (i32, i32) {
    %c0_i32 = arith.constant 0 : i32
    return %arg0, %arg1 : i32, i32
  }
  func.func @transform_9(%arg0: i32, %arg1: i32, %arg2: i32) -> (i32, i32) {
    %c0_i32 = arith.constant 0 : i32
    return %arg0, %arg1 : i32, i32
  }
  func.func @transform_10(%arg0: i32, %arg1: i32, %arg2: i32) -> (i32, i32) {
    %c0_i32 = arith.constant 0 : i32
    return %arg0, %arg1 : i32, i32
  }
  func.func @transform_11(%arg0: i32, %arg1: i32, %arg2: i32) -> (i32, i32) {
    %c0_i32 = arith.constant 0 : i32
    return %arg0, %arg1 : i32, i32
  }
}

module attributes {stable_mosaic.version = 11 : i64} {
  func.func @_com_layer_kernel(%arg0: i32, %arg1: i32, %arg2: i32, %arg3: memref<128x128xf32, #tpu.memory_space<vmem>>, %arg4: memref<128x128xf32, #tpu.memory_space<vmem>>, %arg5: memref<128x128xf32, #tpu.memory_space<vmem>>, %arg6: memref<128x128xf32, #tpu.memory_space<vmem>>, %arg7: memref<1x128xf32, #tpu.memory_space<vmem>>, %arg8: memref<1x128xf32, #tpu.memory_space<vmem>>, %arg9: memref<128x128xf32, #tpu.memory_space<vmem>>, %arg10: memref<128x128xf32, #tpu.memory_space<vmem>>, %arg11: memref<128x128xf32, #tpu.memory_space<vmem>>, %arg12: memref<128x128xf32, #tpu.memory_space<vmem>>, %arg13: memref<128x128xf32, #tpu.memory_space<vmem>>, %arg14: memref<128x128xf32, #tpu.memory_space<vmem>>, %arg15: memref<128x128xf32, #tpu.memory_space<vmem>>, %arg16: memref<128x128xf32, #tpu.memory_space<vmem>>) attributes {dimension_semantics = [#tpu.dimension_semantics<parallel>, #tpu.dimension_semantics<parallel>, #tpu.dimension_semantics<arbitrary>], iteration_bounds = array<i64: 1, 1, 1>, scalar_prefetch = 0 : i64, scratch_operands = 2 : i64, tpu.core_type = #tpu.core_type<tc>, window_params = [{transform_indices = @transform_0, window_bounds = array<i64: 128, 128>}, {transform_indices = @transform_1, window_bounds = array<i64: 128, 128>}, {transform_indices = @transform_2, window_bounds = array<i64: 128, 128>}, {transform_indices = @transform_3, window_bounds = array<i64: 128, 128>}, {transform_indices = @transform_4, window_bounds = array<i64: 1, 128>}, {transform_indices = @transform_5, window_bounds = array<i64: 1, 128>}, {transform_indices = @transform_6, window_bounds = array<i64: 128, 128>}, {transform_indices = @transform_7, window_bounds = array<i64: 128, 128>}, {transform_indices = @transform_8, window_bounds = array<i64: 128, 128>}, {transform_indices = @transform_9, window_bounds = array<i64: 128, 128>}, {transform_indices = @transform_10, window_bounds = array<i64: 128, 128>}, {transform_indices = @transform_11, window_bounds = array<i64: 128, 128>}]} {
    %c0_i32 = arith.constant 0 : i32
    %0 = arith.cmpi eq, %arg2, %c0_i32 : i32
    %1 = arith.extui %0 : i1 to i32
    %c0_i32_0 = arith.constant 0 : i32
    %2 = arith.cmpi ne, %1, %c0_i32_0 : i32
    scf.if %2 {
      %cst_19 = arith.constant 0.000000e+00 : f32
      %18 = vector.broadcast %cst_19 : f32 to vector<128x128xf32>
      %c0_20 = arith.constant 0 : index
      %c0_21 = arith.constant 0 : index
      %19 = vector.load %arg15[%c0_20, %c0_21] : memref<128x128xf32, #tpu.memory_space<vmem>>, vector<128x128xf32>
      tpu.vector_store %arg15[%c0_20, %c0_21], %18 {strides = array<i32>} : memref<128x128xf32, #tpu.memory_space<vmem>>, vector<128x128xf32>,
      %cst_22 = arith.constant 0.000000e+00 : f32
      %20 = vector.broadcast %cst_22 : f32 to vector<128x128xf32>
      %c0_23 = arith.constant 0 : index
      %c0_24 = arith.constant 0 : index
      %21 = vector.load %arg16[%c0_23, %c0_24] : memref<128x128xf32, #tpu.memory_space<vmem>>, vector<128x128xf32>
      tpu.vector_store %arg16[%c0_23, %c0_24], %20 {strides = array<i32>} : memref<128x128xf32, #tpu.memory_space<vmem>>, vector<128x128xf32>,
    } else {
    }
    %c0 = arith.constant 0 : index
    %c0_1 = arith.constant 0 : index
    %3 = vector.load %arg15[%c0, %c0_1] : memref<128x128xf32, #tpu.memory_space<vmem>>, vector<128x128xf32>
    %c0_2 = arith.constant 0 : index
    %c0_3 = arith.constant 0 : index
    %4 = vector.load %arg3[%c0_2, %c0_3] : memref<128x128xf32, #tpu.memory_space<vmem>>, vector<128x128xf32>
    %c0_4 = arith.constant 0 : index
    %c0_5 = arith.constant 0 : index
    %5 = vector.load %arg5[%c0_4, %c0_5] : memref<128x128xf32, #tpu.memory_space<vmem>>, vector<128x128xf32>
    %cst = arith.constant dense<0.000000e+00> : vector<128x128xf32>
    %6 = tpu.matmul %4, %5, %cst {dimension_numbers = #tpu.dot_dimension_numbers<[1], [0], [0], [1], [0, 0, 1, 1], [], []>} : vector<128x128xf32>, vector<128x128xf32>, vector<128x128xf32> -> vector<128x128xf32>
    %7 = arith.addf %3, %6 : vector<128x128xf32>
    %c0_6 = arith.constant 0 : index
    %c0_7 = arith.constant 0 : index
    %8 = vector.load %arg15[%c0_6, %c0_7] : memref<128x128xf32, #tpu.memory_space<vmem>>, vector<128x128xf32>
    tpu.vector_store %arg15[%c0_6, %c0_7], %7 {strides = array<i32>} : memref<128x128xf32, #tpu.memory_space<vmem>>, vector<128x128xf32>,
    %c0_8 = arith.constant 0 : index
    %c0_9 = arith.constant 0 : index
    %9 = vector.load %arg16[%c0_8, %c0_9] : memref<128x128xf32, #tpu.memory_space<vmem>>, vector<128x128xf32>
    %c0_10 = arith.constant 0 : index
    %c0_11 = arith.constant 0 : index
    %10 = vector.load %arg4[%c0_10, %c0_11] : memref<128x128xf32, #tpu.memory_space<vmem>>, vector<128x128xf32>
    %c0_12 = arith.constant 0 : index
    %c0_13 = arith.constant 0 : index
    %11 = vector.load %arg6[%c0_12, %c0_13] : memref<128x128xf32, #tpu.memory_space<vmem>>, vector<128x128xf32>
    %cst_14 = arith.constant dense<0.000000e+00> : vector<128x128xf32>
    %12 = tpu.matmul %10, %11, %cst_14 {dimension_numbers = #tpu.dot_dimension_numbers<[1], [0], [0], [1], [0, 0, 1, 1], [], []>} : vector<128x128xf32>, vector<128x128xf32>, vector<128x128xf32> -> vector<128x128xf32>
    %13 = arith.addf %9, %12 : vector<128x128xf32>
    %c0_15 = arith.constant 0 : index
    %c0_16 = arith.constant 0 : index
    %14 = vector.load %arg16[%c0_15, %c0_16] : memref<128x128xf32, #tpu.memory_space<vmem>>, vector<128x128xf32>
    tpu.vector_store %arg16[%c0_15, %c0_16], %13 {strides = array<i32>} : memref<128x128xf32, #tpu.memory_space<vmem>>, vector<128x128xf32>,
    %c0_i32_17 = arith.constant 0 : i32
    %15 = arith.cmpi eq, %arg2, %c0_i32_17 : i32
    %16 = arith.extui %15 : i1 to i32
    %c0_i32_18 = arith.constant 0 : i32
    %17 = arith.cmpi ne, %16, %c0_i32_18 : i32
    scf.if %17 {
      %c0_19 = arith.constant 0 : index
      %c0_20 = arith.constant 0 : index
      %18 = vector.load %arg15[%c0_19, %c0_20] : memref<128x128xf32, #tpu.memory_space<vmem>>, vector<128x128xf32>
      %c0_21 = arith.constant 0 : index
      %c0_22 = arith.constant 0 : index
      %19 = vector.load %arg7[%c0_21, %c0_22] : memref<1x128xf32, #tpu.memory_space<vmem>>, vector<1x128xf32>
      %20 = vector.broadcast %19 : vector<1x128xf32> to vector<128x128xf32>
      %21 = arith.addf %18, %20 : vector<128x128xf32>
      %c0_23 = arith.constant 0 : index
      %c0_24 = arith.constant 0 : index
      %22 = vector.load %arg16[%c0_23, %c0_24] : memref<128x128xf32, #tpu.memory_space<vmem>>, vector<128x128xf32>
      %c0_25 = arith.constant 0 : index
      %c0_26 = arith.constant 0 : index
      %23 = vector.load %arg8[%c0_25, %c0_26] : memref<1x128xf32, #tpu.memory_space<vmem>>, vector<1x128xf32>
      %24 = vector.broadcast %23 : vector<1x128xf32> to vector<128x128xf32>
      %25 = arith.addf %22, %24 : vector<128x128xf32>
      %cst_27 = arith.constant 0.000000e+00 : f32
      %26 = vector.broadcast %cst_27 : f32 to vector<128x128xf32>
      %27 = arith.cmpf oge, %21, %26 : vector<128x128xf32>
      %cst_28 = arith.constant 0.000000e+00 : f32
      %28 = vector.broadcast %cst_28 : f32 to vector<128x128xf32>
      %29 = arith.select %27, %21, %28 : vector<128x128xi1>, vector<128x128xf32>
      %cst_29 = arith.constant 0.000000e+00 : f32
      %30 = vector.broadcast %cst_29 : f32 to vector<128x128xf32>
      %31 = arith.select %27, %25, %30 : vector<128x128xi1>, vector<128x128xf32>
      %c0_30 = arith.constant 0 : index
      %c0_31 = arith.constant 0 : index
      %32 = vector.load %arg13[%c0_30, %c0_31] : memref<128x128xf32, #tpu.memory_space<vmem>>, vector<128x128xf32>
      tpu.vector_store %arg13[%c0_30, %c0_31], %29 {strides = array<i32>} : memref<128x128xf32, #tpu.memory_space<vmem>>, vector<128x128xf32>,
      %c0_32 = arith.constant 0 : index
      %c0_33 = arith.constant 0 : index
      %33 = vector.load %arg14[%c0_32, %c0_33] : memref<128x128xf32, #tpu.memory_space<vmem>>, vector<128x128xf32>
      tpu.vector_store %arg14[%c0_32, %c0_33], %31 {strides = array<i32>} : memref<128x128xf32, #tpu.memory_space<vmem>>, vector<128x128xf32>,
      %c0_34 = arith.constant 0 : index
      %c0_35 = arith.constant 0 : index
      %34 = vector.load %arg9[%c0_34, %c0_35] : memref<128x128xf32, #tpu.memory_space<vmem>>, vector<128x128xf32>
      %35 = arith.addf %29, %34 : vector<128x128xf32>
      %c0_36 = arith.constant 0 : index
      %c0_37 = arith.constant 0 : index
      %36 = vector.load %arg11[%c0_36, %c0_37] : memref<128x128xf32, #tpu.memory_space<vmem>>, vector<128x128xf32>
      tpu.vector_store %arg11[%c0_36, %c0_37], %35 {strides = array<i32>} : memref<128x128xf32, #tpu.memory_space<vmem>>, vector<128x128xf32>,
      %c0_38 = arith.constant 0 : index
      %c0_39 = arith.constant 0 : index
      %37 = vector.load %arg10[%c0_38, %c0_39] : memref<128x128xf32, #tpu.memory_space<vmem>>, vector<128x128xf32>
      %38 = arith.addf %31, %37 : vector<128x128xf32>
      %c0_40 = arith.constant 0 : index
      %c0_41 = arith.constant 0 : index
      %39 = vector.load %arg12[%c0_40, %c0_41] : memref<128x128xf32, #tpu.memory_space<vmem>>, vector<128x128xf32>
      tpu.vector_store %arg12[%c0_40, %c0_41], %38 {strides = array<i32>} : memref<128x128xf32, #tpu.memory_space<vmem>>, vector<128x128xf32>,
    } else {
    }
    return
  }
  func.func @transform_0(%arg0: i32, %arg1: i32, %arg2: i32) -> (i32, i32) {
    %c0_i32 = arith.constant 0 : i32
    return %arg0, %arg2 : i32, i32
  }
  func.func @transform_1(%arg0: i32, %arg1: i32, %arg2: i32) -> (i32, i32) {
    %c0_i32 = arith.constant 0 : i32
    return %arg0, %arg2 : i32, i32
  }
  func.func @transform_2(%arg0: i32, %arg1: i32, %arg2: i32) -> (i32, i32) {
    %c0_i32 = arith.constant 0 : i32
    return %arg2, %arg1 : i32, i32
  }
  func.func @transform_3(%arg0: i32, %arg1: i32, %arg2: i32) -> (i32, i32) {
    %c0_i32 = arith.constant 0 : i32
    return %arg2, %arg1 : i32, i32
  }
  func.func @transform_4(%arg0: i32, %arg1: i32, %arg2: i32) -> (i32, i32) {
    %c0_i32 = arith.constant 0 : i32
    %c0_i32_0 = arith.constant 0 : i32
    return %c0_i32, %arg1 : i32, i32
  }
  func.func @transform_5(%arg0: i32, %arg1: i32, %arg2: i32) -> (i32, i32) {
    %c0_i32 = arith.constant 0 : i32
    %c0_i32_0 = arith.constant 0 : i32
    return %c0_i32, %arg1 : i32, i32
  }
  func.func @transform_6(%arg0: i32, %arg1: i32, %arg2: i32) -> (i32, i32) {
    %c0_i32 = arith.constant 0 : i32
    return %arg0, %arg1 : i32, i32
  }
  func.func @transform_7(%arg0: i32, %arg1: i32, %arg2: i32) -> (i32, i32) {
    %c0_i32 = arith.constant 0 : i32
    return %arg0, %arg1 : i32, i32
  }
  func.func @transform_8(%arg0: i32, %arg1: i32, %arg2: i32) -> (i32, i32) {
    %c0_i32 = arith.constant 0 : i32
    return %arg0, %arg1 : i32, i32
  }
  func.func @transform_9(%arg0: i32, %arg1: i32, %arg2: i32) -> (i32, i32) {
    %c0_i32 = arith.constant 0 : i32
    return %arg0, %arg1 : i32, i32
  }
  func.func @transform_10(%arg0: i32, %arg1: i32, %arg2: i32) -> (i32, i32) {
    %c0_i32 = arith.constant 0 : i32
    return %arg0, %arg1 : i32, i32
  }
  func.func @transform_11(%arg0: i32, %arg1: i32, %arg2: i32) -> (i32, i32) {
    %c0_i32 = arith.constant 0 : i32
    return %arg0, %arg1 : i32, i32
  }
}

module attributes {stable_mosaic.version = 11 : i64} {
  func.func @_concat_linear_kernel(%arg0: i32, %arg1: i32, %arg2: i32, %arg3: memref<128x128xf32, #tpu.memory_space<vmem>>, %arg4: memref<128x128xf32, #tpu.memory_space<vmem>>, %arg5: memref<128x128xf32, #tpu.memory_space<vmem>>, %arg6: memref<128x128xf32, #tpu.memory_space<vmem>>, %arg7: memref<1x128xf32, #tpu.memory_space<vmem>>, %arg8: memref<128x128xf32, #tpu.memory_space<vmem>>, %arg9: memref<128x128xf32, #tpu.memory_space<vmem>>) attributes {dimension_semantics = [#tpu.dimension_semantics<parallel>, #tpu.dimension_semantics<parallel>, #tpu.dimension_semantics<arbitrary>], iteration_bounds = array<i64: 1, 1, 1>, scalar_prefetch = 0 : i64, scratch_operands = 1 : i64, tpu.core_type = #tpu.core_type<tc>, window_params = [{transform_indices = @transform_0, window_bounds = array<i64: 128, 128>}, {transform_indices = @transform_1, window_bounds = array<i64: 128, 128>}, {transform_indices = @transform_2, window_bounds = array<i64: 128, 128>}, {transform_indices = @transform_3, window_bounds = array<i64: 128, 128>}, {transform_indices = @transform_4, window_bounds = array<i64: 1, 128>}, {transform_indices = @transform_5, window_bounds = array<i64: 128, 128>}]} {
    %c0_i32 = arith.constant 0 : i32
    %0 = arith.cmpi eq, %arg2, %c0_i32 : i32
    %1 = arith.extui %0 : i1 to i32
    %c0_i32_0 = arith.constant 0 : i32
    %2 = arith.cmpi ne, %1, %c0_i32_0 : i32
    scf.if %2 {
      %cst_19 = arith.constant 0.000000e+00 : f32
      %18 = vector.broadcast %cst_19 : f32 to vector<128x128xf32>
      %c0_20 = arith.constant 0 : index
      %c0_21 = arith.constant 0 : index
      %19 = vector.load %arg9[%c0_20, %c0_21] : memref<128x128xf32, #tpu.memory_space<vmem>>, vector<128x128xf32>
      tpu.vector_store %arg9[%c0_20, %c0_21], %18 {strides = array<i32>} : memref<128x128xf32, #tpu.memory_space<vmem>>, vector<128x128xf32>,
    } else {
    }
    %c0 = arith.constant 0 : index
    %c0_1 = arith.constant 0 : index
    %3 = vector.load %arg9[%c0, %c0_1] : memref<128x128xf32, #tpu.memory_space<vmem>>, vector<128x128xf32>
    %c0_2 = arith.constant 0 : index
    %c0_3 = arith.constant 0 : index
    %4 = vector.load %arg3[%c0_2, %c0_3] : memref<128x128xf32, #tpu.memory_space<vmem>>, vector<128x128xf32>
    %c0_4 = arith.constant 0 : index
    %c0_5 = arith.constant 0 : index
    %5 = vector.load %arg5[%c0_4, %c0_5] : memref<128x128xf32, #tpu.memory_space<vmem>>, vector<128x128xf32>
    %cst = arith.constant dense<0.000000e+00> : vector<128x128xf32>
    %6 = tpu.matmul %4, %5, %cst {dimension_numbers = #tpu.dot_dimension_numbers<[1], [0], [0], [1], [0, 0, 1, 1], [], []>} : vector<128x128xf32>, vector<128x128xf32>, vector<128x128xf32> -> vector<128x128xf32>
    %7 = arith.addf %3, %6 : vector<128x128xf32>
    %c0_6 = arith.constant 0 : index
    %c0_7 = arith.constant 0 : index
    %8 = vector.load %arg9[%c0_6, %c0_7] : memref<128x128xf32, #tpu.memory_space<vmem>>, vector<128x128xf32>
    tpu.vector_store %arg9[%c0_6, %c0_7], %7 {strides = array<i32>} : memref<128x128xf32, #tpu.memory_space<vmem>>, vector<128x128xf32>,
    %c0_8 = arith.constant 0 : index
    %c0_9 = arith.constant 0 : index
    %9 = vector.load %arg9[%c0_8, %c0_9] : memref<128x128xf32, #tpu.memory_space<vmem>>, vector<128x128xf32>
    %c0_10 = arith.constant 0 : index
    %c0_11 = arith.constant 0 : index
    %10 = vector.load %arg4[%c0_10, %c0_11] : memref<128x128xf32, #tpu.memory_space<vmem>>, vector<128x128xf32>
    %c0_12 = arith.constant 0 : index
    %c0_13 = arith.constant 0 : index
    %11 = vector.load %arg6[%c0_12, %c0_13] : memref<128x128xf32, #tpu.memory_space<vmem>>, vector<128x128xf32>
    %cst_14 = arith.constant dense<0.000000e+00> : vector<128x128xf32>
    %12 = tpu.matmul %10, %11, %cst_14 {dimension_numbers = #tpu.dot_dimension_numbers<[1], [0], [0], [1], [0, 0, 1, 1], [], []>} : vector<128x128xf32>, vector<128x128xf32>, vector<128x128xf32> -> vector<128x128xf32>
    %13 = arith.addf %9, %12 : vector<128x128xf32>
    %c0_15 = arith.constant 0 : index
    %c0_16 = arith.constant 0 : index
    %14 = vector.load %arg9[%c0_15, %c0_16] : memref<128x128xf32, #tpu.memory_space<vmem>>, vector<128x128xf32>
    tpu.vector_store %arg9[%c0_15, %c0_16], %13 {strides = array<i32>} : memref<128x128xf32, #tpu.memory_space<vmem>>, vector<128x128xf32>,
    %c0_i32_17 = arith.constant 0 : i32
    %15 = arith.cmpi eq, %arg2, %c0_i32_17 : i32
    %16 = arith.extui %15 : i1 to i32
    %c0_i32_18 = arith.constant 0 : i32
    %17 = arith.cmpi ne, %16, %c0_i32_18 : i32
    scf.if %17 {
      %c0_19 = arith.constant 0 : index
      %c0_20 = arith.constant 0 : index
      %18 = vector.load %arg9[%c0_19, %c0_20] : memref<128x128xf32, #tpu.memory_space<vmem>>, vector<128x128xf32>
      %c0_21 = arith.constant 0 : index
      %c0_22 = arith.constant 0 : index
      %19 = vector.load %arg7[%c0_21, %c0_22] : memref<1x128xf32, #tpu.memory_space<vmem>>, vector<1x128xf32>
      %20 = vector.broadcast %19 : vector<1x128xf32> to vector<128x128xf32>
      %21 = arith.addf %18, %20 : vector<128x128xf32>
      %c0_23 = arith.constant 0 : index
      %c0_24 = arith.constant 0 : index
      %22 = vector.load %arg8[%c0_23, %c0_24] : memref<128x128xf32, #tpu.memory_space<vmem>>, vector<128x128xf32>
      tpu.vector_store %arg8[%c0_23, %c0_24], %21 {strides = array<i32>} : memref<128x128xf32, #tpu.memory_space<vmem>>, vector<128x128xf32>,
    } else {
    }
    return
  }
  func.func @transform_0(%arg0: i32, %arg1: i32, %arg2: i32) -> (i32, i32) {
    %c0_i32 = arith.constant 0 : i32
    return %arg0, %arg2 : i32, i32
  }
  func.func @transform_1(%arg0: i32, %arg1: i32, %arg2: i32) -> (i32, i32) {
    %c0_i32 = arith.constant 0 : i32
    return %arg0, %arg2 : i32, i32
  }
  func.func @transform_2(%arg0: i32, %arg1: i32, %arg2: i32) -> (i32, i32) {
    %c0_i32 = arith.constant 0 : i32
    return %arg2, %arg1 : i32, i32
  }
  func.func @transform_3(%arg0: i32, %arg1: i32, %arg2: i32) -> (i32, i32) {
    %c0_i32 = arith.constant 0 : i32
    return %arg2, %arg1 : i32, i32
  }
  func.func @transform_4(%arg0: i32, %arg1: i32, %arg2: i32) -> (i32, i32) {
    %c0_i32 = arith.constant 0 : i32
    %c0_i32_0 = arith.constant 0 : i32
    return %c0_i32, %arg1 : i32, i32
  }
  func.func @transform_5(%arg0: i32, %arg1: i32, %arg2: i32) -> (i32, i32) {
    %c0_i32 = arith.constant 0 : i32
    return %arg0, %arg1 : i32, i32
  }
}

module attributes {stable_mosaic.version = 11 : i64} {
  func.func @_com_layer_kernel(%arg0: i32, %arg1: i32, %arg2: i32, %arg3: memref<128x128xf32, #tpu.memory_space<vmem>>, %arg4: memref<128x128xf32, #tpu.memory_space<vmem>>, %arg5: memref<128x128xf32, #tpu.memory_space<vmem>>, %arg6: memref<128x128xf32, #tpu.memory_space<vmem>>, %arg7: memref<1x128xf32, #tpu.memory_space<vmem>>, %arg8: memref<1x128xf32, #tpu.memory_space<vmem>>, %arg9: memref<128x128xf32, #tpu.memory_space<vmem>>, %arg10: memref<128x128xf32, #tpu.memory_space<vmem>>, %arg11: memref<128x128xf32, #tpu.memory_space<vmem>>, %arg12: memref<128x128xf32, #tpu.memory_space<vmem>>) attributes {dimension_semantics = [#tpu.dimension_semantics<parallel>, #tpu.dimension_semantics<parallel>, #tpu.dimension_semantics<arbitrary>], iteration_bounds = array<i64: 1, 1, 1>, scalar_prefetch = 0 : i64, scratch_operands = 2 : i64, tpu.core_type = #tpu.core_type<tc>, window_params = [{transform_indices = @transform_0, window_bounds = array<i64: 128, 128>}, {transform_indices = @transform_1, window_bounds = array<i64: 128, 128>}, {transform_indices = @transform_2, window_bounds = array<i64: 128, 128>}, {transform_indices = @transform_3, window_bounds = array<i64: 128, 128>}, {transform_indices = @transform_4, window_bounds = array<i64: 1, 128>}, {transform_indices = @transform_5, window_bounds = array<i64: 1, 128>}, {transform_indices = @transform_6, window_bounds = array<i64: 128, 128>}, {transform_indices = @transform_7, window_bounds = array<i64: 128, 128>}]} {
    %c0_i32 = arith.constant 0 : i32
    %0 = arith.cmpi eq, %arg2, %c0_i32 : i32
    %1 = arith.extui %0 : i1 to i32
    %c0_i32_0 = arith.constant 0 : i32
    %2 = arith.cmpi ne, %1, %c0_i32_0 : i32
    scf.if %2 {
      %cst_19 = arith.constant 0.000000e+00 : f32
      %18 = vector.broadcast %cst_19 : f32 to vector<128x128xf32>
      %c0_20 = arith.constant 0 : index
      %c0_21 = arith.constant 0 : index
      %19 = vector.load %arg11[%c0_20, %c0_21] : memref<128x128xf32, #tpu.memory_space<vmem>>, vector<128x128xf32>
      tpu.vector_store %arg11[%c0_20, %c0_21], %18 {strides = array<i32>} : memref<128x128xf32, #tpu.memory_space<vmem>>, vector<128x128xf32>,
      %cst_22 = arith.constant 0.000000e+00 : f32
      %20 = vector.broadcast %cst_22 : f32 to vector<128x128xf32>
      %c0_23 = arith.constant 0 : index
      %c0_24 = arith.constant 0 : index
      %21 = vector.load %arg12[%c0_23, %c0_24] : memref<128x128xf32, #tpu.memory_space<vmem>>, vector<128x128xf32>
      tpu.vector_store %arg12[%c0_23, %c0_24], %20 {strides = array<i32>} : memref<128x128xf32, #tpu.memory_space<vmem>>, vector<128x128xf32>,
    } else {
    }
    %c0 = arith.constant 0 : index
    %c0_1 = arith.constant 0 : index
    %3 = vector.load %arg11[%c0, %c0_1] : memref<128x128xf32, #tpu.memory_space<vmem>>, vector<128x128xf32>
    %c0_2 = arith.constant 0 : index
    %c0_3 = arith.constant 0 : index
    %4 = vector.load %arg3[%c0_2, %c0_3] : memref<128x128xf32, #tpu.memory_space<vmem>>, vector<128x128xf32>
    %c0_4 = arith.constant 0 : index
    %c0_5 = arith.constant 0 : index
    %5 = vector.load %arg5[%c0_4, %c0_5] : memref<128x128xf32, #tpu.memory_space<vmem>>, vector<128x128xf32>
    %cst = arith.constant dense<0.000000e+00> : vector<128x128xf32>
    %6 = tpu.matmul %4, %5, %cst {dimension_numbers = #tpu.dot_dimension_numbers<[1], [0], [0], [1], [0, 0, 1, 1], [], []>} : vector<128x128xf32>, vector<128x128xf32>, vector<128x128xf32> -> vector<128x128xf32>
    %7 = arith.addf %3, %6 : vector<128x128xf32>
    %c0_6 = arith.constant 0 : index
    %c0_7 = arith.constant 0 : index
    %8 = vector.load %arg11[%c0_6, %c0_7] : memref<128x128xf32, #tpu.memory_space<vmem>>, vector<128x128xf32>
    tpu.vector_store %arg11[%c0_6, %c0_7], %7 {strides = array<i32>} : memref<128x128xf32, #tpu.memory_space<vmem>>, vector<128x128xf32>,
    %c0_8 = arith.constant 0 : index
    %c0_9 = arith.constant 0 : index
    %9 = vector.load %arg12[%c0_8, %c0_9] : memref<128x128xf32, #tpu.memory_space<vmem>>, vector<128x128xf32>
    %c0_10 = arith.constant 0 : index
    %c0_11 = arith.constant 0 : index
    %10 = vector.load %arg4[%c0_10, %c0_11] : memref<128x128xf32, #tpu.memory_space<vmem>>, vector<128x128xf32>
    %c0_12 = arith.constant 0 : index
    %c0_13 = arith.constant 0 : index
    %11 = vector.load %arg6[%c0_12, %c0_13] : memref<128x128xf32, #tpu.memory_space<vmem>>, vector<128x128xf32>
    %cst_14 = arith.constant dense<0.000000e+00> : vector<128x128xf32>
    %12 = tpu.matmul %10, %11, %cst_14 {dimension_numbers = #tpu.dot_dimension_numbers<[1], [0], [0], [1], [0, 0, 1, 1], [], []>} : vector<128x128xf32>, vector<128x128xf32>, vector<128x128xf32> -> vector<128x128xf32>
    %13 = arith.addf %9, %12 : vector<128x128xf32>
    %c0_15 = arith.constant 0 : index
    %c0_16 = arith.constant 0 : index
    %14 = vector.load %arg12[%c0_15, %c0_16] : memref<128x128xf32, #tpu.memory_space<vmem>>, vector<128x128xf32>
    tpu.vector_store %arg12[%c0_15, %c0_16], %13 {strides = array<i32>} : memref<128x128xf32, #tpu.memory_space<vmem>>, vector<128x128xf32>,
    %c0_i32_17 = arith.constant 0 : i32
    %15 = arith.cmpi eq, %arg2, %c0_i32_17 : i32
    %16 = arith.extui %15 : i1 to i32
    %c0_i32_18 = arith.constant 0 : i32
    %17 = arith.cmpi ne, %16, %c0_i32_18 : i32
    scf.if %17 {
      %c0_19 = arith.constant 0 : index
      %c0_20 = arith.constant 0 : index
      %18 = vector.load %arg11[%c0_19, %c0_20] : memref<128x128xf32, #tpu.memory_space<vmem>>, vector<128x128xf32>
      %c0_21 = arith.constant 0 : index
      %c0_22 = arith.constant 0 : index
      %19 = vector.load %arg7[%c0_21, %c0_22] : memref<1x128xf32, #tpu.memory_space<vmem>>, vector<1x128xf32>
      %20 = vector.broadcast %19 : vector<1x128xf32> to vector<128x128xf32>
      %21 = arith.addf %18, %20 : vector<128x128xf32>
      %c0_23 = arith.constant 0 : index
      %c0_24 = arith.constant 0 : index
      %22 = vector.load %arg12[%c0_23, %c0_24] : memref<128x128xf32, #tpu.memory_space<vmem>>, vector<128x128xf32>
      %c0_25 = arith.constant 0 : index
      %c0_26 = arith.constant 0 : index
      %23 = vector.load %arg8[%c0_25, %c0_26] : memref<1x128xf32, #tpu.memory_space<vmem>>, vector<1x128xf32>
      %24 = vector.broadcast %23 : vector<1x128xf32> to vector<128x128xf32>
      %25 = arith.addf %22, %24 : vector<128x128xf32>
      %cst_27 = arith.constant 0.000000e+00 : f32
      %26 = vector.broadcast %cst_27 : f32 to vector<128x128xf32>
      %27 = arith.cmpf oge, %21, %26 : vector<128x128xf32>
      %cst_28 = arith.constant 0.000000e+00 : f32
      %28 = vector.broadcast %cst_28 : f32 to vector<128x128xf32>
      %29 = arith.select %27, %21, %28 : vector<128x128xi1>, vector<128x128xf32>
      %cst_29 = arith.constant 0.000000e+00 : f32
      %30 = vector.broadcast %cst_29 : f32 to vector<128x128xf32>
      %31 = arith.select %27, %25, %30 : vector<128x128xi1>, vector<128x128xf32>
      %c0_30 = arith.constant 0 : index
      %c0_31 = arith.constant 0 : index
      %32 = vector.load %arg9[%c0_30, %c0_31] : memref<128x128xf32, #tpu.memory_space<vmem>>, vector<128x128xf32>
      tpu.vector_store %arg9[%c0_30, %c0_31], %29 {strides = array<i32>} : memref<128x128xf32, #tpu.memory_space<vmem>>, vector<128x128xf32>,
      %c0_32 = arith.constant 0 : index
      %c0_33 = arith.constant 0 : index
      %33 = vector.load %arg10[%c0_32, %c0_33] : memref<128x128xf32, #tpu.memory_space<vmem>>, vector<128x128xf32>
      tpu.vector_store %arg10[%c0_32, %c0_33], %31 {strides = array<i32>} : memref<128x128xf32, #tpu.memory_space<vmem>>, vector<128x128xf32>,
    } else {
    }
    return
  }
  func.func @transform_0(%arg0: i32, %arg1: i32, %arg2: i32) -> (i32, i32) {
    %c0_i32 = arith.constant 0 : i32
    return %arg0, %arg2 : i32, i32
  }
  func.func @transform_1(%arg0: i32, %arg1: i32, %arg2: i32) -> (i32, i32) {
    %c0_i32 = arith.constant 0 : i32
    return %arg0, %arg2 : i32, i32
  }
  func.func @transform_2(%arg0: i32, %arg1: i32, %arg2: i32) -> (i32, i32) {
    %c0_i32 = arith.constant 0 : i32
    return %arg2, %arg1 : i32, i32
  }
  func.func @transform_3(%arg0: i32, %arg1: i32, %arg2: i32) -> (i32, i32) {
    %c0_i32 = arith.constant 0 : i32
    return %arg2, %arg1 : i32, i32
  }
  func.func @transform_4(%arg0: i32, %arg1: i32, %arg2: i32) -> (i32, i32) {
    %c0_i32 = arith.constant 0 : i32
    %c0_i32_0 = arith.constant 0 : i32
    return %c0_i32, %arg1 : i32, i32
  }
  func.func @transform_5(%arg0: i32, %arg1: i32, %arg2: i32) -> (i32, i32) {
    %c0_i32 = arith.constant 0 : i32
    %c0_i32_0 = arith.constant 0 : i32
    return %c0_i32, %arg1 : i32, i32
  }
  func.func @transform_6(%arg0: i32, %arg1: i32, %arg2: i32) -> (i32, i32) {
    %c0_i32 = arith.constant 0 : i32
    return %arg0, %arg1 : i32, i32
  }
  func.func @transform_7(%arg0: i32, %arg1: i32, %arg2: i32) -> (i32, i32) {
    %c0_i32 = arith.constant 0 : i32
    return %arg0, %arg1 : i32, i32
  }
}

</mosaic_0001>

<llo_original>
// kernel: com_res_mlp_forward.7
$region0: #{com_res_mlp_forward.7}
  #allocation0 [shape = 'u32[]', space=smem, size = 0x4, offset = 0x4, fixed_abs, tag = 'smem constant byte address 0x4 - core index']
  #allocation1 [shape = 'u32[144,128]{1,0:T(1,128)}', space=vmem, size = 0x12000, scoped, tag = 'internal scratch']
  #allocation2 [shape = 'f32[128,128]{1,0:T(8,128)}', space=vmem, size = 0x10000, scoped, tag = 'scratch operand']
  %s0 = inlined_call_operand.vmem [shape: f32[128,128], index: 0, kind: input, shape index: {}]
  %s1 = inlined_call_operand.vmem [shape: f32[128,128], index: 1, kind: input, shape index: {}]
  %s2 = inlined_call_operand.vmem [shape: f32[128,128], index: 2, kind: input, shape index: {}]
  %s3 = inlined_call_operand.vmem [shape: f32[128,128], index: 3, kind: input, shape index: {}]
  %s4 = inlined_call_operand.vmem [shape: f32[1,128], index: 4, kind: input, shape index: {}]
  %s5 = inlined_call_operand.vmem [shape: f32[128,128], index: 5, kind: output, shape index: {}]
  %s6 = sld [smem:[#allocation0]]
  $region38: #{com_res_mlp_forward.7} parent=0
    _
  %s8 = ssub.s32 1, %s6
  %s9 = scalar_select 0, %s8, %s6
  // Predicated region
  $region2: #{com_res_mlp_forward.7} parent=0 // pred_check
    _
  $region3: #{com_res_mlp_forward.7} parent=0 // pred_check_branch
    %11 = sbr.rel (0) target = $region5
  $region4: #{com_res_mlp_forward.7} parent=0 // pred_region
    _
  $region5: #{com_res_mlp_forward.7} parent=0 // pred_fallthru
    _
  // Predicated region
  $region6: #{com_res_mlp_forward.7} parent=0 // pred_check
    _
  $region7: #{com_res_mlp_forward.7} parent=0 // pred_check_branch
    %13 = sbr.rel (0) target = $region9
  $region8: #{com_res_mlp_forward.7} parent=0 // pred_region
    _
  $region9: #{com_res_mlp_forward.7} parent=0 // pred_fallthru
    _
  // Predicated region
  $region10: #{com_res_mlp_forward.7} parent=0 // pred_check
    _
  $region11: #{com_res_mlp_forward.7} parent=0 // pred_check_branch
    %15 = sbr.rel (0) target = $region13
  $region12: #{com_res_mlp_forward.7} parent=0 // pred_region
    _
  $region13: #{com_res_mlp_forward.7} parent=0 // pred_fallthru
    _
  // Predicated region
  $region14: #{com_res_mlp_forward.7} parent=0 // pred_check
    _
  $region15: #{com_res_mlp_forward.7} parent=0 // pred_check_branch
    %17 = sbr.rel (0) target = $region17
  $region16: #{com_res_mlp_forward.7} parent=0 // pred_region
    _
  $region17: #{com_res_mlp_forward.7} parent=0 // pred_fallthru
    _
  // Predicated region
  $region18: #{com_res_mlp_forward.7} parent=0 // pred_check
    _
  $region19: #{com_res_mlp_forward.7} parent=0 // pred_check_branch
    %19 = sbr.rel (0) target = $region21
  $region20: #{com_res_mlp_forward.7} parent=0 // pred_region
    _
  $region21: #{com_res_mlp_forward.7} parent=0 // pred_fallthru
    _
  %p20 = scmp.eq.s32.totalorder 0, 0
  // Predicated region
  $region22: #{com_res_mlp_forward.7} parent=0 // pred_check
    %p21 = pneg %p20
  $region23: #{com_res_mlp_forward.7} parent=0 // pred_check_branch
    %23 = sbr.rel (%p21) target = $region25
  $region24: #{com_res_mlp_forward.7} parent=0 // pred_region
    %24 = vst [vmem:[#allocation2] sm:$0xff] 0.0
    %25 = vst [vmem:[#allocation2 + $0x8] sm:$0xff] 0.0
    %26 = vst [vmem:[#allocation2 + $0x10] sm:$0xff] 0.0
    %27 = vst [vmem:[#allocation2 + $0x18] sm:$0xff] 0.0
    %28 = vst [vmem:[#allocation2 + $0x20] sm:$0xff] 0.0
    %29 = vst [vmem:[#allocation2 + $0x28] sm:$0xff] 0.0
    %30 = vst [vmem:[#allocation2 + $0x30] sm:$0xff] 0.0
    %31 = vst [vmem:[#allocation2 + $0x38] sm:$0xff] 0.0
    %32 = vst [vmem:[#allocation2 + $0x40] sm:$0xff] 0.0
    %33 = vst [vmem:[#allocation2 + $0x48] sm:$0xff] 0.0
    %34 = vst [vmem:[#allocation2 + $0x50] sm:$0xff] 0.0
    %35 = vst [vmem:[#allocation2 + $0x58] sm:$0xff] 0.0
    %36 = vst [vmem:[#allocation2 + $0x60] sm:$0xff] 0.0
    %37 = vst [vmem:[#allocation2 + $0x68] sm:$0xff] 0.0
    %38 = vst [vmem:[#allocation2 + $0x70] sm:$0xff] 0.0
    %39 = vst [vmem:[#allocation2 + $0x78] sm:$0xff] 0.0
  $region25: #{com_res_mlp_forward.7} parent=0 // pred_fallthru
    _
  %v40 = vld [vmem:[#allocation2] sm:$0xff]
  %v41 = vld [vmem:[#allocation2 + $0x8] sm:$0xff]
  %v42 = vld [vmem:[#allocation2 + $0x10] sm:$0xff]
  %v43 = vld [vmem:[#allocation2 + $0x18] sm:$0xff]
  %v44 = vld [vmem:[#allocation2 + $0x20] sm:$0xff]
  %v45 = vld [vmem:[#allocation2 + $0x28] sm:$0xff]
  %v46 = vld [vmem:[#allocation2 + $0x30] sm:$0xff]
  %v47 = vld [vmem:[#allocation2 + $0x38] sm:$0xff]
  %v48 = vld [vmem:[#allocation2 + $0x40] sm:$0xff]
  %v49 = vld [vmem:[#allocation2 + $0x48] sm:$0xff]
  %v50 = vld [vmem:[#allocation2 + $0x50] sm:$0xff]
  %v51 = vld [vmem:[#allocation2 + $0x58] sm:$0xff]
  %v52 = vld [vmem:[#allocation2 + $0x60] sm:$0xff]
  %v53 = vld [vmem:[#allocation2 + $0x68] sm:$0xff]
  %v54 = vld [vmem:[#allocation2 + $0x70] sm:$0xff]
  %v55 = vld [vmem:[#allocation2 + $0x78] sm:$0xff]
  %v56 = vld [vmem:[%s0] sm:$0xff]
  %v57 = vld [vmem:[%s0 + $0x8] sm:$0xff]
  %v58 = vld [vmem:[%s0 + $0x10] sm:$0xff]
  %v59 = vld [vmem:[%s0 + $0x18] sm:$0xff]
  %v60 = vld [vmem:[%s0 + $0x20] sm:$0xff]
  %v61 = vld [vmem:[%s0 + $0x28] sm:$0xff]
  %v62 = vld [vmem:[%s0 + $0x30] sm:$0xff]
  %v63 = vld [vmem:[%s0 + $0x38] sm:$0xff]
  %v64 = vld [vmem:[%s0 + $0x40] sm:$0xff]
  %v65 = vld [vmem:[%s0 + $0x48] sm:$0xff]
  %v66 = vld [vmem:[%s0 + $0x50] sm:$0xff]
  %v67 = vld [vmem:[%s0 + $0x58] sm:$0xff]
  %v68 = vld [vmem:[%s0 + $0x60] sm:$0xff]
  %v69 = vld [vmem:[%s0 + $0x68] sm:$0xff]
  %v70 = vld [vmem:[%s0 + $0x70] sm:$0xff]
  %v71 = vld [vmem:[%s0 + $0x78] sm:$0xff]
  %v72 = vld [vmem:[%s2] sm:$0xff]
  %v73 = vld [vmem:[%s2 + $0x8] sm:$0xff]
  %v74 = vld [vmem:[%s2 + $0x10] sm:$0xff]
  %v75 = vld [vmem:[%s2 + $0x18] sm:$0xff]
  %v76 = vld [vmem:[%s2 + $0x20] sm:$0xff]
  %v77 = vld [vmem:[%s2 + $0x28] sm:$0xff]
  %v78 = vld [vmem:[%s2 + $0x30] sm:$0xff]
  %v79 = vld [vmem:[%s2 + $0x38] sm:$0xff]
  %v80 = vld [vmem:[%s2 + $0x40] sm:$0xff]
  %v81 = vld [vmem:[%s2 + $0x48] sm:$0xff]
  %v82 = vld [vmem:[%s2 + $0x50] sm:$0xff]
  %v83 = vld [vmem:[%s2 + $0x58] sm:$0xff]
  %v84 = vld [vmem:[%s2 + $0x60] sm:$0xff]
  %v85 = vld [vmem:[%s2 + $0x68] sm:$0xff]
  %v86 = vld [vmem:[%s2 + $0x70] sm:$0xff]
  %v87 = vld [vmem:[%s2 + $0x78] sm:$0xff]
  %88 = vmatprep.subr.mxu0 0.0
  %89 = vmatpush1.msra.mxu0 %v87
  %90 = vmatprep.subr.mxu0 0.0
  %91 = vmatpush1.msra.mxu0 %v86
  %92 = vmatprep.subr.mxu0 0.0
  %93 = vmatpush1.msra.mxu0 %v85
  %94 = vmatprep.subr.mxu0 0.0
  %95 = vmatpush1.msra.mxu0 %v84
  %96 = vmatprep.subr.mxu0 0.0
  %97 = vmatpush1.msra.mxu0 %v83
  %98 = vmatprep.subr.mxu0 0.0
  %99 = vmatpush1.msra.mxu0 %v82
  %100 = vmatprep.subr.mxu0 0.0
  %101 = vmatpush1.msra.mxu0 %v81
  %102 = vmatprep.subr.mxu0 0.0
  %103 = vmatpush1.msra.mxu0 %v80
  %104 = vmatprep.subr.mxu0 0.0
  %105 = vmatpush1.msra.mxu0 %v79
  %106 = vmatprep.subr.mxu0 0.0
  %107 = vmatpush1.msra.mxu0 %v78
  %108 = vmatprep.subr.mxu0 0.0
  %109 = vmatpush1.msra.mxu0 %v77
  %110 = vmatprep.subr.mxu0 0.0
  %111 = vmatpush1.msra.mxu0 %v76
  %112 = vmatprep.subr.mxu0 0.0
  %113 = vmatpush1.msra.mxu0 %v75
  %114 = vmatprep.subr.mxu0 0.0
  %115 = vmatpush1.msra.mxu0 %v74
  %116 = vmatprep.subr.mxu0 0.0
  %117 = vmatpush1.msra.mxu0 %v73
  %118 = vmatprep.subr.mxu0 0.0
  %119 = vmatpush1.msra.mxu0 %v72
  %120 = vmatprep.subr.mxu0 0.0
  %121 = vmatpush2.msra.mxu0 0.0
  %122 = vmatprep.subr.mxu0 0.0
  %123 = vmatpush2.msra.mxu0 0.0
  %124 = vmatprep.subr.mxu0 0.0
  %125 = vmatpush2.msra.mxu0 0.0
  %126 = vmatprep.subr.mxu0 0.0
  %127 = vmatpush2.msra.mxu0 0.0
  %128 = vmatprep.subr.mxu0 0.0
  %129 = vmatpush2.msra.mxu0 0.0
  %130 = vmatprep.subr.mxu0 0.0
  %131 = vmatpush2.msra.mxu0 0.0
  %132 = vmatprep.subr.mxu0 0.0
  %133 = vmatpush2.msra.mxu0 0.0
  %134 = vmatprep.subr.mxu0 0.0
  %135 = vmatpush2.msra.mxu0 0.0
  %136 = vmatprep.subr.mxu0 0.0
  %137 = vmatpush2.msra.mxu0 0.0
  %138 = vmatprep.subr.mxu0 0.0
  %139 = vmatpush2.msra.mxu0 0.0
  %140 = vmatprep.subr.mxu0 0.0
  %141 = vmatpush2.msra.mxu0 0.0
  %142 = vmatprep.subr.mxu0 0.0
  %143 = vmatpush2.msra.mxu0 0.0
  %144 = vmatprep.subr.mxu0 0.0
  %145 = vmatpush2.msra.mxu0 0.0
  %146 = vmatprep.subr.mxu0 0.0
  %147 = vmatpush2.msra.mxu0 0.0
  %148 = vmatprep.subr.mxu0 0.0
  %149 = vmatpush2.msra.mxu0 0.0
  %150 = vmatprep.subr.mxu0 0.0
  %151 = vmatpush2.msra.mxu0 0.0
  %152 = vmatprep.mubr.f32.mxu0 0.0
  %153 = vmatmul.mubr.f32.gmra.mxu0 %v56
  %v154 = vpop.f32.mrf.mxu0
  %v155 = vadd.f32 0.0, %v154
  %v156 = vpop.f32.mrf.mxu0
  %157 = vmatprep.mubr.f32.mxu0 0.0
  %158 = vmatmul.mubr.f32.gmra.mxu0 %v57
  %v159 = vpop.f32.mrf.mxu0
  %v160 = vadd.f32 0.0, %v159
  %v161 = vpop.f32.mrf.mxu0
  %162 = vmatprep.mubr.f32.mxu0 0.0
  %163 = vmatmul.mubr.f32.gmra.mxu0 %v58
  %v164 = vpop.f32.mrf.mxu0
  %v165 = vadd.f32 0.0, %v164
  %v166 = vpop.f32.mrf.mxu0
  %167 = vmatprep.mubr.f32.mxu0 0.0
  %168 = vmatmul.mubr.f32.gmra.mxu0 %v59
  %v169 = vpop.f32.mrf.mxu0
  %v170 = vadd.f32 0.0, %v169
  %v171 = vpop.f32.mrf.mxu0
  %172 = vmatprep.mubr.f32.mxu0 0.0
  %173 = vmatmul.mubr.f32.gmra.mxu0 %v60
  %v174 = vpop.f32.mrf.mxu0
  %v175 = vadd.f32 0.0, %v174
  %v176 = vpop.f32.mrf.mxu0
  %177 = vmatprep.mubr.f32.mxu0 0.0
  %178 = vmatmul.mubr.f32.gmra.mxu0 %v61
  %v179 = vpop.f32.mrf.mxu0
  %v180 = vadd.f32 0.0, %v179
  %v181 = vpop.f32.mrf.mxu0
  %182 = vmatprep.mubr.f32.mxu0 0.0
  %183 = vmatmul.mubr.f32.gmra.mxu0 %v62
  %v184 = vpop.f32.mrf.mxu0
  %v185 = vadd.f32 0.0, %v184
  %v186 = vpop.f32.mrf.mxu0
  %187 = vmatprep.mubr.f32.mxu0 0.0
  %188 = vmatmul.mubr.f32.gmra.mxu0 %v63
  %v189 = vpop.f32.mrf.mxu0
  %v190 = vadd.f32 0.0, %v189
  %v191 = vpop.f32.mrf.mxu0
  %192 = vmatprep.mubr.f32.mxu0 0.0
  %193 = vmatmul.mubr.f32.gmra.mxu0 %v64
  %v194 = vpop.f32.mrf.mxu0
  %v195 = vadd.f32 0.0, %v194
  %v196 = vpop.f32.mrf.mxu0
  %197 = vmatprep.mubr.f32.mxu0 0.0
  %198 = vmatmul.mubr.f32.gmra.mxu0 %v65
  %v199 = vpop.f32.mrf.mxu0
  %v200 = vadd.f32 0.0, %v199
  %v201 = vpop.f32.mrf.mxu0
  %202 = vmatprep.mubr.f32.mxu0 0.0
  %203 = vmatmul.mubr.f32.gmra.mxu0 %v66
  %v204 = vpop.f32.mrf.mxu0
  %v205 = vadd.f32 0.0, %v204
  %v206 = vpop.f32.mrf.mxu0
  %207 = vmatprep.mubr.f32.mxu0 0.0
  %208 = vmatmul.mubr.f32.gmra.mxu0 %v67
  %v209 = vpop.f32.mrf.mxu0
  %v210 = vadd.f32 0.0, %v209
  %v211 = vpop.f32.mrf.mxu0
  %212 = vmatprep.mubr.f32.mxu0 0.0
  %213 = vmatmul.mubr.f32.gmra.mxu0 %v68
  %v214 = vpop.f32.mrf.mxu0
  %v215 = vadd.f32 0.0, %v214
  %v216 = vpop.f32.mrf.mxu0
  %217 = vmatprep.mubr.f32.mxu0 0.0
  %218 = vmatmul.mubr.f32.gmra.mxu0 %v69
  %v219 = vpop.f32.mrf.mxu0
  %v220 = vadd.f32 0.0, %v219
  %v221 = vpop.f32.mrf.mxu0
  %222 = vmatprep.mubr.f32.mxu0 0.0
  %223 = vmatmul.mubr.f32.gmra.mxu0 %v70
  %v224 = vpop.f32.mrf.mxu0
  %v225 = vadd.f32 0.0, %v224
  %v226 = vpop.f32.mrf.mxu0
  %227 = vmatprep.mubr.f32.mxu0 0.0
  %228 = vmatmul.mubr.f32.gmra.mxu0 %v71
  %v229 = vpop.f32.mrf.mxu0
  %v230 = vadd.f32 0.0, %v229
  %v231 = vpop.f32.mrf.mxu0
  %232 = vdwg.mxu0
  %v233 = vadd.f32 %v40, %v155
  %v234 = vadd.f32 %v41, %v160
  %v235 = vadd.f32 %v42, %v165
  %v236 = vadd.f32 %v43, %v170
  %v237 = vadd.f32 %v44, %v175
  %v238 = vadd.f32 %v45, %v180
  %v239 = vadd.f32 %v46, %v185
  %v240 = vadd.f32 %v47, %v190
  %v241 = vadd.f32 %v48, %v195
  %v242 = vadd.f32 %v49, %v200
  %v243 = vadd.f32 %v50, %v205
  %v244 = vadd.f32 %v51, %v210
  %v245 = vadd.f32 %v52, %v215
  %v246 = vadd.f32 %v53, %v220
  %v247 = vadd.f32 %v54, %v225
  %v248 = vadd.f32 %v55, %v230
  %249 = vst [vmem:[#allocation2] sm:$0xff] %v233
  %250 = vst [vmem:[#allocation2 + $0x8] sm:$0xff] %v234
  %251 = vst [vmem:[#allocation2 + $0x10] sm:$0xff] %v235
  %252 = vst [vmem:[#allocation2 + $0x18] sm:$0xff] %v236
  %253 = vst [vmem:[#allocation2 + $0x20] sm:$0xff] %v237
  %254 = vst [vmem:[#allocation2 + $0x28] sm:$0xff] %v238
  %255 = vst [vmem:[#allocation2 + $0x30] sm:$0xff] %v239
  %256 = vst [vmem:[#allocation2 + $0x38] sm:$0xff] %v240
  %257 = vst [vmem:[#allocation2 + $0x40] sm:$0xff] %v241
  %258 = vst [vmem:[#allocation2 + $0x48] sm:$0xff] %v242
  %259 = vst [vmem:[#allocation2 + $0x50] sm:$0xff] %v243
  %260 = vst [vmem:[#allocation2 + $0x58] sm:$0xff] %v244
  %261 = vst [vmem:[#allocation2 + $0x60] sm:$0xff] %v245
  %262 = vst [vmem:[#allocation2 + $0x68] sm:$0xff] %v246
  %263 = vst [vmem:[#allocation2 + $0x70] sm:$0xff] %v247
  %264 = vst [vmem:[#allocation2 + $0x78] sm:$0xff] %v248
  %v265 = vld [vmem:[#allocation2] sm:$0xff]
  %v266 = vld [vmem:[#allocation2 + $0x8] sm:$0xff]
  %v267 = vld [vmem:[#allocation2 + $0x10] sm:$0xff]
  %v268 = vld [vmem:[#allocation2 + $0x18] sm:$0xff]
  %v269 = vld [vmem:[#allocation2 + $0x20] sm:$0xff]
  %v270 = vld [vmem:[#allocation2 + $0x28] sm:$0xff]
  %v271 = vld [vmem:[#allocation2 + $0x30] sm:$0xff]
  %v272 = vld [vmem:[#allocation2 + $0x38] sm:$0xff]
  %v273 = vld [vmem:[#allocation2 + $0x40] sm:$0xff]
  %v274 = vld [vmem:[#allocation2 + $0x48] sm:$0xff]
  %v275 = vld [vmem:[#allocation2 + $0x50] sm:$0xff]
  %v276 = vld [vmem:[#allocation2 + $0x58] sm:$0xff]
  %v277 = vld [vmem:[#allocation2 + $0x60] sm:$0xff]
  %v278 = vld [vmem:[#allocation2 + $0x68] sm:$0xff]
  %v279 = vld [vmem:[#allocation2 + $0x70] sm:$0xff]
  %v280 = vld [vmem:[#allocation2 + $0x78] sm:$0xff]
  %v281 = vld [vmem:[%s1] sm:$0xff]
  %v282 = vld [vmem:[%s1 + $0x8] sm:$0xff]
  %v283 = vld [vmem:[%s1 + $0x10] sm:$0xff]
  %v284 = vld [vmem:[%s1 + $0x18] sm:$0xff]
  %v285 = vld [vmem:[%s1 + $0x20] sm:$0xff]
  %v286 = vld [vmem:[%s1 + $0x28] sm:$0xff]
  %v287 = vld [vmem:[%s1 + $0x30] sm:$0xff]
  %v288 = vld [vmem:[%s1 + $0x38] sm:$0xff]
  %v289 = vld [vmem:[%s1 + $0x40] sm:$0xff]
  %v290 = vld [vmem:[%s1 + $0x48] sm:$0xff]
  %v291 = vld [vmem:[%s1 + $0x50] sm:$0xff]
  %v292 = vld [vmem:[%s1 + $0x58] sm:$0xff]
  %v293 = vld [vmem:[%s1 + $0x60] sm:$0xff]
  %v294 = vld [vmem:[%s1 + $0x68] sm:$0xff]
  %v295 = vld [vmem:[%s1 + $0x70] sm:$0xff]
  %v296 = vld [vmem:[%s1 + $0x78] sm:$0xff]
  %v297 = vld [vmem:[%s3] sm:$0xff]
  %v298 = vld [vmem:[%s3 + $0x8] sm:$0xff]
  %v299 = vld [vmem:[%s3 + $0x10] sm:$0xff]
  %v300 = vld [vmem:[%s3 + $0x18] sm:$0xff]
  %v301 = vld [vmem:[%s3 + $0x20] sm:$0xff]
  %v302 = vld [vmem:[%s3 + $0x28] sm:$0xff]
  %v303 = vld [vmem:[%s3 + $0x30] sm:$0xff]
  %v304 = vld [vmem:[%s3 + $0x38] sm:$0xff]
  %v305 = vld [vmem:[%s3 + $0x40] sm:$0xff]
  %v306 = vld [vmem:[%s3 + $0x48] sm:$0xff]
  %v307 = vld [vmem:[%s3 + $0x50] sm:$0xff]
  %v308 = vld [vmem:[%s3 + $0x58] sm:$0xff]
  %v309 = vld [vmem:[%s3 + $0x60] sm:$0xff]
  %v310 = vld [vmem:[%s3 + $0x68] sm:$0xff]
  %v311 = vld [vmem:[%s3 + $0x70] sm:$0xff]
  %v312 = vld [vmem:[%s3 + $0x78] sm:$0xff]
  %313 = vmatprep.subr.mxu0 0.0
  %314 = vmatpush1.msra.mxu0 %v312
  %315 = vmatprep.subr.mxu0 0.0
  %316 = vmatpush1.msra.mxu0 %v311
  %317 = vmatprep.subr.mxu0 0.0
  %318 = vmatpush1.msra.mxu0 %v310
  %319 = vmatprep.subr.mxu0 0.0
  %320 = vmatpush1.msra.mxu0 %v309
  %321 = vmatprep.subr.mxu0 0.0
  %322 = vmatpush1.msra.mxu0 %v308
  %323 = vmatprep.subr.mxu0 0.0
  %324 = vmatpush1.msra.mxu0 %v307
  %325 = vmatprep.subr.mxu0 0.0
  %326 = vmatpush1.msra.mxu0 %v306
  %327 = vmatprep.subr.mxu0 0.0
  %328 = vmatpush1.msra.mxu0 %v305
  %329 = vmatprep.subr.mxu0 0.0
  %330 = vmatpush1.msra.mxu0 %v304
  %331 = vmatprep.subr.mxu0 0.0
  %332 = vmatpush1.msra.mxu0 %v303
  %333 = vmatprep.subr.mxu0 0.0
  %334 = vmatpush1.msra.mxu0 %v302
  %335 = vmatprep.subr.mxu0 0.0
  %336 = vmatpush1.msra.mxu0 %v301
  %337 = vmatprep.subr.mxu0 0.0
  %338 = vmatpush1.msra.mxu0 %v300
  %339 = vmatprep.subr.mxu0 0.0
  %340 = vmatpush1.msra.mxu0 %v299
  %341 = vmatprep.subr.mxu0 0.0
  %342 = vmatpush1.msra.mxu0 %v298
  %343 = vmatprep.subr.mxu0 0.0
  %344 = vmatpush1.msra.mxu0 %v297
  %345 = vmatprep.subr.mxu0 0.0
  %346 = vmatpush2.msra.mxu0 0.0
  %347 = vmatprep.subr.mxu0 0.0
  %348 = vmatpush2.msra.mxu0 0.0
  %349 = vmatprep.subr.mxu0 0.0
  %350 = vmatpush2.msra.mxu0 0.0
  %351 = vmatprep.subr.mxu0 0.0
  %352 = vmatpush2.msra.mxu0 0.0
  %353 = vmatprep.subr.mxu0 0.0
  %354 = vmatpush2.msra.mxu0 0.0
  %355 = vmatprep.subr.mxu0 0.0
  %356 = vmatpush2.msra.mxu0 0.0
  %357 = vmatprep.subr.mxu0 0.0
  %358 = vmatpush2.msra.mxu0 0.0
  %359 = vmatprep.subr.mxu0 0.0
  %360 = vmatpush2.msra.mxu0 0.0
  %361 = vmatprep.subr.mxu0 0.0
  %362 = vmatpush2.msra.mxu0 0.0
  %363 = vmatprep.subr.mxu0 0.0
  %364 = vmatpush2.msra.mxu0 0.0
  %365 = vmatprep.subr.mxu0 0.0
  %366 = vmatpush2.msra.mxu0 0.0
  %367 = vmatprep.subr.mxu0 0.0
  %368 = vmatpush2.msra.mxu0 0.0
  %369 = vmatprep.subr.mxu0 0.0
  %370 = vmatpush2.msra.mxu0 0.0
  %371 = vmatprep.subr.mxu0 0.0
  %372 = vmatpush2.msra.mxu0 0.0
  %373 = vmatprep.subr.mxu0 0.0
  %374 = vmatpush2.msra.mxu0 0.0
  %375 = vmatprep.subr.mxu0 0.0
  %376 = vmatpush2.msra.mxu0 0.0
  %377 = vmatprep.mubr.f32.mxu0 0.0
  %378 = vmatmul.mubr.f32.gmra.mxu0 %v281
  %v379 = vpop.f32.mrf.mxu0
  %v380 = vadd.f32 0.0, %v379
  %v381 = vpop.f32.mrf.mxu0
  %382 = vmatprep.mubr.f32.mxu0 0.0
  %383 = vmatmul.mubr.f32.gmra.mxu0 %v282
  %v384 = vpop.f32.mrf.mxu0
  %v385 = vadd.f32 0.0, %v384
  %v386 = vpop.f32.mrf.mxu0
  %387 = vmatprep.mubr.f32.mxu0 0.0
  %388 = vmatmul.mubr.f32.gmra.mxu0 %v283
  %v389 = vpop.f32.mrf.mxu0
  %v390 = vadd.f32 0.0, %v389
  %v391 = vpop.f32.mrf.mxu0
  %392 = vmatprep.mubr.f32.mxu0 0.0
  %393 = vmatmul.mubr.f32.gmra.mxu0 %v284
  %v394 = vpop.f32.mrf.mxu0
  %v395 = vadd.f32 0.0, %v394
  %v396 = vpop.f32.mrf.mxu0
  %397 = vmatprep.mubr.f32.mxu0 0.0
  %398 = vmatmul.mubr.f32.gmra.mxu0 %v285
  %v399 = vpop.f32.mrf.mxu0
  %v400 = vadd.f32 0.0, %v399
  %v401 = vpop.f32.mrf.mxu0
  %402 = vmatprep.mubr.f32.mxu0 0.0
  %403 = vmatmul.mubr.f32.gmra.mxu0 %v286
  %v404 = vpop.f32.mrf.mxu0
  %v405 = vadd.f32 0.0, %v404
  %v406 = vpop.f32.mrf.mxu0
  %407 = vmatprep.mubr.f32.mxu0 0.0
  %408 = vmatmul.mubr.f32.gmra.mxu0 %v287
  %v409 = vpop.f32.mrf.mxu0
  %v410 = vadd.f32 0.0, %v409
  %v411 = vpop.f32.mrf.mxu0
  %412 = vmatprep.mubr.f32.mxu0 0.0
  %413 = vmatmul.mubr.f32.gmra.mxu0 %v288
  %v414 = vpop.f32.mrf.mxu0
  %v415 = vadd.f32 0.0, %v414
  %v416 = vpop.f32.mrf.mxu0
  %417 = vmatprep.mubr.f32.mxu0 0.0
  %418 = vmatmul.mubr.f32.gmra.mxu0 %v289
  %v419 = vpop.f32.mrf.mxu0
  %v420 = vadd.f32 0.0, %v419
  %v421 = vpop.f32.mrf.mxu0
  %422 = vmatprep.mubr.f32.mxu0 0.0
  %423 = vmatmul.mubr.f32.gmra.mxu0 %v290
  %v424 = vpop.f32.mrf.mxu0
  %v425 = vadd.f32 0.0, %v424
  %v426 = vpop.f32.mrf.mxu0
  %427 = vmatprep.mubr.f32.mxu0 0.0
  %428 = vmatmul.mubr.f32.gmra.mxu0 %v291
  %v429 = vpop.f32.mrf.mxu0
  %v430 = vadd.f32 0.0, %v429
  %v431 = vpop.f32.mrf.mxu0
  %432 = vmatprep.mubr.f32.mxu0 0.0
  %433 = vmatmul.mubr.f32.gmra.mxu0 %v292
  %v434 = vpop.f32.mrf.mxu0
  %v435 = vadd.f32 0.0, %v434
  %v436 = vpop.f32.mrf.mxu0
  %437 = vmatprep.mubr.f32.mxu0 0.0
  %438 = vmatmul.mubr.f32.gmra.mxu0 %v293
  %v439 = vpop.f32.mrf.mxu0
  %v440 = vadd.f32 0.0, %v439
  %v441 = vpop.f32.mrf.mxu0
  %442 = vmatprep.mubr.f32.mxu0 0.0
  %443 = vmatmul.mubr.f32.gmra.mxu0 %v294
  %v444 = vpop.f32.mrf.mxu0
  %v445 = vadd.f32 0.0, %v444
  %v446 = vpop.f32.mrf.mxu0
  %447 = vmatprep.mubr.f32.mxu0 0.0
  %448 = vmatmul.mubr.f32.gmra.mxu0 %v295
  %v449 = vpop.f32.mrf.mxu0
  %v450 = vadd.f32 0.0, %v449
  %v451 = vpop.f32.mrf.mxu0
  %452 = vmatprep.mubr.f32.mxu0 0.0
  %453 = vmatmul.mubr.f32.gmra.mxu0 %v296
  %v454 = vpop.f32.mrf.mxu0
  %v455 = vadd.f32 0.0, %v454
  %v456 = vpop.f32.mrf.mxu0
  %457 = vdwg.mxu0
  %v458 = vadd.f32 %v265, %v380
  %v459 = vadd.f32 %v266, %v385
  %v460 = vadd.f32 %v267, %v390
  %v461 = vadd.f32 %v268, %v395
  %v462 = vadd.f32 %v269, %v400
  %v463 = vadd.f32 %v270, %v405
  %v464 = vadd.f32 %v271, %v410
  %v465 = vadd.f32 %v272, %v415
  %v466 = vadd.f32 %v273, %v420
  %v467 = vadd.f32 %v274, %v425
  %v468 = vadd.f32 %v275, %v430
  %v469 = vadd.f32 %v276, %v435
  %v470 = vadd.f32 %v277, %v440
  %v471 = vadd.f32 %v278, %v445
  %v472 = vadd.f32 %v279, %v450
  %v473 = vadd.f32 %v280, %v455
  %474 = vst [vmem:[#allocation2] sm:$0xff] %v458
  %475 = vst [vmem:[#allocation2 + $0x8] sm:$0xff] %v459
  %476 = vst [vmem:[#allocation2 + $0x10] sm:$0xff] %v460
  %477 = vst [vmem:[#allocation2 + $0x18] sm:$0xff] %v461
  %478 = vst [vmem:[#allocation2 + $0x20] sm:$0xff] %v462
  %479 = vst [vmem:[#allocation2 + $0x28] sm:$0xff] %v463
  %480 = vst [vmem:[#allocation2 + $0x30] sm:$0xff] %v464
  %481 = vst [vmem:[#allocation2 + $0x38] sm:$0xff] %v465
  %482 = vst [vmem:[#allocation2 + $0x40] sm:$0xff] %v466
  %483 = vst [vmem:[#allocation2 + $0x48] sm:$0xff] %v467
  %484 = vst [vmem:[#allocation2 + $0x50] sm:$0xff] %v468
  %485 = vst [vmem:[#allocation2 + $0x58] sm:$0xff] %v469
  %486 = vst [vmem:[#allocation2 + $0x60] sm:$0xff] %v470
  %487 = vst [vmem:[#allocation2 + $0x68] sm:$0xff] %v471
  %488 = vst [vmem:[#allocation2 + $0x70] sm:$0xff] %v472
  %489 = vst [vmem:[#allocation2 + $0x78] sm:$0xff] %v473
  // Predicated region
  $region26: #{com_res_mlp_forward.7} parent=0 // pred_check
    %p490 = pneg %p20
  $region27: #{com_res_mlp_forward.7} parent=0 // pred_check_branch
    %492 = sbr.rel (%p490) target = $region29
  $region28: #{com_res_mlp_forward.7} parent=0 // pred_region
    %v493 = vld [vmem:[#allocation2] sm:$0xff]
    %v494 = vld [vmem:[#allocation2 + $0x8] sm:$0xff]
    %v495 = vld [vmem:[#allocation2 + $0x10] sm:$0xff]
    %v496 = vld [vmem:[#allocation2 + $0x18] sm:$0xff]
    %v497 = vld [vmem:[#allocation2 + $0x20] sm:$0xff]
    %v498 = vld [vmem:[#allocation2 + $0x28] sm:$0xff]
    %v499 = vld [vmem:[#allocation2 + $0x30] sm:$0xff]
    %v500 = vld [vmem:[#allocation2 + $0x38] sm:$0xff]
    %v501 = vld [vmem:[#allocation2 + $0x40] sm:$0xff]
    %v502 = vld [vmem:[#allocation2 + $0x48] sm:$0xff]
    %v503 = vld [vmem:[#allocation2 + $0x50] sm:$0xff]
    %v504 = vld [vmem:[#allocation2 + $0x58] sm:$0xff]
    %v505 = vld [vmem:[#allocation2 + $0x60] sm:$0xff]
    %v506 = vld [vmem:[#allocation2 + $0x68] sm:$0xff]
    %v507 = vld [vmem:[#allocation2 + $0x70] sm:$0xff]
    %v508 = vld [vmem:[#allocation2 + $0x78] sm:$0xff]
    %v509 = vld [vmem:[%s4] sm:$0x1]
    %v511 = vlaneseq
    %v512 = vshrl.u32 %v511, 7
    %v513 = vsub.s32 0, %v512
    %v514 = vrot.slane %v509, %v513
    %v516 = vadd.f32 %v493, %v514
    %v517 = vadd.f32 %v494, %v514
    %v518 = vadd.f32 %v495, %v514
    %v519 = vadd.f32 %v496, %v514
    %v520 = vadd.f32 %v497, %v514
    %v521 = vadd.f32 %v498, %v514
    %v522 = vadd.f32 %v499, %v514
    %v523 = vadd.f32 %v500, %v514
    %v524 = vadd.f32 %v501, %v514
    %v525 = vadd.f32 %v502, %v514
    %v526 = vadd.f32 %v503, %v514
    %v527 = vadd.f32 %v504, %v514
    %v528 = vadd.f32 %v505, %v514
    %v529 = vadd.f32 %v506, %v514
    %v530 = vadd.f32 %v507, %v514
    %v531 = vadd.f32 %v508, %v514
    %532 = vst [vmem:[%s5] sm:$0xff] %v516
    %533 = vst [vmem:[%s5 + $0x8] sm:$0xff] %v517
    %534 = vst [vmem:[%s5 + $0x10] sm:$0xff] %v518
    %535 = vst [vmem:[%s5 + $0x18] sm:$0xff] %v519
    %536 = vst [vmem:[%s5 + $0x20] sm:$0xff] %v520
    %537 = vst [vmem:[%s5 + $0x28] sm:$0xff] %v521
    %538 = vst [vmem:[%s5 + $0x30] sm:$0xff] %v522
    %539 = vst [vmem:[%s5 + $0x38] sm:$0xff] %v523
    %540 = vst [vmem:[%s5 + $0x40] sm:$0xff] %v524
    %541 = vst [vmem:[%s5 + $0x48] sm:$0xff] %v525
    %542 = vst [vmem:[%s5 + $0x50] sm:$0xff] %v526
    %543 = vst [vmem:[%s5 + $0x58] sm:$0xff] %v527
    %544 = vst [vmem:[%s5 + $0x60] sm:$0xff] %v528
    %545 = vst [vmem:[%s5 + $0x68] sm:$0xff] %v529
    %546 = vst [vmem:[%s5 + $0x70] sm:$0xff] %v530
    %547 = vst [vmem:[%s5 + $0x78] sm:$0xff] %v531
  $region29: #{com_res_mlp_forward.7} parent=0 // pred_fallthru
    _
  // Predicated region
  $region30: #{com_res_mlp_forward.7} parent=0 // pred_check
    _
  $region31: #{com_res_mlp_forward.7} parent=0 // pred_check_branch
    %549 = sbr.rel (0) target = $region33
  $region32: #{com_res_mlp_forward.7} parent=0 // pred_region
    _
  $region33: #{com_res_mlp_forward.7} parent=0 // pred_fallthru
    _
  // Predicated region
  $region34: #{com_res_mlp_forward.7} parent=0 // pred_check
    _
  $region35: #{com_res_mlp_forward.7} parent=0 // pred_check_branch
    %551 = sbr.rel (0) target = $region37
  $region36: #{com_res_mlp_forward.7} parent=0 // pred_region
    _
  $region37: #{com_res_mlp_forward.7} parent=0 // pred_fallthru
    _

// kernel: com_res_mlp_forward.5
$region0: #{com_res_mlp_forward.5}
  #allocation0 [shape = 'u32[]', space=smem, size = 0x4, offset = 0x4, fixed_abs, tag = 'smem constant byte address 0x4 - core index']
  #allocation1 [shape = 'u32[144,128]{1,0:T(1,128)}', space=vmem, size = 0x12000, scoped, tag = 'internal scratch']
  #allocation2 [shape = 'f32[128,128]{1,0:T(8,128)}', space=vmem, size = 0x10000, scoped, tag = 'scratch operand']
  #allocation3 [shape = 'f32[128,128]{1,0:T(8,128)}', space=vmem, size = 0x10000, scoped, tag = 'scratch operand']
  %s0 = inlined_call_operand.vmem [shape: f32[128,128], index: 0, kind: input, shape index: {}, may-alias: {0,6}]
  %s1 = inlined_call_operand.vmem [shape: f32[128,128], index: 1, kind: input, shape index: {}, may-alias: {1,7}]
  %s2 = inlined_call_operand.vmem [shape: f32[128,128], index: 2, kind: input, shape index: {}]
  %s3 = inlined_call_operand.vmem [shape: f32[128,128], index: 3, kind: input, shape index: {}]
  %s4 = inlined_call_operand.vmem [shape: f32[1,128], index: 4, kind: input, shape index: {}]
  %s5 = inlined_call_operand.vmem [shape: f32[1,128], index: 5, kind: input, shape index: {}]
  %s6 = inlined_call_operand.vmem [shape: f32[128,128], index: 6, kind: input, shape index: {}, may-alias: {0,6}]
  %s7 = inlined_call_operand.vmem [shape: f32[128,128], index: 7, kind: input, shape index: {}, may-alias: {1,7}]
  %s8 = inlined_call_operand.vmem [shape: f32[128,128], index: 8, kind: output, shape index: {0}]
  %s9 = inlined_call_operand.vmem [shape: f32[128,128], index: 9, kind: output, shape index: {1}]
  %s10 = inlined_call_operand.vmem [shape: f32[128,128], index: 10, kind: output, shape index: {2}]
  %s11 = inlined_call_operand.vmem [shape: f32[128,128], index: 11, kind: output, shape index: {3}]
  %12 = xla_tuple %s8, %s9, %s10, %s11
  %s13 = sld [smem:[#allocation0]]
  $region74: #{com_res_mlp_forward.5} parent=0
    _
  %s15 = ssub.s32 1, %s13
  %s16 = scalar_select 0, %s15, %s13
  // Predicated region
  $region2: #{com_res_mlp_forward.5} parent=0 // pred_check
    _
  $region3: #{com_res_mlp_forward.5} parent=0 // pred_check_branch
    %18 = sbr.rel (0) target = $region5
  $region4: #{com_res_mlp_forward.5} parent=0 // pred_region
    _
  $region5: #{com_res_mlp_forward.5} parent=0 // pred_fallthru
    _
  // Predicated region
  $region6: #{com_res_mlp_forward.5} parent=0 // pred_check
    _
  $region7: #{com_res_mlp_forward.5} parent=0 // pred_check_branch
    %20 = sbr.rel (0) target = $region9
  $region8: #{com_res_mlp_forward.5} parent=0 // pred_region
    _
  $region9: #{com_res_mlp_forward.5} parent=0 // pred_fallthru
    _
  // Predicated region
  $region10: #{com_res_mlp_forward.5} parent=0 // pred_check
    _
  $region11: #{com_res_mlp_forward.5} parent=0 // pred_check_branch
    %22 = sbr.rel (0) target = $region13
  $region12: #{com_res_mlp_forward.5} parent=0 // pred_region
    _
  $region13: #{com_res_mlp_forward.5} parent=0 // pred_fallthru
    _
  // Predicated region
  $region14: #{com_res_mlp_forward.5} parent=0 // pred_check
    _
  $region15: #{com_res_mlp_forward.5} parent=0 // pred_check_branch
    %24 = sbr.rel (0) target = $region17
  $region16: #{com_res_mlp_forward.5} parent=0 // pred_region
    _
  $region17: #{com_res_mlp_forward.5} parent=0 // pred_fallthru
    _
  // Predicated region
  $region18: #{com_res_mlp_forward.5} parent=0 // pred_check
    _
  $region19: #{com_res_mlp_forward.5} parent=0 // pred_check_branch
    %26 = sbr.rel (0) target = $region21
  $region20: #{com_res_mlp_forward.5} parent=0 // pred_region
    _
  $region21: #{com_res_mlp_forward.5} parent=0 // pred_fallthru
    _
  // Predicated region
  $region22: #{com_res_mlp_forward.5} parent=0 // pred_check
    _
  $region23: #{com_res_mlp_forward.5} parent=0 // pred_check_branch
    %28 = sbr.rel (0) target = $region25
  $region24: #{com_res_mlp_forward.5} parent=0 // pred_region
    _
  $region25: #{com_res_mlp_forward.5} parent=0 // pred_fallthru
    _
  // Predicated region
  $region26: #{com_res_mlp_forward.5} parent=0 // pred_check
    _
  $region27: #{com_res_mlp_forward.5} parent=0 // pred_check_branch
    %30 = sbr.rel (0) target = $region29
  $region28: #{com_res_mlp_forward.5} parent=0 // pred_region
    _
  $region29: #{com_res_mlp_forward.5} parent=0 // pred_fallthru
    _
  // Predicated region
  $region30: #{com_res_mlp_forward.5} parent=0 // pred_check
    _
  $region31: #{com_res_mlp_forward.5} parent=0 // pred_check_branch
    %32 = sbr.rel (0) target = $region33
  $region32: #{com_res_mlp_forward.5} parent=0 // pred_region
    _
  $region33: #{com_res_mlp_forward.5} parent=0 // pred_fallthru
    _
  %p33 = scmp.eq.s32.totalorder 0, 0
  // Predicated region
  $region34: #{com_res_mlp_forward.5} parent=0 // pred_check
    %p34 = pneg %p33
  $region35: #{com_res_mlp_forward.5} parent=0 // pred_check_branch
    %36 = sbr.rel (%p34) target = $region37
  $region36: #{com_res_mlp_forward.5} parent=0 // pred_region
    %37 = vst [vmem:[#allocation2] sm:$0xff] 0.0
    %38 = vst [vmem:[#allocation2 + $0x8] sm:$0xff] 0.0
    %39 = vst [vmem:[#allocation2 + $0x10] sm:$0xff] 0.0
    %40 = vst [vmem:[#allocation2 + $0x18] sm:$0xff] 0.0
    %41 = vst [vmem:[#allocation2 + $0x20] sm:$0xff] 0.0
    %42 = vst [vmem:[#allocation2 + $0x28] sm:$0xff] 0.0
    %43 = vst [vmem:[#allocation2 + $0x30] sm:$0xff] 0.0
    %44 = vst [vmem:[#allocation2 + $0x38] sm:$0xff] 0.0
    %45 = vst [vmem:[#allocation2 + $0x40] sm:$0xff] 0.0
    %46 = vst [vmem:[#allocation2 + $0x48] sm:$0xff] 0.0
    %47 = vst [vmem:[#allocation2 + $0x50] sm:$0xff] 0.0
    %48 = vst [vmem:[#allocation2 + $0x58] sm:$0xff] 0.0
    %49 = vst [vmem:[#allocation2 + $0x60] sm:$0xff] 0.0
    %50 = vst [vmem:[#allocation2 + $0x68] sm:$0xff] 0.0
    %51 = vst [vmem:[#allocation2 + $0x70] sm:$0xff] 0.0
    %52 = vst [vmem:[#allocation2 + $0x78] sm:$0xff] 0.0
    %53 = vst [vmem:[#allocation3] sm:$0xff] 0.0
    %54 = vst [vmem:[#allocation3 + $0x8] sm:$0xff] 0.0
    %55 = vst [vmem:[#allocation3 + $0x10] sm:$0xff] 0.0
    %56 = vst [vmem:[#allocation3 + $0x18] sm:$0xff] 0.0
    %57 = vst [vmem:[#allocation3 + $0x20] sm:$0xff] 0.0
    %58 = vst [vmem:[#allocation3 + $0x28] sm:$0xff] 0.0
    %59 = vst [vmem:[#allocation3 + $0x30] sm:$0xff] 0.0
    %60 = vst [vmem:[#allocation3 + $0x38] sm:$0xff] 0.0
    %61 = vst [vmem:[#allocation3 + $0x40] sm:$0xff] 0.0
    %62 = vst [vmem:[#allocation3 + $0x48] sm:$0xff] 0.0
    %63 = vst [vmem:[#allocation3 + $0x50] sm:$0xff] 0.0
    %64 = vst [vmem:[#allocation3 + $0x58] sm:$0xff] 0.0
    %65 = vst [vmem:[#allocation3 + $0x60] sm:$0xff] 0.0
    %66 = vst [vmem:[#allocation3 + $0x68] sm:$0xff] 0.0
    %67 = vst [vmem:[#allocation3 + $0x70] sm:$0xff] 0.0
    %68 = vst [vmem:[#allocation3 + $0x78] sm:$0xff] 0.0
  $region37: #{com_res_mlp_forward.5} parent=0 // pred_fallthru
    _
  %v69 = vld [vmem:[#allocation2] sm:$0xff]
  %v70 = vld [vmem:[#allocation2 + $0x8] sm:$0xff]
  %v71 = vld [vmem:[#allocation2 + $0x10] sm:$0xff]
  %v72 = vld [vmem:[#allocation2 + $0x18] sm:$0xff]
  %v73 = vld [vmem:[#allocation2 + $0x20] sm:$0xff]
  %v74 = vld [vmem:[#allocation2 + $0x28] sm:$0xff]
  %v75 = vld [vmem:[#allocation2 + $0x30] sm:$0xff]
  %v76 = vld [vmem:[#allocation2 + $0x38] sm:$0xff]
  %v77 = vld [vmem:[#allocation2 + $0x40] sm:$0xff]
  %v78 = vld [vmem:[#allocation2 + $0x48] sm:$0xff]
  %v79 = vld [vmem:[#allocation2 + $0x50] sm:$0xff]
  %v80 = vld [vmem:[#allocation2 + $0x58] sm:$0xff]
  %v81 = vld [vmem:[#allocation2 + $0x60] sm:$0xff]
  %v82 = vld [vmem:[#allocation2 + $0x68] sm:$0xff]
  %v83 = vld [vmem:[#allocation2 + $0x70] sm:$0xff]
  %v84 = vld [vmem:[#allocation2 + $0x78] sm:$0xff]
  %v85 = vld [vmem:[%s0] sm:$0xff]
  %v86 = vld [vmem:[%s0 + $0x8] sm:$0xff]
  %v87 = vld [vmem:[%s0 + $0x10] sm:$0xff]
  %v88 = vld [vmem:[%s0 + $0x18] sm:$0xff]
  %v89 = vld [vmem:[%s0 + $0x20] sm:$0xff]
  %v90 = vld [vmem:[%s0 + $0x28] sm:$0xff]
  %v91 = vld [vmem:[%s0 + $0x30] sm:$0xff]
  %v92 = vld [vmem:[%s0 + $0x38] sm:$0xff]
  %v93 = vld [vmem:[%s0 + $0x40] sm:$0xff]
  %v94 = vld [vmem:[%s0 + $0x48] sm:$0xff]
  %v95 = vld [vmem:[%s0 + $0x50] sm:$0xff]
  %v96 = vld [vmem:[%s0 + $0x58] sm:$0xff]
  %v97 = vld [vmem:[%s0 + $0x60] sm:$0xff]
  %v98 = vld [vmem:[%s0 + $0x68] sm:$0xff]
  %v99 = vld [vmem:[%s0 + $0x70] sm:$0xff]
  %v100 = vld [vmem:[%s0 + $0x78] sm:$0xff]
  %v101 = vld [vmem:[%s2] sm:$0xff]
  %v102 = vld [vmem:[%s2 + $0x8] sm:$0xff]
  %v103 = vld [vmem:[%s2 + $0x10] sm:$0xff]
  %v104 = vld [vmem:[%s2 + $0x18] sm:$0xff]
  %v105 = vld [vmem:[%s2 + $0x20] sm:$0xff]
  %v106 = vld [vmem:[%s2 + $0x28] sm:$0xff]
  %v107 = vld [vmem:[%s2 + $0x30] sm:$0xff]
  %v108 = vld [vmem:[%s2 + $0x38] sm:$0xff]
  %v109 = vld [vmem:[%s2 + $0x40] sm:$0xff]
  %v110 = vld [vmem:[%s2 + $0x48] sm:$0xff]
  %v111 = vld [vmem:[%s2 + $0x50] sm:$0xff]
  %v112 = vld [vmem:[%s2 + $0x58] sm:$0xff]
  %v113 = vld [vmem:[%s2 + $0x60] sm:$0xff]
  %v114 = vld [vmem:[%s2 + $0x68] sm:$0xff]
  %v115 = vld [vmem:[%s2 + $0x70] sm:$0xff]
  %v116 = vld [vmem:[%s2 + $0x78] sm:$0xff]
  %117 = vmatprep.subr.mxu0 0.0
  %118 = vmatpush1.msra.mxu0 %v116
  %119 = vmatprep.subr.mxu0 0.0
  %120 = vmatpush1.msra.mxu0 %v115
  %121 = vmatprep.subr.mxu0 0.0
  %122 = vmatpush1.msra.mxu0 %v114
  %123 = vmatprep.subr.mxu0 0.0
  %124 = vmatpush1.msra.mxu0 %v113
  %125 = vmatprep.subr.mxu0 0.0
  %126 = vmatpush1.msra.mxu0 %v112
  %127 = vmatprep.subr.mxu0 0.0
  %128 = vmatpush1.msra.mxu0 %v111
  %129 = vmatprep.subr.mxu0 0.0
  %130 = vmatpush1.msra.mxu0 %v110
  %131 = vmatprep.subr.mxu0 0.0
  %132 = vmatpush1.msra.mxu0 %v109
  %133 = vmatprep.subr.mxu0 0.0
  %134 = vmatpush1.msra.mxu0 %v108
  %135 = vmatprep.subr.mxu0 0.0
  %136 = vmatpush1.msra.mxu0 %v107
  %137 = vmatprep.subr.mxu0 0.0
  %138 = vmatpush1.msra.mxu0 %v106
  %139 = vmatprep.subr.mxu0 0.0
  %140 = vmatpush1.msra.mxu0 %v105
  %141 = vmatprep.subr.mxu0 0.0
  %142 = vmatpush1.msra.mxu0 %v104
  %143 = vmatprep.subr.mxu0 0.0
  %144 = vmatpush1.msra.mxu0 %v103
  %145 = vmatprep.subr.mxu0 0.0
  %146 = vmatpush1.msra.mxu0 %v102
  %147 = vmatprep.subr.mxu0 0.0
  %148 = vmatpush1.msra.mxu0 %v101
  %149 = vmatprep.subr.mxu0 0.0
  %150 = vmatpush2.msra.mxu0 0.0
  %151 = vmatprep.subr.mxu0 0.0
  %152 = vmatpush2.msra.mxu0 0.0
  %153 = vmatprep.subr.mxu0 0.0
  %154 = vmatpush2.msra.mxu0 0.0
  %155 = vmatprep.subr.mxu0 0.0
  %156 = vmatpush2.msra.mxu0 0.0
  %157 = vmatprep.subr.mxu0 0.0
  %158 = vmatpush2.msra.mxu0 0.0
  %159 = vmatprep.subr.mxu0 0.0
  %160 = vmatpush2.msra.mxu0 0.0
  %161 = vmatprep.subr.mxu0 0.0
  %162 = vmatpush2.msra.mxu0 0.0
  %163 = vmatprep.subr.mxu0 0.0
  %164 = vmatpush2.msra.mxu0 0.0
  %165 = vmatprep.subr.mxu0 0.0
  %166 = vmatpush2.msra.mxu0 0.0
  %167 = vmatprep.subr.mxu0 0.0
  %168 = vmatpush2.msra.mxu0 0.0
  %169 = vmatprep.subr.mxu0 0.0
  %170 = vmatpush2.msra.mxu0 0.0
  %171 = vmatprep.subr.mxu0 0.0
  %172 = vmatpush2.msra.mxu0 0.0
  %173 = vmatprep.subr.mxu0 0.0
  %174 = vmatpush2.msra.mxu0 0.0
  %175 = vmatprep.subr.mxu0 0.0
  %176 = vmatpush2.msra.mxu0 0.0
  %177 = vmatprep.subr.mxu0 0.0
  %178 = vmatpush2.msra.mxu0 0.0
  %179 = vmatprep.subr.mxu0 0.0
  %180 = vmatpush2.msra.mxu0 0.0
  %181 = vmatprep.mubr.f32.mxu0 0.0
  %182 = vmatmul.mubr.f32.gmra.mxu0 %v85
  %v183 = vpop.f32.mrf.mxu0
  %v184 = vadd.f32 0.0, %v183
  %v185 = vpop.f32.mrf.mxu0
  %186 = vmatprep.mubr.f32.mxu0 0.0
  %187 = vmatmul.mubr.f32.gmra.mxu0 %v86
  %v188 = vpop.f32.mrf.mxu0
  %v189 = vadd.f32 0.0, %v188
  %v190 = vpop.f32.mrf.mxu0
  %191 = vmatprep.mubr.f32.mxu0 0.0
  %192 = vmatmul.mubr.f32.gmra.mxu0 %v87
  %v193 = vpop.f32.mrf.mxu0
  %v194 = vadd.f32 0.0, %v193
  %v195 = vpop.f32.mrf.mxu0
  %196 = vmatprep.mubr.f32.mxu0 0.0
  %197 = vmatmul.mubr.f32.gmra.mxu0 %v88
  %v198 = vpop.f32.mrf.mxu0
  %v199 = vadd.f32 0.0, %v198
  %v200 = vpop.f32.mrf.mxu0
  %201 = vmatprep.mubr.f32.mxu0 0.0
  %202 = vmatmul.mubr.f32.gmra.mxu0 %v89
  %v203 = vpop.f32.mrf.mxu0
  %v204 = vadd.f32 0.0, %v203
  %v205 = vpop.f32.mrf.mxu0
  %206 = vmatprep.mubr.f32.mxu0 0.0
  %207 = vmatmul.mubr.f32.gmra.mxu0 %v90
  %v208 = vpop.f32.mrf.mxu0
  %v209 = vadd.f32 0.0, %v208
  %v210 = vpop.f32.mrf.mxu0
  %211 = vmatprep.mubr.f32.mxu0 0.0
  %212 = vmatmul.mubr.f32.gmra.mxu0 %v91
  %v213 = vpop.f32.mrf.mxu0
  %v214 = vadd.f32 0.0, %v213
  %v215 = vpop.f32.mrf.mxu0
  %216 = vmatprep.mubr.f32.mxu0 0.0
  %217 = vmatmul.mubr.f32.gmra.mxu0 %v92
  %v218 = vpop.f32.mrf.mxu0
  %v219 = vadd.f32 0.0, %v218
  %v220 = vpop.f32.mrf.mxu0
  %221 = vmatprep.mubr.f32.mxu0 0.0
  %222 = vmatmul.mubr.f32.gmra.mxu0 %v93
  %v223 = vpop.f32.mrf.mxu0
  %v224 = vadd.f32 0.0, %v223
  %v225 = vpop.f32.mrf.mxu0
  %226 = vmatprep.mubr.f32.mxu0 0.0
  %227 = vmatmul.mubr.f32.gmra.mxu0 %v94
  %v228 = vpop.f32.mrf.mxu0
  %v229 = vadd.f32 0.0, %v228
  %v230 = vpop.f32.mrf.mxu0
  %231 = vmatprep.mubr.f32.mxu0 0.0
  %232 = vmatmul.mubr.f32.gmra.mxu0 %v95
  %v233 = vpop.f32.mrf.mxu0
  %v234 = vadd.f32 0.0, %v233
  %v235 = vpop.f32.mrf.mxu0
  %236 = vmatprep.mubr.f32.mxu0 0.0
  %237 = vmatmul.mubr.f32.gmra.mxu0 %v96
  %v238 = vpop.f32.mrf.mxu0
  %v239 = vadd.f32 0.0, %v238
  %v240 = vpop.f32.mrf.mxu0
  %241 = vmatprep.mubr.f32.mxu0 0.0
  %242 = vmatmul.mubr.f32.gmra.mxu0 %v97
  %v243 = vpop.f32.mrf.mxu0
  %v244 = vadd.f32 0.0, %v243
  %v245 = vpop.f32.mrf.mxu0
  %246 = vmatprep.mubr.f32.mxu0 0.0
  %247 = vmatmul.mubr.f32.gmra.mxu0 %v98
  %v248 = vpop.f32.mrf.mxu0
  %v249 = vadd.f32 0.0, %v248
  %v250 = vpop.f32.mrf.mxu0
  %251 = vmatprep.mubr.f32.mxu0 0.0
  %252 = vmatmul.mubr.f32.gmra.mxu0 %v99
  %v253 = vpop.f32.mrf.mxu0
  %v254 = vadd.f32 0.0, %v253
  %v255 = vpop.f32.mrf.mxu0
  %256 = vmatprep.mubr.f32.mxu0 0.0
  %257 = vmatmul.mubr.f32.gmra.mxu0 %v100
  %v258 = vpop.f32.mrf.mxu0
  %v259 = vadd.f32 0.0, %v258
  %v260 = vpop.f32.mrf.mxu0
  %261 = vdwg.mxu0
  %v262 = vadd.f32 %v69, %v184
  %v263 = vadd.f32 %v70, %v189
  %v264 = vadd.f32 %v71, %v194
  %v265 = vadd.f32 %v72, %v199
  %v266 = vadd.f32 %v73, %v204
  %v267 = vadd.f32 %v74, %v209
  %v268 = vadd.f32 %v75, %v214
  %v269 = vadd.f32 %v76, %v219
  %v270 = vadd.f32 %v77, %v224
  %v271 = vadd.f32 %v78, %v229
  %v272 = vadd.f32 %v79, %v234
  %v273 = vadd.f32 %v80, %v239
  %v274 = vadd.f32 %v81, %v244
  %v275 = vadd.f32 %v82, %v249
  %v276 = vadd.f32 %v83, %v254
  %v277 = vadd.f32 %v84, %v259
  %278 = vst [vmem:[#allocation2] sm:$0xff] %v262
  %279 = vst [vmem:[#allocation2 + $0x8] sm:$0xff] %v263
  %280 = vst [vmem:[#allocation2 + $0x10] sm:$0xff] %v264
  %281 = vst [vmem:[#allocation2 + $0x18] sm:$0xff] %v265
  %282 = vst [vmem:[#allocation2 + $0x20] sm:$0xff] %v266
  %283 = vst [vmem:[#allocation2 + $0x28] sm:$0xff] %v267
  %284 = vst [vmem:[#allocation2 + $0x30] sm:$0xff] %v268
  %285 = vst [vmem:[#allocation2 + $0x38] sm:$0xff] %v269
  %286 = vst [vmem:[#allocation2 + $0x40] sm:$0xff] %v270
  %287 = vst [vmem:[#allocation2 + $0x48] sm:$0xff] %v271
  %288 = vst [vmem:[#allocation2 + $0x50] sm:$0xff] %v272
  %289 = vst [vmem:[#allocation2 + $0x58] sm:$0xff] %v273
  %290 = vst [vmem:[#allocation2 + $0x60] sm:$0xff] %v274
  %291 = vst [vmem:[#allocation2 + $0x68] sm:$0xff] %v275
  %292 = vst [vmem:[#allocation2 + $0x70] sm:$0xff] %v276
  %293 = vst [vmem:[#allocation2 + $0x78] sm:$0xff] %v277
  %v294 = vld [vmem:[#allocation3] sm:$0xff]
  %v295 = vld [vmem:[#allocation3 + $0x8] sm:$0xff]
  %v296 = vld [vmem:[#allocation3 + $0x10] sm:$0xff]
  %v297 = vld [vmem:[#allocation3 + $0x18] sm:$0xff]
  %v298 = vld [vmem:[#allocation3 + $0x20] sm:$0xff]
  %v299 = vld [vmem:[#allocation3 + $0x28] sm:$0xff]
  %v300 = vld [vmem:[#allocation3 + $0x30] sm:$0xff]
  %v301 = vld [vmem:[#allocation3 + $0x38] sm:$0xff]
  %v302 = vld [vmem:[#allocation3 + $0x40] sm:$0xff]
  %v303 = vld [vmem:[#allocation3 + $0x48] sm:$0xff]
  %v304 = vld [vmem:[#allocation3 + $0x50] sm:$0xff]
  %v305 = vld [vmem:[#allocation3 + $0x58] sm:$0xff]
  %v306 = vld [vmem:[#allocation3 + $0x60] sm:$0xff]
  %v307 = vld [vmem:[#allocation3 + $0x68] sm:$0xff]
  %v308 = vld [vmem:[#allocation3 + $0x70] sm:$0xff]
  %v309 = vld [vmem:[#allocation3 + $0x78] sm:$0xff]
  %v310 = vld [vmem:[%s1] sm:$0xff]
  %v311 = vld [vmem:[%s1 + $0x8] sm:$0xff]
  %v312 = vld [vmem:[%s1 + $0x10] sm:$0xff]
  %v313 = vld [vmem:[%s1 + $0x18] sm:$0xff]
  %v314 = vld [vmem:[%s1 + $0x20] sm:$0xff]
  %v315 = vld [vmem:[%s1 + $0x28] sm:$0xff]
  %v316 = vld [vmem:[%s1 + $0x30] sm:$0xff]
  %v317 = vld [vmem:[%s1 + $0x38] sm:$0xff]
  %v318 = vld [vmem:[%s1 + $0x40] sm:$0xff]
  %v319 = vld [vmem:[%s1 + $0x48] sm:$0xff]
  %v320 = vld [vmem:[%s1 + $0x50] sm:$0xff]
  %v321 = vld [vmem:[%s1 + $0x58] sm:$0xff]
  %v322 = vld [vmem:[%s1 + $0x60] sm:$0xff]
  %v323 = vld [vmem:[%s1 + $0x68] sm:$0xff]
  %v324 = vld [vmem:[%s1 + $0x70] sm:$0xff]
  %v325 = vld [vmem:[%s1 + $0x78] sm:$0xff]
  %v326 = vld [vmem:[%s3] sm:$0xff]
  %v327 = vld [vmem:[%s3 + $0x8] sm:$0xff]
  %v328 = vld [vmem:[%s3 + $0x10] sm:$0xff]
  %v329 = vld [vmem:[%s3 + $0x18] sm:$0xff]
  %v330 = vld [vmem:[%s3 + $0x20] sm:$0xff]
  %v331 = vld [vmem:[%s3 + $0x28] sm:$0xff]
  %v332 = vld [vmem:[%s3 + $0x30] sm:$0xff]
  %v333 = vld [vmem:[%s3 + $0x38] sm:$0xff]
  %v334 = vld [vmem:[%s3 + $0x40] sm:$0xff]
  %v335 = vld [vmem:[%s3 + $0x48] sm:$0xff]
  %v336 = vld [vmem:[%s3 + $0x50] sm:$0xff]
  %v337 = vld [vmem:[%s3 + $0x58] sm:$0xff]
  %v338 = vld [vmem:[%s3 + $0x60] sm:$0xff]
  %v339 = vld [vmem:[%s3 + $0x68] sm:$0xff]
  %v340 = vld [vmem:[%s3 + $0x70] sm:$0xff]
  %v341 = vld [vmem:[%s3 + $0x78] sm:$0xff]
  %342 = vmatprep.subr.mxu0 0.0
  %343 = vmatpush1.msra.mxu0 %v341
  %344 = vmatprep.subr.mxu0 0.0
  %345 = vmatpush1.msra.mxu0 %v340
  %346 = vmatprep.subr.mxu0 0.0
  %347 = vmatpush1.msra.mxu0 %v339
  %348 = vmatprep.subr.mxu0 0.0
  %349 = vmatpush1.msra.mxu0 %v338
  %350 = vmatprep.subr.mxu0 0.0
  %351 = vmatpush1.msra.mxu0 %v337
  %352 = vmatprep.subr.mxu0 0.0
  %353 = vmatpush1.msra.mxu0 %v336
  %354 = vmatprep.subr.mxu0 0.0
  %355 = vmatpush1.msra.mxu0 %v335
  %356 = vmatprep.subr.mxu0 0.0
  %357 = vmatpush1.msra.mxu0 %v334
  %358 = vmatprep.subr.mxu0 0.0
  %359 = vmatpush1.msra.mxu0 %v333
  %360 = vmatprep.subr.mxu0 0.0
  %361 = vmatpush1.msra.mxu0 %v332
  %362 = vmatprep.subr.mxu0 0.0
  %363 = vmatpush1.msra.mxu0 %v331
  %364 = vmatprep.subr.mxu0 0.0
  %365 = vmatpush1.msra.mxu0 %v330
  %366 = vmatprep.subr.mxu0 0.0
  %367 = vmatpush1.msra.mxu0 %v329
  %368 = vmatprep.subr.mxu0 0.0
  %369 = vmatpush1.msra.mxu0 %v328
  %370 = vmatprep.subr.mxu0 0.0
  %371 = vmatpush1.msra.mxu0 %v327
  %372 = vmatprep.subr.mxu0 0.0
  %373 = vmatpush1.msra.mxu0 %v326
  %374 = vmatprep.subr.mxu0 0.0
  %375 = vmatpush2.msra.mxu0 0.0
  %376 = vmatprep.subr.mxu0 0.0
  %377 = vmatpush2.msra.mxu0 0.0
  %378 = vmatprep.subr.mxu0 0.0
  %379 = vmatpush2.msra.mxu0 0.0
  %380 = vmatprep.subr.mxu0 0.0
  %381 = vmatpush2.msra.mxu0 0.0
  %382 = vmatprep.subr.mxu0 0.0
  %383 = vmatpush2.msra.mxu0 0.0
  %384 = vmatprep.subr.mxu0 0.0
  %385 = vmatpush2.msra.mxu0 0.0
  %386 = vmatprep.subr.mxu0 0.0
  %387 = vmatpush2.msra.mxu0 0.0
  %388 = vmatprep.subr.mxu0 0.0
  %389 = vmatpush2.msra.mxu0 0.0
  %390 = vmatprep.subr.mxu0 0.0
  %391 = vmatpush2.msra.mxu0 0.0
  %392 = vmatprep.subr.mxu0 0.0
  %393 = vmatpush2.msra.mxu0 0.0
  %394 = vmatprep.subr.mxu0 0.0
  %395 = vmatpush2.msra.mxu0 0.0
  %396 = vmatprep.subr.mxu0 0.0
  %397 = vmatpush2.msra.mxu0 0.0
  %398 = vmatprep.subr.mxu0 0.0
  %399 = vmatpush2.msra.mxu0 0.0
  %400 = vmatprep.subr.mxu0 0.0
  %401 = vmatpush2.msra.mxu0 0.0
  %402 = vmatprep.subr.mxu0 0.0
  %403 = vmatpush2.msra.mxu0 0.0
  %404 = vmatprep.subr.mxu0 0.0
  %405 = vmatpush2.msra.mxu0 0.0
  %406 = vmatprep.mubr.f32.mxu0 0.0
  %407 = vmatmul.mubr.f32.gmra.mxu0 %v310
  %v408 = vpop.f32.mrf.mxu0
  %v409 = vadd.f32 0.0, %v408
  %v410 = vpop.f32.mrf.mxu0
  %411 = vmatprep.mubr.f32.mxu0 0.0
  %412 = vmatmul.mubr.f32.gmra.mxu0 %v311
  %v413 = vpop.f32.mrf.mxu0
  %v414 = vadd.f32 0.0, %v413
  %v415 = vpop.f32.mrf.mxu0
  %416 = vmatprep.mubr.f32.mxu0 0.0
  %417 = vmatmul.mubr.f32.gmra.mxu0 %v312
  %v418 = vpop.f32.mrf.mxu0
  %v419 = vadd.f32 0.0, %v418
  %v420 = vpop.f32.mrf.mxu0
  %421 = vmatprep.mubr.f32.mxu0 0.0
  %422 = vmatmul.mubr.f32.gmra.mxu0 %v313
  %v423 = vpop.f32.mrf.mxu0
  %v424 = vadd.f32 0.0, %v423
  %v425 = vpop.f32.mrf.mxu0
  %426 = vmatprep.mubr.f32.mxu0 0.0
  %427 = vmatmul.mubr.f32.gmra.mxu0 %v314
  %v428 = vpop.f32.mrf.mxu0
  %v429 = vadd.f32 0.0, %v428
  %v430 = vpop.f32.mrf.mxu0
  %431 = vmatprep.mubr.f32.mxu0 0.0
  %432 = vmatmul.mubr.f32.gmra.mxu0 %v315
  %v433 = vpop.f32.mrf.mxu0
  %v434 = vadd.f32 0.0, %v433
  %v435 = vpop.f32.mrf.mxu0
  %436 = vmatprep.mubr.f32.mxu0 0.0
  %437 = vmatmul.mubr.f32.gmra.mxu0 %v316
  %v438 = vpop.f32.mrf.mxu0
  %v439 = vadd.f32 0.0, %v438
  %v440 = vpop.f32.mrf.mxu0
  %441 = vmatprep.mubr.f32.mxu0 0.0
  %442 = vmatmul.mubr.f32.gmra.mxu0 %v317
  %v443 = vpop.f32.mrf.mxu0
  %v444 = vadd.f32 0.0, %v443
  %v445 = vpop.f32.mrf.mxu0
  %446 = vmatprep.mubr.f32.mxu0 0.0
  %447 = vmatmul.mubr.f32.gmra.mxu0 %v318
  %v448 = vpop.f32.mrf.mxu0
  %v449 = vadd.f32 0.0, %v448
  %v450 = vpop.f32.mrf.mxu0
  %451 = vmatprep.mubr.f32.mxu0 0.0
  %452 = vmatmul.mubr.f32.gmra.mxu0 %v319
  %v453 = vpop.f32.mrf.mxu0
  %v454 = vadd.f32 0.0, %v453
  %v455 = vpop.f32.mrf.mxu0
  %456 = vmatprep.mubr.f32.mxu0 0.0
  %457 = vmatmul.mubr.f32.gmra.mxu0 %v320
  %v458 = vpop.f32.mrf.mxu0
  %v459 = vadd.f32 0.0, %v458
  %v460 = vpop.f32.mrf.mxu0
  %461 = vmatprep.mubr.f32.mxu0 0.0
  %462 = vmatmul.mubr.f32.gmra.mxu0 %v321
  %v463 = vpop.f32.mrf.mxu0
  %v464 = vadd.f32 0.0, %v463
  %v465 = vpop.f32.mrf.mxu0
  %466 = vmatprep.mubr.f32.mxu0 0.0
  %467 = vmatmul.mubr.f32.gmra.mxu0 %v322
  %v468 = vpop.f32.mrf.mxu0
  %v469 = vadd.f32 0.0, %v468
  %v470 = vpop.f32.mrf.mxu0
  %471 = vmatprep.mubr.f32.mxu0 0.0
  %472 = vmatmul.mubr.f32.gmra.mxu0 %v323
  %v473 = vpop.f32.mrf.mxu0
  %v474 = vadd.f32 0.0, %v473
  %v475 = vpop.f32.mrf.mxu0
  %476 = vmatprep.mubr.f32.mxu0 0.0
  %477 = vmatmul.mubr.f32.gmra.mxu0 %v324
  %v478 = vpop.f32.mrf.mxu0
  %v479 = vadd.f32 0.0, %v478
  %v480 = vpop.f32.mrf.mxu0
  %481 = vmatprep.mubr.f32.mxu0 0.0
  %482 = vmatmul.mubr.f32.gmra.mxu0 %v325
  %v483 = vpop.f32.mrf.mxu0
  %v484 = vadd.f32 0.0, %v483
  %v485 = vpop.f32.mrf.mxu0
  %486 = vdwg.mxu0
  %v487 = vadd.f32 %v294, %v409
  %v488 = vadd.f32 %v295, %v414
  %v489 = vadd.f32 %v296, %v419
  %v490 = vadd.f32 %v297, %v424
  %v491 = vadd.f32 %v298, %v429
  %v492 = vadd.f32 %v299, %v434
  %v493 = vadd.f32 %v300, %v439
  %v494 = vadd.f32 %v301, %v444
  %v495 = vadd.f32 %v302, %v449
  %v496 = vadd.f32 %v303, %v454
  %v497 = vadd.f32 %v304, %v459
  %v498 = vadd.f32 %v305, %v464
  %v499 = vadd.f32 %v306, %v469
  %v500 = vadd.f32 %v307, %v474
  %v501 = vadd.f32 %v308, %v479
  %v502 = vadd.f32 %v309, %v484
  %503 = vst [vmem:[#allocation3] sm:$0xff] %v487
  %504 = vst [vmem:[#allocation3 + $0x8] sm:$0xff] %v488
  %505 = vst [vmem:[#allocation3 + $0x10] sm:$0xff] %v489
  %506 = vst [vmem:[#allocation3 + $0x18] sm:$0xff] %v490
  %507 = vst [vmem:[#allocation3 + $0x20] sm:$0xff] %v491
  %508 = vst [vmem:[#allocation3 + $0x28] sm:$0xff] %v492
  %509 = vst [vmem:[#allocation3 + $0x30] sm:$0xff] %v493
  %510 = vst [vmem:[#allocation3 + $0x38] sm:$0xff] %v494
  %511 = vst [vmem:[#allocation3 + $0x40] sm:$0xff] %v495
  %512 = vst [vmem:[#allocation3 + $0x48] sm:$0xff] %v496
  %513 = vst [vmem:[#allocation3 + $0x50] sm:$0xff] %v497
  %514 = vst [vmem:[#allocation3 + $0x58] sm:$0xff] %v498
  %515 = vst [vmem:[#allocation3 + $0x60] sm:$0xff] %v499
  %516 = vst [vmem:[#allocation3 + $0x68] sm:$0xff] %v500
  %517 = vst [vmem:[#allocation3 + $0x70] sm:$0xff] %v501
  %518 = vst [vmem:[#allocation3 + $0x78] sm:$0xff] %v502
  // Predicated region
  $region38: #{com_res_mlp_forward.5} parent=0 // pred_check
    %p519 = pneg %p33
  $region39: #{com_res_mlp_forward.5} parent=0 // pred_check_branch
    %521 = sbr.rel (%p519) target = $region41
  $region40: #{com_res_mlp_forward.5} parent=0 // pred_region
    %v522 = vld [vmem:[#allocation2] sm:$0xff]
    %v523 = vld [vmem:[#allocation2 + $0x8] sm:$0xff]
    %v524 = vld [vmem:[#allocation2 + $0x10] sm:$0xff]
    %v525 = vld [vmem:[#allocation2 + $0x18] sm:$0xff]
    %v526 = vld [vmem:[#allocation2 + $0x20] sm:$0xff]
    %v527 = vld [vmem:[#allocation2 + $0x28] sm:$0xff]
    %v528 = vld [vmem:[#allocation2 + $0x30] sm:$0xff]
    %v529 = vld [vmem:[#allocation2 + $0x38] sm:$0xff]
    %v530 = vld [vmem:[#allocation2 + $0x40] sm:$0xff]
    %v531 = vld [vmem:[#allocation2 + $0x48] sm:$0xff]
    %v532 = vld [vmem:[#allocation2 + $0x50] sm:$0xff]
    %v533 = vld [vmem:[#allocation2 + $0x58] sm:$0xff]
    %v534 = vld [vmem:[#allocation2 + $0x60] sm:$0xff]
    %v535 = vld [vmem:[#allocation2 + $0x68] sm:$0xff]
    %v536 = vld [vmem:[#allocation2 + $0x70] sm:$0xff]
    %v537 = vld [vmem:[#allocation2 + $0x78] sm:$0xff]
    %v538 = vld [vmem:[%s4] sm:$0x1]
    %v540 = vlaneseq
    %v541 = vshrl.u32 %v540, 7
    %v542 = vsub.s32 0, %v541
    %v543 = vrot.slane %v538, %v542
    %v545 = vadd.f32 %v522, %v543
    %v546 = vadd.f32 %v523, %v543
    %v547 = vadd.f32 %v524, %v543
    %v548 = vadd.f32 %v525, %v543
    %v549 = vadd.f32 %v526, %v543
    %v550 = vadd.f32 %v527, %v543
    %v551 = vadd.f32 %v528, %v543
    %v552 = vadd.f32 %v529, %v543
    %v553 = vadd.f32 %v530, %v543
    %v554 = vadd.f32 %v531, %v543
    %v555 = vadd.f32 %v532, %v543
    %v556 = vadd.f32 %v533, %v543
    %v557 = vadd.f32 %v534, %v543
    %v558 = vadd.f32 %v535, %v543
    %v559 = vadd.f32 %v536, %v543
    %v560 = vadd.f32 %v537, %v543
    %v561 = vld [vmem:[#allocation3] sm:$0xff]
    %v562 = vld [vmem:[#allocation3 + $0x8] sm:$0xff]
    %v563 = vld [vmem:[#allocation3 + $0x10] sm:$0xff]
    %v564 = vld [vmem:[#allocation3 + $0x18] sm:$0xff]
    %v565 = vld [vmem:[#allocation3 + $0x20] sm:$0xff]
    %v566 = vld [vmem:[#allocation3 + $0x28] sm:$0xff]
    %v567 = vld [vmem:[#allocation3 + $0x30] sm:$0xff]
    %v568 = vld [vmem:[#allocation3 + $0x38] sm:$0xff]
    %v569 = vld [vmem:[#allocation3 + $0x40] sm:$0xff]
    %v570 = vld [vmem:[#allocation3 + $0x48] sm:$0xff]
    %v571 = vld [vmem:[#allocation3 + $0x50] sm:$0xff]
    %v572 = vld [vmem:[#allocation3 + $0x58] sm:$0xff]
    %v573 = vld [vmem:[#allocation3 + $0x60] sm:$0xff]
    %v574 = vld [vmem:[#allocation3 + $0x68] sm:$0xff]
    %v575 = vld [vmem:[#allocation3 + $0x70] sm:$0xff]
    %v576 = vld [vmem:[#allocation3 + $0x78] sm:$0xff]
    %v577 = vld [vmem:[%s5] sm:$0x1]
    %v579 = vlaneseq
    %v580 = vshrl.u32 %v579, 7
    %v581 = vsub.s32 0, %v580
    %v582 = vrot.slane %v577, %v581
    %v584 = vadd.f32 %v561, %v582
    %v585 = vadd.f32 %v562, %v582
    %v586 = vadd.f32 %v563, %v582
    %v587 = vadd.f32 %v564, %v582
    %v588 = vadd.f32 %v565, %v582
    %v589 = vadd.f32 %v566, %v582
    %v590 = vadd.f32 %v567, %v582
    %v591 = vadd.f32 %v568, %v582
    %v592 = vadd.f32 %v569, %v582
    %v593 = vadd.f32 %v570, %v582
    %v594 = vadd.f32 %v571, %v582
    %v595 = vadd.f32 %v572, %v582
    %v596 = vadd.f32 %v573, %v582
    %v597 = vadd.f32 %v574, %v582
    %v598 = vadd.f32 %v575, %v582
    %v599 = vadd.f32 %v576, %v582
    %vm600 = vcmp.ge.f32.partialorder %v545, 0.0
    %vm601 = vcmp.ge.f32.partialorder %v546, 0.0
    %vm602 = vcmp.ge.f32.partialorder %v547, 0.0
    %vm603 = vcmp.ge.f32.partialorder %v548, 0.0
    %vm604 = vcmp.ge.f32.partialorder %v549, 0.0
    %vm605 = vcmp.ge.f32.partialorder %v550, 0.0
    %vm606 = vcmp.ge.f32.partialorder %v551, 0.0
    %vm607 = vcmp.ge.f32.partialorder %v552, 0.0
    %vm608 = vcmp.ge.f32.partialorder %v553, 0.0
    %vm609 = vcmp.ge.f32.partialorder %v554, 0.0
    %vm610 = vcmp.ge.f32.partialorder %v555, 0.0
    %vm611 = vcmp.ge.f32.partialorder %v556, 0.0
    %vm612 = vcmp.ge.f32.partialorder %v557, 0.0
    %vm613 = vcmp.ge.f32.partialorder %v558, 0.0
    %vm614 = vcmp.ge.f32.partialorder %v559, 0.0
    %vm615 = vcmp.ge.f32.partialorder %v560, 0.0
    %v616 = vsel %vm600, %v545, 0.0
    %v617 = vsel %vm601, %v546, 0.0
    %v618 = vsel %vm602, %v547, 0.0
    %v619 = vsel %vm603, %v548, 0.0
    %v620 = vsel %vm604, %v549, 0.0
    %v621 = vsel %vm605, %v550, 0.0
    %v622 = vsel %vm606, %v551, 0.0
    %v623 = vsel %vm607, %v552, 0.0
    %v624 = vsel %vm608, %v553, 0.0
    %v625 = vsel %vm609, %v554, 0.0
    %v626 = vsel %vm610, %v555, 0.0
    %v627 = vsel %vm611, %v556, 0.0
    %v628 = vsel %vm612, %v557, 0.0
    %v629 = vsel %vm613, %v558, 0.0
    %v630 = vsel %vm614, %v559, 0.0
    %v631 = vsel %vm615, %v560, 0.0
    %v632 = vsel %vm600, %v584, 0.0
    %v633 = vsel %vm601, %v585, 0.0
    %v634 = vsel %vm602, %v586, 0.0
    %v635 = vsel %vm603, %v587, 0.0
    %v636 = vsel %vm604, %v588, 0.0
    %v637 = vsel %vm605, %v589, 0.0
    %v638 = vsel %vm606, %v590, 0.0
    %v639 = vsel %vm607, %v591, 0.0
    %v640 = vsel %vm608, %v592, 0.0
    %v641 = vsel %vm609, %v593, 0.0
    %v642 = vsel %vm610, %v594, 0.0
    %v643 = vsel %vm611, %v595, 0.0
    %v644 = vsel %vm612, %v596, 0.0
    %v645 = vsel %vm613, %v597, 0.0
    %v646 = vsel %vm614, %v598, 0.0
    %v647 = vsel %vm615, %v599, 0.0
    %648 = vst [vmem:[%s10] sm:$0xff] %v616
    %649 = vst [vmem:[%s10 + $0x8] sm:$0xff] %v617
    %650 = vst [vmem:[%s10 + $0x10] sm:$0xff] %v618
    %651 = vst [vmem:[%s10 + $0x18] sm:$0xff] %v619
    %652 = vst [vmem:[%s10 + $0x20] sm:$0xff] %v620
    %653 = vst [vmem:[%s10 + $0x28] sm:$0xff] %v621
    %654 = vst [vmem:[%s10 + $0x30] sm:$0xff] %v622
    %655 = vst [vmem:[%s10 + $0x38] sm:$0xff] %v623
    %656 = vst [vmem:[%s10 + $0x40] sm:$0xff] %v624
    %657 = vst [vmem:[%s10 + $0x48] sm:$0xff] %v625
    %658 = vst [vmem:[%s10 + $0x50] sm:$0xff] %v626
    %659 = vst [vmem:[%s10 + $0x58] sm:$0xff] %v627
    %660 = vst [vmem:[%s10 + $0x60] sm:$0xff] %v628
    %661 = vst [vmem:[%s10 + $0x68] sm:$0xff] %v629
    %662 = vst [vmem:[%s10 + $0x70] sm:$0xff] %v630
    %663 = vst [vmem:[%s10 + $0x78] sm:$0xff] %v631
    %664 = vst [vmem:[%s11] sm:$0xff] %v632
    %665 = vst [vmem:[%s11 + $0x8] sm:$0xff] %v633
    %666 = vst [vmem:[%s11 + $0x10] sm:$0xff] %v634
    %667 = vst [vmem:[%s11 + $0x18] sm:$0xff] %v635
    %668 = vst [vmem:[%s11 + $0x20] sm:$0xff] %v636
    %669 = vst [vmem:[%s11 + $0x28] sm:$0xff] %v637
    %670 = vst [vmem:[%s11 + $0x30] sm:$0xff] %v638
    %671 = vst [vmem:[%s11 + $0x38] sm:$0xff] %v639
    %672 = vst [vmem:[%s11 + $0x40] sm:$0xff] %v640
    %673 = vst [vmem:[%s11 + $0x48] sm:$0xff] %v641
    %674 = vst [vmem:[%s11 + $0x50] sm:$0xff] %v642
    %675 = vst [vmem:[%s11 + $0x58] sm:$0xff] %v643
    %676 = vst [vmem:[%s11 + $0x60] sm:$0xff] %v644
    %677 = vst [vmem:[%s11 + $0x68] sm:$0xff] %v645
    %678 = vst [vmem:[%s11 + $0x70] sm:$0xff] %v646
    %679 = vst [vmem:[%s11 + $0x78] sm:$0xff] %v647
    %v680 = vld [vmem:[%s6] sm:$0xff]
    %v681 = vld [vmem:[%s6 + $0x8] sm:$0xff]
    %v682 = vld [vmem:[%s6 + $0x10] sm:$0xff]
    %v683 = vld [vmem:[%s6 + $0x18] sm:$0xff]
    %v684 = vld [vmem:[%s6 + $0x20] sm:$0xff]
    %v685 = vld [vmem:[%s6 + $0x28] sm:$0xff]
    %v686 = vld [vmem:[%s6 + $0x30] sm:$0xff]
    %v687 = vld [vmem:[%s6 + $0x38] sm:$0xff]
    %v688 = vld [vmem:[%s6 + $0x40] sm:$0xff]
    %v689 = vld [vmem:[%s6 + $0x48] sm:$0xff]
    %v690 = vld [vmem:[%s6 + $0x50] sm:$0xff]
    %v691 = vld [vmem:[%s6 + $0x58] sm:$0xff]
    %v692 = vld [vmem:[%s6 + $0x60] sm:$0xff]
    %v693 = vld [vmem:[%s6 + $0x68] sm:$0xff]
    %v694 = vld [vmem:[%s6 + $0x70] sm:$0xff]
    %v695 = vld [vmem:[%s6 + $0x78] sm:$0xff]
    %v696 = vadd.f32 %v616, %v680
    %v697 = vadd.f32 %v617, %v681
    %v698 = vadd.f32 %v618, %v682
    %v699 = vadd.f32 %v619, %v683
    %v700 = vadd.f32 %v620, %v684
    %v701 = vadd.f32 %v621, %v685
    %v702 = vadd.f32 %v622, %v686
    %v703 = vadd.f32 %v623, %v687
    %v704 = vadd.f32 %v624, %v688
    %v705 = vadd.f32 %v625, %v689
    %v706 = vadd.f32 %v626, %v690
    %v707 = vadd.f32 %v627, %v691
    %v708 = vadd.f32 %v628, %v692
    %v709 = vadd.f32 %v629, %v693
    %v710 = vadd.f32 %v630, %v694
    %v711 = vadd.f32 %v631, %v695
    %712 = vst [vmem:[%s8] sm:$0xff] %v696
    %713 = vst [vmem:[%s8 + $0x8] sm:$0xff] %v697
    %714 = vst [vmem:[%s8 + $0x10] sm:$0xff] %v698
    %715 = vst [vmem:[%s8 + $0x18] sm:$0xff] %v699
    %716 = vst [vmem:[%s8 + $0x20] sm:$0xff] %v700
    %717 = vst [vmem:[%s8 + $0x28] sm:$0xff] %v701
    %718 = vst [vmem:[%s8 + $0x30] sm:$0xff] %v702
    %719 = vst [vmem:[%s8 + $0x38] sm:$0xff] %v703
    %720 = vst [vmem:[%s8 + $0x40] sm:$0xff] %v704
    %721 = vst [vmem:[%s8 + $0x48] sm:$0xff] %v705
    %722 = vst [vmem:[%s8 + $0x50] sm:$0xff] %v706
    %723 = vst [vmem:[%s8 + $0x58] sm:$0xff] %v707
    %724 = vst [vmem:[%s8 + $0x60] sm:$0xff] %v708
    %725 = vst [vmem:[%s8 + $0x68] sm:$0xff] %v709
    %726 = vst [vmem:[%s8 + $0x70] sm:$0xff] %v710
    %727 = vst [vmem:[%s8 + $0x78] sm:$0xff] %v711
    %v728 = vld [vmem:[%s7] sm:$0xff]
    %v729 = vld [vmem:[%s7 + $0x8] sm:$0xff]
    %v730 = vld [vmem:[%s7 + $0x10] sm:$0xff]
    %v731 = vld [vmem:[%s7 + $0x18] sm:$0xff]
    %v732 = vld [vmem:[%s7 + $0x20] sm:$0xff]
    %v733 = vld [vmem:[%s7 + $0x28] sm:$0xff]
    %v734 = vld [vmem:[%s7 + $0x30] sm:$0xff]
    %v735 = vld [vmem:[%s7 + $0x38] sm:$0xff]
    %v736 = vld [vmem:[%s7 + $0x40] sm:$0xff]
    %v737 = vld [vmem:[%s7 + $0x48] sm:$0xff]
    %v738 = vld [vmem:[%s7 + $0x50] sm:$0xff]
    %v739 = vld [vmem:[%s7 + $0x58] sm:$0xff]
    %v740 = vld [vmem:[%s7 + $0x60] sm:$0xff]
    %v741 = vld [vmem:[%s7 + $0x68] sm:$0xff]
    %v742 = vld [vmem:[%s7 + $0x70] sm:$0xff]
    %v743 = vld [vmem:[%s7 + $0x78] sm:$0xff]
    %v744 = vadd.f32 %v632, %v728
    %v745 = vadd.f32 %v633, %v729
    %v746 = vadd.f32 %v634, %v730
    %v747 = vadd.f32 %v635, %v731
    %v748 = vadd.f32 %v636, %v732
    %v749 = vadd.f32 %v637, %v733
    %v750 = vadd.f32 %v638, %v734
    %v751 = vadd.f32 %v639, %v735
    %v752 = vadd.f32 %v640, %v736
    %v753 = vadd.f32 %v641, %v737
    %v754 = vadd.f32 %v642, %v738
    %v755 = vadd.f32 %v643, %v739
    %v756 = vadd.f32 %v644, %v740
    %v757 = vadd.f32 %v645, %v741
    %v758 = vadd.f32 %v646, %v742
    %v759 = vadd.f32 %v647, %v743
    %760 = vst [vmem:[%s9] sm:$0xff] %v744
    %761 = vst [vmem:[%s9 + $0x8] sm:$0xff] %v745
    %762 = vst [vmem:[%s9 + $0x10] sm:$0xff] %v746
    %763 = vst [vmem:[%s9 + $0x18] sm:$0xff] %v747
    %764 = vst [vmem:[%s9 + $0x20] sm:$0xff] %v748
    %765 = vst [vmem:[%s9 + $0x28] sm:$0xff] %v749
    %766 = vst [vmem:[%s9 + $0x30] sm:$0xff] %v750
    %767 = vst [vmem:[%s9 + $0x38] sm:$0xff] %v751
    %768 = vst [vmem:[%s9 + $0x40] sm:$0xff] %v752
    %769 = vst [vmem:[%s9 + $0x48] sm:$0xff] %v753
    %770 = vst [vmem:[%s9 + $0x50] sm:$0xff] %v754
    %771 = vst [vmem:[%s9 + $0x58] sm:$0xff] %v755
    %772 = vst [vmem:[%s9 + $0x60] sm:$0xff] %v756
    %773 = vst [vmem:[%s9 + $0x68] sm:$0xff] %v757
    %774 = vst [vmem:[%s9 + $0x70] sm:$0xff] %v758
    %775 = vst [vmem:[%s9 + $0x78] sm:$0xff] %v759
  $region41: #{com_res_mlp_forward.5} parent=0 // pred_fallthru
    _
  // Predicated region
  $region42: #{com_res_mlp_forward.5} parent=0 // pred_check
    _
  $region43: #{com_res_mlp_forward.5} parent=0 // pred_check_branch
    %777 = sbr.rel (0) target = $region45
  $region44: #{com_res_mlp_forward.5} parent=0 // pred_region
    _
  $region45: #{com_res_mlp_forward.5} parent=0 // pred_fallthru
    _
  // Predicated region
  $region46: #{com_res_mlp_forward.5} parent=0 // pred_check
    _
  $region47: #{com_res_mlp_forward.5} parent=0 // pred_check_branch
    %779 = sbr.rel (0) target = $region49
  $region48: #{com_res_mlp_forward.5} parent=0 // pred_region
    _
  $region49: #{com_res_mlp_forward.5} parent=0 // pred_fallthru
    _
  // Predicated region
  $region50: #{com_res_mlp_forward.5} parent=0 // pred_check
    _
  $region51: #{com_res_mlp_forward.5} parent=0 // pred_check_branch
    %781 = sbr.rel (0) target = $region53
  $region52: #{com_res_mlp_forward.5} parent=0 // pred_region
    _
  $region53: #{com_res_mlp_forward.5} parent=0 // pred_fallthru
    _
  // Predicated region
  $region54: #{com_res_mlp_forward.5} parent=0 // pred_check
    _
  $region55: #{com_res_mlp_forward.5} parent=0 // pred_check_branch
    %783 = sbr.rel (0) target = $region57
  $region56: #{com_res_mlp_forward.5} parent=0 // pred_region
    _
  $region57: #{com_res_mlp_forward.5} parent=0 // pred_fallthru
    _
  // Predicated region
  $region58: #{com_res_mlp_forward.5} parent=0 // pred_check
    _
  $region59: #{com_res_mlp_forward.5} parent=0 // pred_check_branch
    %785 = sbr.rel (0) target = $region61
  $region60: #{com_res_mlp_forward.5} parent=0 // pred_region
    _
  $region61: #{com_res_mlp_forward.5} parent=0 // pred_fallthru
    _
  // Predicated region
  $region62: #{com_res_mlp_forward.5} parent=0 // pred_check
    _
  $region63: #{com_res_mlp_forward.5} parent=0 // pred_check_branch
    %787 = sbr.rel (0) target = $region65
  $region64: #{com_res_mlp_forward.5} parent=0 // pred_region
    _
  $region65: #{com_res_mlp_forward.5} parent=0 // pred_fallthru
    _
  // Predicated region
  $region66: #{com_res_mlp_forward.5} parent=0 // pred_check
    _
  $region67: #{com_res_mlp_forward.5} parent=0 // pred_check_branch
    %789 = sbr.rel (0) target = $region69
  $region68: #{com_res_mlp_forward.5} parent=0 // pred_region
    _
  $region69: #{com_res_mlp_forward.5} parent=0 // pred_fallthru
    _
  // Predicated region
  $region70: #{com_res_mlp_forward.5} parent=0 // pred_check
    _
  $region71: #{com_res_mlp_forward.5} parent=0 // pred_check_branch
    %791 = sbr.rel (0) target = $region73
  $region72: #{com_res_mlp_forward.5} parent=0 // pred_region
    _
  $region73: #{com_res_mlp_forward.5} parent=0 // pred_fallthru
    _

// kernel: com_res_mlp_forward.6
$region0: #{com_res_mlp_forward.6}
  #allocation0 [shape = 'u32[]', space=smem, size = 0x4, offset = 0x4, fixed_abs, tag = 'smem constant byte address 0x4 - core index']
  #allocation1 [shape = 'u32[144,128]{1,0:T(1,128)}', space=vmem, size = 0x12000, scoped, tag = 'internal scratch']
  #allocation2 [shape = 'f32[128,128]{1,0:T(8,128)}', space=vmem, size = 0x10000, scoped, tag = 'scratch operand']
  #allocation3 [shape = 'f32[128,128]{1,0:T(8,128)}', space=vmem, size = 0x10000, scoped, tag = 'scratch operand']
  %s0 = inlined_call_operand.vmem [shape: f32[128,128], index: 0, kind: input, shape index: {}]
  %s1 = inlined_call_operand.vmem [shape: f32[128,128], index: 1, kind: input, shape index: {}]
  %s2 = inlined_call_operand.vmem [shape: f32[128,128], index: 2, kind: input, shape index: {}]
  %s3 = inlined_call_operand.vmem [shape: f32[128,128], index: 3, kind: input, shape index: {}]
  %s4 = inlined_call_operand.vmem [shape: f32[1,128], index: 4, kind: input, shape index: {}]
  %s5 = inlined_call_operand.vmem [shape: f32[1,128], index: 5, kind: input, shape index: {}]
  %s6 = inlined_call_operand.vmem [shape: f32[128,128], index: 6, kind: input, shape index: {}]
  %s7 = inlined_call_operand.vmem [shape: f32[128,128], index: 7, kind: input, shape index: {}]
  %s8 = inlined_call_operand.vmem [shape: f32[128,128], index: 8, kind: output, shape index: {0}]
  %s9 = inlined_call_operand.vmem [shape: f32[128,128], index: 9, kind: output, shape index: {1}]
  %s10 = inlined_call_operand.hbm [shape: f32[128,128], index: 10, kind: output, shape index: {2}]
  %s11 = inlined_call_operand.hbm [shape: f32[128,128], index: 11, kind: output, shape index: {3}]
  %12 = xla_tuple %s8, %s9, %s10, %s11
  %s13 = sld [smem:[#allocation0]]
  $region74: #{com_res_mlp_forward.6} parent=0
    _
  %s15 = ssub.s32 1, %s13
  %s16 = scalar_select 0, %s15, %s13
  $region1: #{com_res_mlp_forward.6} parent=0
    #allocation4 [shape = 'u8[65536]{0}', space=vmem, size = 0x10000, scoped, tag = 'output window, operand 2, single buffered']
    #allocation5 [shape = 's32[1]{0}', space=sflag, size = 0x4, scoped, tag = 'scoped memory for com_res_mlp_forward.6']
    #allocation6 [shape = 'u8[65536]{0}', space=vmem, size = 0x10000, scoped, tag = 'output window, operand 3, single buffered']
    #allocation7 [shape = 's32[1]{0}', space=sflag, size = 0x4, scoped, tag = 'scoped memory for com_res_mlp_forward.6']
    %17 = vsyncpa [#allocation5], 0
    %18 = vsyncpa [#allocation7], 0
    // Predicated region
    $region2: #{com_res_mlp_forward.6} parent=1 // pred_check
      _
    $region3: #{com_res_mlp_forward.6} parent=1 // pred_check_branch
      %20 = sbr.rel (0) target = $region5
    $region4: #{com_res_mlp_forward.6} parent=1 // pred_region
      _
    $region5: #{com_res_mlp_forward.6} parent=1 // pred_fallthru
      _
    // Predicated region
    $region6: #{com_res_mlp_forward.6} parent=1 // pred_check
      _
    $region7: #{com_res_mlp_forward.6} parent=1 // pred_check_branch
      %22 = sbr.rel (0) target = $region9
    $region8: #{com_res_mlp_forward.6} parent=1 // pred_region
      _
    $region9: #{com_res_mlp_forward.6} parent=1 // pred_fallthru
      _
    // Predicated region
    $region10: #{com_res_mlp_forward.6} parent=1 // pred_check
      _
    $region11: #{com_res_mlp_forward.6} parent=1 // pred_check_branch
      %24 = sbr.rel (0) target = $region13
    $region12: #{com_res_mlp_forward.6} parent=1 // pred_region
      _
    $region13: #{com_res_mlp_forward.6} parent=1 // pred_fallthru
      _
    // Predicated region
    $region14: #{com_res_mlp_forward.6} parent=1 // pred_check
      _
    $region15: #{com_res_mlp_forward.6} parent=1 // pred_check_branch
      %26 = sbr.rel (0) target = $region17
    $region16: #{com_res_mlp_forward.6} parent=1 // pred_region
      _
    $region17: #{com_res_mlp_forward.6} parent=1 // pred_fallthru
      _
    // Predicated region
    $region18: #{com_res_mlp_forward.6} parent=1 // pred_check
      _
    $region19: #{com_res_mlp_forward.6} parent=1 // pred_check_branch
      %28 = sbr.rel (0) target = $region21
    $region20: #{com_res_mlp_forward.6} parent=1 // pred_region
      _
    $region21: #{com_res_mlp_forward.6} parent=1 // pred_fallthru
      _
    // Predicated region
    $region22: #{com_res_mlp_forward.6} parent=1 // pred_check
      _
    $region23: #{com_res_mlp_forward.6} parent=1 // pred_check_branch
      %30 = sbr.rel (0) target = $region25
    $region24: #{com_res_mlp_forward.6} parent=1 // pred_region
      _
    $region25: #{com_res_mlp_forward.6} parent=1 // pred_fallthru
      _
    // Predicated region
    $region26: #{com_res_mlp_forward.6} parent=1 // pred_check
      _
    $region27: #{com_res_mlp_forward.6} parent=1 // pred_check_branch
      %32 = sbr.rel (0) target = $region29
    $region28: #{com_res_mlp_forward.6} parent=1 // pred_region
      _
    $region29: #{com_res_mlp_forward.6} parent=1 // pred_fallthru
      _
    // Predicated region
    $region30: #{com_res_mlp_forward.6} parent=1 // pred_check
      _
    $region31: #{com_res_mlp_forward.6} parent=1 // pred_check_branch
      %34 = sbr.rel (0) target = $region33
    $region32: #{com_res_mlp_forward.6} parent=1 // pred_region
      _
    $region33: #{com_res_mlp_forward.6} parent=1 // pred_fallthru
      _
    %p35 = scmp.eq.s32.totalorder 0, 0
    // Predicated region
    $region34: #{com_res_mlp_forward.6} parent=1 // pred_check
      %p36 = pneg %p35
    $region35: #{com_res_mlp_forward.6} parent=1 // pred_check_branch
      %38 = sbr.rel (%p36) target = $region37
    $region36: #{com_res_mlp_forward.6} parent=1 // pred_region
      %39 = vst [vmem:[#allocation2] sm:$0xff] 0.0
      %40 = vst [vmem:[#allocation2 + $0x8] sm:$0xff] 0.0
      %41 = vst [vmem:[#allocation2 + $0x10] sm:$0xff] 0.0
      %42 = vst [vmem:[#allocation2 + $0x18] sm:$0xff] 0.0
      %43 = vst [vmem:[#allocation2 + $0x20] sm:$0xff] 0.0
      %44 = vst [vmem:[#allocation2 + $0x28] sm:$0xff] 0.0
      %45 = vst [vmem:[#allocation2 + $0x30] sm:$0xff] 0.0
      %46 = vst [vmem:[#allocation2 + $0x38] sm:$0xff] 0.0
      %47 = vst [vmem:[#allocation2 + $0x40] sm:$0xff] 0.0
      %48 = vst [vmem:[#allocation2 + $0x48] sm:$0xff] 0.0
      %49 = vst [vmem:[#allocation2 + $0x50] sm:$0xff] 0.0
      %50 = vst [vmem:[#allocation2 + $0x58] sm:$0xff] 0.0
      %51 = vst [vmem:[#allocation2 + $0x60] sm:$0xff] 0.0
      %52 = vst [vmem:[#allocation2 + $0x68] sm:$0xff] 0.0
      %53 = vst [vmem:[#allocation2 + $0x70] sm:$0xff] 0.0
      %54 = vst [vmem:[#allocation2 + $0x78] sm:$0xff] 0.0
      %55 = vst [vmem:[#allocation3] sm:$0xff] 0.0
      %56 = vst [vmem:[#allocation3 + $0x8] sm:$0xff] 0.0
      %57 = vst [vmem:[#allocation3 + $0x10] sm:$0xff] 0.0
      %58 = vst [vmem:[#allocation3 + $0x18] sm:$0xff] 0.0
      %59 = vst [vmem:[#allocation3 + $0x20] sm:$0xff] 0.0
      %60 = vst [vmem:[#allocation3 + $0x28] sm:$0xff] 0.0
      %61 = vst [vmem:[#allocation3 + $0x30] sm:$0xff] 0.0
      %62 = vst [vmem:[#allocation3 + $0x38] sm:$0xff] 0.0
      %63 = vst [vmem:[#allocation3 + $0x40] sm:$0xff] 0.0
      %64 = vst [vmem:[#allocation3 + $0x48] sm:$0xff] 0.0
      %65 = vst [vmem:[#allocation3 + $0x50] sm:$0xff] 0.0
      %66 = vst [vmem:[#allocation3 + $0x58] sm:$0xff] 0.0
      %67 = vst [vmem:[#allocation3 + $0x60] sm:$0xff] 0.0
      %68 = vst [vmem:[#allocation3 + $0x68] sm:$0xff] 0.0
      %69 = vst [vmem:[#allocation3 + $0x70] sm:$0xff] 0.0
      %70 = vst [vmem:[#allocation3 + $0x78] sm:$0xff] 0.0
    $region37: #{com_res_mlp_forward.6} parent=1 // pred_fallthru
      _
    %v71 = vld [vmem:[#allocation2] sm:$0xff]
    %v72 = vld [vmem:[#allocation2 + $0x8] sm:$0xff]
    %v73 = vld [vmem:[#allocation2 + $0x10] sm:$0xff]
    %v74 = vld [vmem:[#allocation2 + $0x18] sm:$0xff]
    %v75 = vld [vmem:[#allocation2 + $0x20] sm:$0xff]
    %v76 = vld [vmem:[#allocation2 + $0x28] sm:$0xff]
    %v77 = vld [vmem:[#allocation2 + $0x30] sm:$0xff]
    %v78 = vld [vmem:[#allocation2 + $0x38] sm:$0xff]
    %v79 = vld [vmem:[#allocation2 + $0x40] sm:$0xff]
    %v80 = vld [vmem:[#allocation2 + $0x48] sm:$0xff]
    %v81 = vld [vmem:[#allocation2 + $0x50] sm:$0xff]
    %v82 = vld [vmem:[#allocation2 + $0x58] sm:$0xff]
    %v83 = vld [vmem:[#allocation2 + $0x60] sm:$0xff]
    %v84 = vld [vmem:[#allocation2 + $0x68] sm:$0xff]
    %v85 = vld [vmem:[#allocation2 + $0x70] sm:$0xff]
    %v86 = vld [vmem:[#allocation2 + $0x78] sm:$0xff]
    %v87 = vld [vmem:[%s0] sm:$0xff]
    %v88 = vld [vmem:[%s0 + $0x8] sm:$0xff]
    %v89 = vld [vmem:[%s0 + $0x10] sm:$0xff]
    %v90 = vld [vmem:[%s0 + $0x18] sm:$0xff]
    %v91 = vld [vmem:[%s0 + $0x20] sm:$0xff]
    %v92 = vld [vmem:[%s0 + $0x28] sm:$0xff]
    %v93 = vld [vmem:[%s0 + $0x30] sm:$0xff]
    %v94 = vld [vmem:[%s0 + $0x38] sm:$0xff]
    %v95 = vld [vmem:[%s0 + $0x40] sm:$0xff]
    %v96 = vld [vmem:[%s0 + $0x48] sm:$0xff]
    %v97 = vld [vmem:[%s0 + $0x50] sm:$0xff]
    %v98 = vld [vmem:[%s0 + $0x58] sm:$0xff]
    %v99 = vld [vmem:[%s0 + $0x60] sm:$0xff]
    %v100 = vld [vmem:[%s0 + $0x68] sm:$0xff]
    %v101 = vld [vmem:[%s0 + $0x70] sm:$0xff]
    %v102 = vld [vmem:[%s0 + $0x78] sm:$0xff]
    %v103 = vld [vmem:[%s2] sm:$0xff]
    %v104 = vld [vmem:[%s2 + $0x8] sm:$0xff]
    %v105 = vld [vmem:[%s2 + $0x10] sm:$0xff]
    %v106 = vld [vmem:[%s2 + $0x18] sm:$0xff]
    %v107 = vld [vmem:[%s2 + $0x20] sm:$0xff]
    %v108 = vld [vmem:[%s2 + $0x28] sm:$0xff]
    %v109 = vld [vmem:[%s2 + $0x30] sm:$0xff]
    %v110 = vld [vmem:[%s2 + $0x38] sm:$0xff]
    %v111 = vld [vmem:[%s2 + $0x40] sm:$0xff]
    %v112 = vld [vmem:[%s2 + $0x48] sm:$0xff]
    %v113 = vld [vmem:[%s2 + $0x50] sm:$0xff]
    %v114 = vld [vmem:[%s2 + $0x58] sm:$0xff]
    %v115 = vld [vmem:[%s2 + $0x60] sm:$0xff]
    %v116 = vld [vmem:[%s2 + $0x68] sm:$0xff]
    %v117 = vld [vmem:[%s2 + $0x70] sm:$0xff]
    %v118 = vld [vmem:[%s2 + $0x78] sm:$0xff]
    %119 = vmatprep.subr.mxu0 0.0
    %120 = vmatpush1.msra.mxu0 %v118
    %121 = vmatprep.subr.mxu0 0.0
    %122 = vmatpush1.msra.mxu0 %v117
    %123 = vmatprep.subr.mxu0 0.0
    %124 = vmatpush1.msra.mxu0 %v116
    %125 = vmatprep.subr.mxu0 0.0
    %126 = vmatpush1.msra.mxu0 %v115
    %127 = vmatprep.subr.mxu0 0.0
    %128 = vmatpush1.msra.mxu0 %v114
    %129 = vmatprep.subr.mxu0 0.0
    %130 = vmatpush1.msra.mxu0 %v113
    %131 = vmatprep.subr.mxu0 0.0
    %132 = vmatpush1.msra.mxu0 %v112
    %133 = vmatprep.subr.mxu0 0.0
    %134 = vmatpush1.msra.mxu0 %v111
    %135 = vmatprep.subr.mxu0 0.0
    %136 = vmatpush1.msra.mxu0 %v110
    %137 = vmatprep.subr.mxu0 0.0
    %138 = vmatpush1.msra.mxu0 %v109
    %139 = vmatprep.subr.mxu0 0.0
    %140 = vmatpush1.msra.mxu0 %v108
    %141 = vmatprep.subr.mxu0 0.0
    %142 = vmatpush1.msra.mxu0 %v107
    %143 = vmatprep.subr.mxu0 0.0
    %144 = vmatpush1.msra.mxu0 %v106
    %145 = vmatprep.subr.mxu0 0.0
    %146 = vmatpush1.msra.mxu0 %v105
    %147 = vmatprep.subr.mxu0 0.0
    %148 = vmatpush1.msra.mxu0 %v104
    %149 = vmatprep.subr.mxu0 0.0
    %150 = vmatpush1.msra.mxu0 %v103
    %151 = vmatprep.subr.mxu0 0.0
    %152 = vmatpush2.msra.mxu0 0.0
    %153 = vmatprep.subr.mxu0 0.0
    %154 = vmatpush2.msra.mxu0 0.0
    %155 = vmatprep.subr.mxu0 0.0
    %156 = vmatpush2.msra.mxu0 0.0
    %157 = vmatprep.subr.mxu0 0.0
    %158 = vmatpush2.msra.mxu0 0.0
    %159 = vmatprep.subr.mxu0 0.0
    %160 = vmatpush2.msra.mxu0 0.0
    %161 = vmatprep.subr.mxu0 0.0
    %162 = vmatpush2.msra.mxu0 0.0
    %163 = vmatprep.subr.mxu0 0.0
    %164 = vmatpush2.msra.mxu0 0.0
    %165 = vmatprep.subr.mxu0 0.0
    %166 = vmatpush2.msra.mxu0 0.0
    %167 = vmatprep.subr.mxu0 0.0
    %168 = vmatpush2.msra.mxu0 0.0
    %169 = vmatprep.subr.mxu0 0.0
    %170 = vmatpush2.msra.mxu0 0.0
    %171 = vmatprep.subr.mxu0 0.0
    %172 = vmatpush2.msra.mxu0 0.0
    %173 = vmatprep.subr.mxu0 0.0
    %174 = vmatpush2.msra.mxu0 0.0
    %175 = vmatprep.subr.mxu0 0.0
    %176 = vmatpush2.msra.mxu0 0.0
    %177 = vmatprep.subr.mxu0 0.0
    %178 = vmatpush2.msra.mxu0 0.0
    %179 = vmatprep.subr.mxu0 0.0
    %180 = vmatpush2.msra.mxu0 0.0
    %181 = vmatprep.subr.mxu0 0.0
    %182 = vmatpush2.msra.mxu0 0.0
    %183 = vmatprep.mubr.f32.mxu0 0.0
    %184 = vmatmul.mubr.f32.gmra.mxu0 %v87
    %v185 = vpop.f32.mrf.mxu0
    %v186 = vadd.f32 0.0, %v185
    %v187 = vpop.f32.mrf.mxu0
    %188 = vmatprep.mubr.f32.mxu0 0.0
    %189 = vmatmul.mubr.f32.gmra.mxu0 %v88
    %v190 = vpop.f32.mrf.mxu0
    %v191 = vadd.f32 0.0, %v190
    %v192 = vpop.f32.mrf.mxu0
    %193 = vmatprep.mubr.f32.mxu0 0.0
    %194 = vmatmul.mubr.f32.gmra.mxu0 %v89
    %v195 = vpop.f32.mrf.mxu0
    %v196 = vadd.f32 0.0, %v195
    %v197 = vpop.f32.mrf.mxu0
    %198 = vmatprep.mubr.f32.mxu0 0.0
    %199 = vmatmul.mubr.f32.gmra.mxu0 %v90
    %v200 = vpop.f32.mrf.mxu0
    %v201 = vadd.f32 0.0, %v200
    %v202 = vpop.f32.mrf.mxu0
    %203 = vmatprep.mubr.f32.mxu0 0.0
    %204 = vmatmul.mubr.f32.gmra.mxu0 %v91
    %v205 = vpop.f32.mrf.mxu0
    %v206 = vadd.f32 0.0, %v205
    %v207 = vpop.f32.mrf.mxu0
    %208 = vmatprep.mubr.f32.mxu0 0.0
    %209 = vmatmul.mubr.f32.gmra.mxu0 %v92
    %v210 = vpop.f32.mrf.mxu0
    %v211 = vadd.f32 0.0, %v210
    %v212 = vpop.f32.mrf.mxu0
    %213 = vmatprep.mubr.f32.mxu0 0.0
    %214 = vmatmul.mubr.f32.gmra.mxu0 %v93
    %v215 = vpop.f32.mrf.mxu0
    %v216 = vadd.f32 0.0, %v215
    %v217 = vpop.f32.mrf.mxu0
    %218 = vmatprep.mubr.f32.mxu0 0.0
    %219 = vmatmul.mubr.f32.gmra.mxu0 %v94
    %v220 = vpop.f32.mrf.mxu0
    %v221 = vadd.f32 0.0, %v220
    %v222 = vpop.f32.mrf.mxu0
    %223 = vmatprep.mubr.f32.mxu0 0.0
    %224 = vmatmul.mubr.f32.gmra.mxu0 %v95
    %v225 = vpop.f32.mrf.mxu0
    %v226 = vadd.f32 0.0, %v225
    %v227 = vpop.f32.mrf.mxu0
    %228 = vmatprep.mubr.f32.mxu0 0.0
    %229 = vmatmul.mubr.f32.gmra.mxu0 %v96
    %v230 = vpop.f32.mrf.mxu0
    %v231 = vadd.f32 0.0, %v230
    %v232 = vpop.f32.mrf.mxu0
    %233 = vmatprep.mubr.f32.mxu0 0.0
    %234 = vmatmul.mubr.f32.gmra.mxu0 %v97
    %v235 = vpop.f32.mrf.mxu0
    %v236 = vadd.f32 0.0, %v235
    %v237 = vpop.f32.mrf.mxu0
    %238 = vmatprep.mubr.f32.mxu0 0.0
    %239 = vmatmul.mubr.f32.gmra.mxu0 %v98
    %v240 = vpop.f32.mrf.mxu0
    %v241 = vadd.f32 0.0, %v240
    %v242 = vpop.f32.mrf.mxu0
    %243 = vmatprep.mubr.f32.mxu0 0.0
    %244 = vmatmul.mubr.f32.gmra.mxu0 %v99
    %v245 = vpop.f32.mrf.mxu0
    %v246 = vadd.f32 0.0, %v245
    %v247 = vpop.f32.mrf.mxu0
    %248 = vmatprep.mubr.f32.mxu0 0.0
    %249 = vmatmul.mubr.f32.gmra.mxu0 %v100
    %v250 = vpop.f32.mrf.mxu0
    %v251 = vadd.f32 0.0, %v250
    %v252 = vpop.f32.mrf.mxu0
    %253 = vmatprep.mubr.f32.mxu0 0.0
    %254 = vmatmul.mubr.f32.gmra.mxu0 %v101
    %v255 = vpop.f32.mrf.mxu0
    %v256 = vadd.f32 0.0, %v255
    %v257 = vpop.f32.mrf.mxu0
    %258 = vmatprep.mubr.f32.mxu0 0.0
    %259 = vmatmul.mubr.f32.gmra.mxu0 %v102
    %v260 = vpop.f32.mrf.mxu0
    %v261 = vadd.f32 0.0, %v260
    %v262 = vpop.f32.mrf.mxu0
    %263 = vdwg.mxu0
    %v264 = vadd.f32 %v71, %v186
    %v265 = vadd.f32 %v72, %v191
    %v266 = vadd.f32 %v73, %v196
    %v267 = vadd.f32 %v74, %v201
    %v268 = vadd.f32 %v75, %v206
    %v269 = vadd.f32 %v76, %v211
    %v270 = vadd.f32 %v77, %v216
    %v271 = vadd.f32 %v78, %v221
    %v272 = vadd.f32 %v79, %v226
    %v273 = vadd.f32 %v80, %v231
    %v274 = vadd.f32 %v81, %v236
    %v275 = vadd.f32 %v82, %v241
    %v276 = vadd.f32 %v83, %v246
    %v277 = vadd.f32 %v84, %v251
    %v278 = vadd.f32 %v85, %v256
    %v279 = vadd.f32 %v86, %v261
    %280 = vst [vmem:[#allocation2] sm:$0xff] %v264
    %281 = vst [vmem:[#allocation2 + $0x8] sm:$0xff] %v265
    %282 = vst [vmem:[#allocation2 + $0x10] sm:$0xff] %v266
    %283 = vst [vmem:[#allocation2 + $0x18] sm:$0xff] %v267
    %284 = vst [vmem:[#allocation2 + $0x20] sm:$0xff] %v268
    %285 = vst [vmem:[#allocation2 + $0x28] sm:$0xff] %v269
    %286 = vst [vmem:[#allocation2 + $0x30] sm:$0xff] %v270
    %287 = vst [vmem:[#allocation2 + $0x38] sm:$0xff] %v271
    %288 = vst [vmem:[#allocation2 + $0x40] sm:$0xff] %v272
    %289 = vst [vmem:[#allocation2 + $0x48] sm:$0xff] %v273
    %290 = vst [vmem:[#allocation2 + $0x50] sm:$0xff] %v274
    %291 = vst [vmem:[#allocation2 + $0x58] sm:$0xff] %v275
    %292 = vst [vmem:[#allocation2 + $0x60] sm:$0xff] %v276
    %293 = vst [vmem:[#allocation2 + $0x68] sm:$0xff] %v277
    %294 = vst [vmem:[#allocation2 + $0x70] sm:$0xff] %v278
    %295 = vst [vmem:[#allocation2 + $0x78] sm:$0xff] %v279
    %v296 = vld [vmem:[#allocation3] sm:$0xff]
    %v297 = vld [vmem:[#allocation3 + $0x8] sm:$0xff]
    %v298 = vld [vmem:[#allocation3 + $0x10] sm:$0xff]
    %v299 = vld [vmem:[#allocation3 + $0x18] sm:$0xff]
    %v300 = vld [vmem:[#allocation3 + $0x20] sm:$0xff]
    %v301 = vld [vmem:[#allocation3 + $0x28] sm:$0xff]
    %v302 = vld [vmem:[#allocation3 + $0x30] sm:$0xff]
    %v303 = vld [vmem:[#allocation3 + $0x38] sm:$0xff]
    %v304 = vld [vmem:[#allocation3 + $0x40] sm:$0xff]
    %v305 = vld [vmem:[#allocation3 + $0x48] sm:$0xff]
    %v306 = vld [vmem:[#allocation3 + $0x50] sm:$0xff]
    %v307 = vld [vmem:[#allocation3 + $0x58] sm:$0xff]
    %v308 = vld [vmem:[#allocation3 + $0x60] sm:$0xff]
    %v309 = vld [vmem:[#allocation3 + $0x68] sm:$0xff]
    %v310 = vld [vmem:[#allocation3 + $0x70] sm:$0xff]
    %v311 = vld [vmem:[#allocation3 + $0x78] sm:$0xff]
    %v312 = vld [vmem:[%s1] sm:$0xff]
    %v313 = vld [vmem:[%s1 + $0x8] sm:$0xff]
    %v314 = vld [vmem:[%s1 + $0x10] sm:$0xff]
    %v315 = vld [vmem:[%s1 + $0x18] sm:$0xff]
    %v316 = vld [vmem:[%s1 + $0x20] sm:$0xff]
    %v317 = vld [vmem:[%s1 + $0x28] sm:$0xff]
    %v318 = vld [vmem:[%s1 + $0x30] sm:$0xff]
    %v319 = vld [vmem:[%s1 + $0x38] sm:$0xff]
    %v320 = vld [vmem:[%s1 + $0x40] sm:$0xff]
    %v321 = vld [vmem:[%s1 + $0x48] sm:$0xff]
    %v322 = vld [vmem:[%s1 + $0x50] sm:$0xff]
    %v323 = vld [vmem:[%s1 + $0x58] sm:$0xff]
    %v324 = vld [vmem:[%s1 + $0x60] sm:$0xff]
    %v325 = vld [vmem:[%s1 + $0x68] sm:$0xff]
    %v326 = vld [vmem:[%s1 + $0x70] sm:$0xff]
    %v327 = vld [vmem:[%s1 + $0x78] sm:$0xff]
    %v328 = vld [vmem:[%s3] sm:$0xff]
    %v329 = vld [vmem:[%s3 + $0x8] sm:$0xff]
    %v330 = vld [vmem:[%s3 + $0x10] sm:$0xff]
    %v331 = vld [vmem:[%s3 + $0x18] sm:$0xff]
    %v332 = vld [vmem:[%s3 + $0x20] sm:$0xff]
    %v333 = vld [vmem:[%s3 + $0x28] sm:$0xff]
    %v334 = vld [vmem:[%s3 + $0x30] sm:$0xff]
    %v335 = vld [vmem:[%s3 + $0x38] sm:$0xff]
    %v336 = vld [vmem:[%s3 + $0x40] sm:$0xff]
    %v337 = vld [vmem:[%s3 + $0x48] sm:$0xff]
    %v338 = vld [vmem:[%s3 + $0x50] sm:$0xff]
    %v339 = vld [vmem:[%s3 + $0x58] sm:$0xff]
    %v340 = vld [vmem:[%s3 + $0x60] sm:$0xff]
    %v341 = vld [vmem:[%s3 + $0x68] sm:$0xff]
    %v342 = vld [vmem:[%s3 + $0x70] sm:$0xff]
    %v343 = vld [vmem:[%s3 + $0x78] sm:$0xff]
    %344 = vmatprep.subr.mxu0 0.0
    %345 = vmatpush1.msra.mxu0 %v343
    %346 = vmatprep.subr.mxu0 0.0
    %347 = vmatpush1.msra.mxu0 %v342
    %348 = vmatprep.subr.mxu0 0.0
    %349 = vmatpush1.msra.mxu0 %v341
    %350 = vmatprep.subr.mxu0 0.0
    %351 = vmatpush1.msra.mxu0 %v340
    %352 = vmatprep.subr.mxu0 0.0
    %353 = vmatpush1.msra.mxu0 %v339
    %354 = vmatprep.subr.mxu0 0.0
    %355 = vmatpush1.msra.mxu0 %v338
    %356 = vmatprep.subr.mxu0 0.0
    %357 = vmatpush1.msra.mxu0 %v337
    %358 = vmatprep.subr.mxu0 0.0
    %359 = vmatpush1.msra.mxu0 %v336
    %360 = vmatprep.subr.mxu0 0.0
    %361 = vmatpush1.msra.mxu0 %v335
    %362 = vmatprep.subr.mxu0 0.0
    %363 = vmatpush1.msra.mxu0 %v334
    %364 = vmatprep.subr.mxu0 0.0
    %365 = vmatpush1.msra.mxu0 %v333
    %366 = vmatprep.subr.mxu0 0.0
    %367 = vmatpush1.msra.mxu0 %v332
    %368 = vmatprep.subr.mxu0 0.0
    %369 = vmatpush1.msra.mxu0 %v331
    %370 = vmatprep.subr.mxu0 0.0
    %371 = vmatpush1.msra.mxu0 %v330
    %372 = vmatprep.subr.mxu0 0.0
    %373 = vmatpush1.msra.mxu0 %v329
    %374 = vmatprep.subr.mxu0 0.0
    %375 = vmatpush1.msra.mxu0 %v328
    %376 = vmatprep.subr.mxu0 0.0
    %377 = vmatpush2.msra.mxu0 0.0
    %378 = vmatprep.subr.mxu0 0.0
    %379 = vmatpush2.msra.mxu0 0.0
    %380 = vmatprep.subr.mxu0 0.0
    %381 = vmatpush2.msra.mxu0 0.0
    %382 = vmatprep.subr.mxu0 0.0
    %383 = vmatpush2.msra.mxu0 0.0
    %384 = vmatprep.subr.mxu0 0.0
    %385 = vmatpush2.msra.mxu0 0.0
    %386 = vmatprep.subr.mxu0 0.0
    %387 = vmatpush2.msra.mxu0 0.0
    %388 = vmatprep.subr.mxu0 0.0
    %389 = vmatpush2.msra.mxu0 0.0
    %390 = vmatprep.subr.mxu0 0.0
    %391 = vmatpush2.msra.mxu0 0.0
    %392 = vmatprep.subr.mxu0 0.0
    %393 = vmatpush2.msra.mxu0 0.0
    %394 = vmatprep.subr.mxu0 0.0
    %395 = vmatpush2.msra.mxu0 0.0
    %396 = vmatprep.subr.mxu0 0.0
    %397 = vmatpush2.msra.mxu0 0.0
    %398 = vmatprep.subr.mxu0 0.0
    %399 = vmatpush2.msra.mxu0 0.0
    %400 = vmatprep.subr.mxu0 0.0
    %401 = vmatpush2.msra.mxu0 0.0
    %402 = vmatprep.subr.mxu0 0.0
    %403 = vmatpush2.msra.mxu0 0.0
    %404 = vmatprep.subr.mxu0 0.0
    %405 = vmatpush2.msra.mxu0 0.0
    %406 = vmatprep.subr.mxu0 0.0
    %407 = vmatpush2.msra.mxu0 0.0
    %408 = vmatprep.mubr.f32.mxu0 0.0
    %409 = vmatmul.mubr.f32.gmra.mxu0 %v312
    %v410 = vpop.f32.mrf.mxu0
    %v411 = vadd.f32 0.0, %v410
    %v412 = vpop.f32.mrf.mxu0
    %413 = vmatprep.mubr.f32.mxu0 0.0
    %414 = vmatmul.mubr.f32.gmra.mxu0 %v313
    %v415 = vpop.f32.mrf.mxu0
    %v416 = vadd.f32 0.0, %v415
    %v417 = vpop.f32.mrf.mxu0
    %418 = vmatprep.mubr.f32.mxu0 0.0
    %419 = vmatmul.mubr.f32.gmra.mxu0 %v314
    %v420 = vpop.f32.mrf.mxu0
    %v421 = vadd.f32 0.0, %v420
    %v422 = vpop.f32.mrf.mxu0
    %423 = vmatprep.mubr.f32.mxu0 0.0
    %424 = vmatmul.mubr.f32.gmra.mxu0 %v315
    %v425 = vpop.f32.mrf.mxu0
    %v426 = vadd.f32 0.0, %v425
    %v427 = vpop.f32.mrf.mxu0
    %428 = vmatprep.mubr.f32.mxu0 0.0
    %429 = vmatmul.mubr.f32.gmra.mxu0 %v316
    %v430 = vpop.f32.mrf.mxu0
    %v431 = vadd.f32 0.0, %v430
    %v432 = vpop.f32.mrf.mxu0
    %433 = vmatprep.mubr.f32.mxu0 0.0
    %434 = vmatmul.mubr.f32.gmra.mxu0 %v317
    %v435 = vpop.f32.mrf.mxu0
    %v436 = vadd.f32 0.0, %v435
    %v437 = vpop.f32.mrf.mxu0
    %438 = vmatprep.mubr.f32.mxu0 0.0
    %439 = vmatmul.mubr.f32.gmra.mxu0 %v318
    %v440 = vpop.f32.mrf.mxu0
    %v441 = vadd.f32 0.0, %v440
    %v442 = vpop.f32.mrf.mxu0
    %443 = vmatprep.mubr.f32.mxu0 0.0
    %444 = vmatmul.mubr.f32.gmra.mxu0 %v319
    %v445 = vpop.f32.mrf.mxu0
    %v446 = vadd.f32 0.0, %v445
    %v447 = vpop.f32.mrf.mxu0
    %448 = vmatprep.mubr.f32.mxu0 0.0
    %449 = vmatmul.mubr.f32.gmra.mxu0 %v320
    %v450 = vpop.f32.mrf.mxu0
    %v451 = vadd.f32 0.0, %v450
    %v452 = vpop.f32.mrf.mxu0
    %453 = vmatprep.mubr.f32.mxu0 0.0
    %454 = vmatmul.mubr.f32.gmra.mxu0 %v321
    %v455 = vpop.f32.mrf.mxu0
    %v456 = vadd.f32 0.0, %v455
    %v457 = vpop.f32.mrf.mxu0
    %458 = vmatprep.mubr.f32.mxu0 0.0
    %459 = vmatmul.mubr.f32.gmra.mxu0 %v322
    %v460 = vpop.f32.mrf.mxu0
    %v461 = vadd.f32 0.0, %v460
    %v462 = vpop.f32.mrf.mxu0
    %463 = vmatprep.mubr.f32.mxu0 0.0
    %464 = vmatmul.mubr.f32.gmra.mxu0 %v323
    %v465 = vpop.f32.mrf.mxu0
    %v466 = vadd.f32 0.0, %v465
    %v467 = vpop.f32.mrf.mxu0
    %468 = vmatprep.mubr.f32.mxu0 0.0
    %469 = vmatmul.mubr.f32.gmra.mxu0 %v324
    %v470 = vpop.f32.mrf.mxu0
    %v471 = vadd.f32 0.0, %v470
    %v472 = vpop.f32.mrf.mxu0
    %473 = vmatprep.mubr.f32.mxu0 0.0
    %474 = vmatmul.mubr.f32.gmra.mxu0 %v325
    %v475 = vpop.f32.mrf.mxu0
    %v476 = vadd.f32 0.0, %v475
    %v477 = vpop.f32.mrf.mxu0
    %478 = vmatprep.mubr.f32.mxu0 0.0
    %479 = vmatmul.mubr.f32.gmra.mxu0 %v326
    %v480 = vpop.f32.mrf.mxu0
    %v481 = vadd.f32 0.0, %v480
    %v482 = vpop.f32.mrf.mxu0
    %483 = vmatprep.mubr.f32.mxu0 0.0
    %484 = vmatmul.mubr.f32.gmra.mxu0 %v327
    %v485 = vpop.f32.mrf.mxu0
    %v486 = vadd.f32 0.0, %v485
    %v487 = vpop.f32.mrf.mxu0
    %488 = vdwg.mxu0
    %v489 = vadd.f32 %v296, %v411
    %v490 = vadd.f32 %v297, %v416
    %v491 = vadd.f32 %v298, %v421
    %v492 = vadd.f32 %v299, %v426
    %v493 = vadd.f32 %v300, %v431
    %v494 = vadd.f32 %v301, %v436
    %v495 = vadd.f32 %v302, %v441
    %v496 = vadd.f32 %v303, %v446
    %v497 = vadd.f32 %v304, %v451
    %v498 = vadd.f32 %v305, %v456
    %v499 = vadd.f32 %v306, %v461
    %v500 = vadd.f32 %v307, %v466
    %v501 = vadd.f32 %v308, %v471
    %v502 = vadd.f32 %v309, %v476
    %v503 = vadd.f32 %v310, %v481
    %v504 = vadd.f32 %v311, %v486
    %505 = vst [vmem:[#allocation3] sm:$0xff] %v489
    %506 = vst [vmem:[#allocation3 + $0x8] sm:$0xff] %v490
    %507 = vst [vmem:[#allocation3 + $0x10] sm:$0xff] %v491
    %508 = vst [vmem:[#allocation3 + $0x18] sm:$0xff] %v492
    %509 = vst [vmem:[#allocation3 + $0x20] sm:$0xff] %v493
    %510 = vst [vmem:[#allocation3 + $0x28] sm:$0xff] %v494
    %511 = vst [vmem:[#allocation3 + $0x30] sm:$0xff] %v495
    %512 = vst [vmem:[#allocation3 + $0x38] sm:$0xff] %v496
    %513 = vst [vmem:[#allocation3 + $0x40] sm:$0xff] %v497
    %514 = vst [vmem:[#allocation3 + $0x48] sm:$0xff] %v498
    %515 = vst [vmem:[#allocation3 + $0x50] sm:$0xff] %v499
    %516 = vst [vmem:[#allocation3 + $0x58] sm:$0xff] %v500
    %517 = vst [vmem:[#allocation3 + $0x60] sm:$0xff] %v501
    %518 = vst [vmem:[#allocation3 + $0x68] sm:$0xff] %v502
    %519 = vst [vmem:[#allocation3 + $0x70] sm:$0xff] %v503
    %520 = vst [vmem:[#allocation3 + $0x78] sm:$0xff] %v504
    // Predicated region
    $region38: #{com_res_mlp_forward.6} parent=1 // pred_check
      %p521 = pneg %p35
    $region39: #{com_res_mlp_forward.6} parent=1 // pred_check_branch
      %523 = sbr.rel (%p521) target = $region41
    $region40: #{com_res_mlp_forward.6} parent=1 // pred_region
      %v524 = vld [vmem:[#allocation2] sm:$0xff]
      %v525 = vld [vmem:[#allocation2 + $0x8] sm:$0xff]
      %v526 = vld [vmem:[#allocation2 + $0x10] sm:$0xff]
      %v527 = vld [vmem:[#allocation2 + $0x18] sm:$0xff]
      %v528 = vld [vmem:[#allocation2 + $0x20] sm:$0xff]
      %v529 = vld [vmem:[#allocation2 + $0x28] sm:$0xff]
      %v530 = vld [vmem:[#allocation2 + $0x30] sm:$0xff]
      %v531 = vld [vmem:[#allocation2 + $0x38] sm:$0xff]
      %v532 = vld [vmem:[#allocation2 + $0x40] sm:$0xff]
      %v533 = vld [vmem:[#allocation2 + $0x48] sm:$0xff]
      %v534 = vld [vmem:[#allocation2 + $0x50] sm:$0xff]
      %v535 = vld [vmem:[#allocation2 + $0x58] sm:$0xff]
      %v536 = vld [vmem:[#allocation2 + $0x60] sm:$0xff]
      %v537 = vld [vmem:[#allocation2 + $0x68] sm:$0xff]
      %v538 = vld [vmem:[#allocation2 + $0x70] sm:$0xff]
      %v539 = vld [vmem:[#allocation2 + $0x78] sm:$0xff]
      %v540 = vld [vmem:[%s4] sm:$0x1]
      %v542 = vlaneseq
      %v543 = vshrl.u32 %v542, 7
      %v544 = vsub.s32 0, %v543
      %v545 = vrot.slane %v540, %v544
      %v547 = vadd.f32 %v524, %v545
      %v548 = vadd.f32 %v525, %v545
      %v549 = vadd.f32 %v526, %v545
      %v550 = vadd.f32 %v527, %v545
      %v551 = vadd.f32 %v528, %v545
      %v552 = vadd.f32 %v529, %v545
      %v553 = vadd.f32 %v530, %v545
      %v554 = vadd.f32 %v531, %v545
      %v555 = vadd.f32 %v532, %v545
      %v556 = vadd.f32 %v533, %v545
      %v557 = vadd.f32 %v534, %v545
      %v558 = vadd.f32 %v535, %v545
      %v559 = vadd.f32 %v536, %v545
      %v560 = vadd.f32 %v537, %v545
      %v561 = vadd.f32 %v538, %v545
      %v562 = vadd.f32 %v539, %v545
      %v563 = vld [vmem:[#allocation3] sm:$0xff]
      %v564 = vld [vmem:[#allocation3 + $0x8] sm:$0xff]
      %v565 = vld [vmem:[#allocation3 + $0x10] sm:$0xff]
      %v566 = vld [vmem:[#allocation3 + $0x18] sm:$0xff]
      %v567 = vld [vmem:[#allocation3 + $0x20] sm:$0xff]
      %v568 = vld [vmem:[#allocation3 + $0x28] sm:$0xff]
      %v569 = vld [vmem:[#allocation3 + $0x30] sm:$0xff]
      %v570 = vld [vmem:[#allocation3 + $0x38] sm:$0xff]
      %v571 = vld [vmem:[#allocation3 + $0x40] sm:$0xff]
      %v572 = vld [vmem:[#allocation3 + $0x48] sm:$0xff]
      %v573 = vld [vmem:[#allocation3 + $0x50] sm:$0xff]
      %v574 = vld [vmem:[#allocation3 + $0x58] sm:$0xff]
      %v575 = vld [vmem:[#allocation3 + $0x60] sm:$0xff]
      %v576 = vld [vmem:[#allocation3 + $0x68] sm:$0xff]
      %v577 = vld [vmem:[#allocation3 + $0x70] sm:$0xff]
      %v578 = vld [vmem:[#allocation3 + $0x78] sm:$0xff]
      %v579 = vld [vmem:[%s5] sm:$0x1]
      %v581 = vlaneseq
      %v582 = vshrl.u32 %v581, 7
      %v583 = vsub.s32 0, %v582
      %v584 = vrot.slane %v579, %v583
      %v586 = vadd.f32 %v563, %v584
      %v587 = vadd.f32 %v564, %v584
      %v588 = vadd.f32 %v565, %v584
      %v589 = vadd.f32 %v566, %v584
      %v590 = vadd.f32 %v567, %v584
      %v591 = vadd.f32 %v568, %v584
      %v592 = vadd.f32 %v569, %v584
      %v593 = vadd.f32 %v570, %v584
      %v594 = vadd.f32 %v571, %v584
      %v595 = vadd.f32 %v572, %v584
      %v596 = vadd.f32 %v573, %v584
      %v597 = vadd.f32 %v574, %v584
      %v598 = vadd.f32 %v575, %v584
      %v599 = vadd.f32 %v576, %v584
      %v600 = vadd.f32 %v577, %v584
      %v601 = vadd.f32 %v578, %v584
      %vm602 = vcmp.ge.f32.partialorder %v547, 0.0
      %vm603 = vcmp.ge.f32.partialorder %v548, 0.0
      %vm604 = vcmp.ge.f32.partialorder %v549, 0.0
      %vm605 = vcmp.ge.f32.partialorder %v550, 0.0
      %vm606 = vcmp.ge.f32.partialorder %v551, 0.0
      %vm607 = vcmp.ge.f32.partialorder %v552, 0.0
      %vm608 = vcmp.ge.f32.partialorder %v553, 0.0
      %vm609 = vcmp.ge.f32.partialorder %v554, 0.0
      %vm610 = vcmp.ge.f32.partialorder %v555, 0.0
      %vm611 = vcmp.ge.f32.partialorder %v556, 0.0
      %vm612 = vcmp.ge.f32.partialorder %v557, 0.0
      %vm613 = vcmp.ge.f32.partialorder %v558, 0.0
      %vm614 = vcmp.ge.f32.partialorder %v559, 0.0
      %vm615 = vcmp.ge.f32.partialorder %v560, 0.0
      %vm616 = vcmp.ge.f32.partialorder %v561, 0.0
      %vm617 = vcmp.ge.f32.partialorder %v562, 0.0
      %v618 = vsel %vm602, %v547, 0.0
      %v619 = vsel %vm603, %v548, 0.0
      %v620 = vsel %vm604, %v549, 0.0
      %v621 = vsel %vm605, %v550, 0.0
      %v622 = vsel %vm606, %v551, 0.0
      %v623 = vsel %vm607, %v552, 0.0
      %v624 = vsel %vm608, %v553, 0.0
      %v625 = vsel %vm609, %v554, 0.0
      %v626 = vsel %vm610, %v555, 0.0
      %v627 = vsel %vm611, %v556, 0.0
      %v628 = vsel %vm612, %v557, 0.0
      %v629 = vsel %vm613, %v558, 0.0
      %v630 = vsel %vm614, %v559, 0.0
      %v631 = vsel %vm615, %v560, 0.0
      %v632 = vsel %vm616, %v561, 0.0
      %v633 = vsel %vm617, %v562, 0.0
      %v634 = vsel %vm602, %v586, 0.0
      %v635 = vsel %vm603, %v587, 0.0
      %v636 = vsel %vm604, %v588, 0.0
      %v637 = vsel %vm605, %v589, 0.0
      %v638 = vsel %vm606, %v590, 0.0
      %v639 = vsel %vm607, %v591, 0.0
      %v640 = vsel %vm608, %v592, 0.0
      %v641 = vsel %vm609, %v593, 0.0
      %v642 = vsel %vm610, %v594, 0.0
      %v643 = vsel %vm611, %v595, 0.0
      %v644 = vsel %vm612, %v596, 0.0
      %v645 = vsel %vm613, %v597, 0.0
      %v646 = vsel %vm614, %v598, 0.0
      %v647 = vsel %vm615, %v599, 0.0
      %v648 = vsel %vm616, %v600, 0.0
      %v649 = vsel %vm617, %v601, 0.0
      %650 = vst [vmem:[#allocation4] sm:$0xff] %v618
      %651 = vst [vmem:[#allocation4 + $0x8] sm:$0xff] %v619
      %652 = vst [vmem:[#allocation4 + $0x10] sm:$0xff] %v620
      %653 = vst [vmem:[#allocation4 + $0x18] sm:$0xff] %v621
      %654 = vst [vmem:[#allocation4 + $0x20] sm:$0xff] %v622
      %655 = vst [vmem:[#allocation4 + $0x28] sm:$0xff] %v623
      %656 = vst [vmem:[#allocation4 + $0x30] sm:$0xff] %v624
      %657 = vst [vmem:[#allocation4 + $0x38] sm:$0xff] %v625
      %658 = vst [vmem:[#allocation4 + $0x40] sm:$0xff] %v626
      %659 = vst [vmem:[#allocation4 + $0x48] sm:$0xff] %v627
      %660 = vst [vmem:[#allocation4 + $0x50] sm:$0xff] %v628
      %661 = vst [vmem:[#allocation4 + $0x58] sm:$0xff] %v629
      %662 = vst [vmem:[#allocation4 + $0x60] sm:$0xff] %v630
      %663 = vst [vmem:[#allocation4 + $0x68] sm:$0xff] %v631
      %664 = vst [vmem:[#allocation4 + $0x70] sm:$0xff] %v632
      %665 = vst [vmem:[#allocation4 + $0x78] sm:$0xff] %v633
      %666 = vst [vmem:[#allocation6] sm:$0xff] %v634
      %667 = vst [vmem:[#allocation6 + $0x8] sm:$0xff] %v635
      %668 = vst [vmem:[#allocation6 + $0x10] sm:$0xff] %v636
      %669 = vst [vmem:[#allocation6 + $0x18] sm:$0xff] %v637
      %670 = vst [vmem:[#allocation6 + $0x20] sm:$0xff] %v638
      %671 = vst [vmem:[#allocation6 + $0x28] sm:$0xff] %v639
      %672 = vst [vmem:[#allocation6 + $0x30] sm:$0xff] %v640
      %673 = vst [vmem:[#allocation6 + $0x38] sm:$0xff] %v641
      %674 = vst [vmem:[#allocation6 + $0x40] sm:$0xff] %v642
      %675 = vst [vmem:[#allocation6 + $0x48] sm:$0xff] %v643
      %676 = vst [vmem:[#allocation6 + $0x50] sm:$0xff] %v644
      %677 = vst [vmem:[#allocation6 + $0x58] sm:$0xff] %v645
      %678 = vst [vmem:[#allocation6 + $0x60] sm:$0xff] %v646
      %679 = vst [vmem:[#allocation6 + $0x68] sm:$0xff] %v647
      %680 = vst [vmem:[#allocation6 + $0x70] sm:$0xff] %v648
      %681 = vst [vmem:[#allocation6 + $0x78] sm:$0xff] %v649
      %v682 = vld [vmem:[%s6] sm:$0xff]
      %v683 = vld [vmem:[%s6 + $0x8] sm:$0xff]
      %v684 = vld [vmem:[%s6 + $0x10] sm:$0xff]
      %v685 = vld [vmem:[%s6 + $0x18] sm:$0xff]
      %v686 = vld [vmem:[%s6 + $0x20] sm:$0xff]
      %v687 = vld [vmem:[%s6 + $0x28] sm:$0xff]
      %v688 = vld [vmem:[%s6 + $0x30] sm:$0xff]
      %v689 = vld [vmem:[%s6 + $0x38] sm:$0xff]
      %v690 = vld [vmem:[%s6 + $0x40] sm:$0xff]
      %v691 = vld [vmem:[%s6 + $0x48] sm:$0xff]
      %v692 = vld [vmem:[%s6 + $0x50] sm:$0xff]
      %v693 = vld [vmem:[%s6 + $0x58] sm:$0xff]
      %v694 = vld [vmem:[%s6 + $0x60] sm:$0xff]
      %v695 = vld [vmem:[%s6 + $0x68] sm:$0xff]
      %v696 = vld [vmem:[%s6 + $0x70] sm:$0xff]
      %v697 = vld [vmem:[%s6 + $0x78] sm:$0xff]
      %v698 = vadd.f32 %v618, %v682
      %v699 = vadd.f32 %v619, %v683
      %v700 = vadd.f32 %v620, %v684
      %v701 = vadd.f32 %v621, %v685
      %v702 = vadd.f32 %v622, %v686
      %v703 = vadd.f32 %v623, %v687
      %v704 = vadd.f32 %v624, %v688
      %v705 = vadd.f32 %v625, %v689
      %v706 = vadd.f32 %v626, %v690
      %v707 = vadd.f32 %v627, %v691
      %v708 = vadd.f32 %v628, %v692
      %v709 = vadd.f32 %v629, %v693
      %v710 = vadd.f32 %v630, %v694
      %v711 = vadd.f32 %v631, %v695
      %v712 = vadd.f32 %v632, %v696
      %v713 = vadd.f32 %v633, %v697
      %714 = vst [vmem:[%s8] sm:$0xff] %v698
      %715 = vst [vmem:[%s8 + $0x8] sm:$0xff] %v699
      %716 = vst [vmem:[%s8 + $0x10] sm:$0xff] %v700
      %717 = vst [vmem:[%s8 + $0x18] sm:$0xff] %v701
      %718 = vst [vmem:[%s8 + $0x20] sm:$0xff] %v702
      %719 = vst [vmem:[%s8 + $0x28] sm:$0xff] %v703
      %720 = vst [vmem:[%s8 + $0x30] sm:$0xff] %v704
      %721 = vst [vmem:[%s8 + $0x38] sm:$0xff] %v705
      %722 = vst [vmem:[%s8 + $0x40] sm:$0xff] %v706
      %723 = vst [vmem:[%s8 + $0x48] sm:$0xff] %v707
      %724 = vst [vmem:[%s8 + $0x50] sm:$0xff] %v708
      %725 = vst [vmem:[%s8 + $0x58] sm:$0xff] %v709
      %726 = vst [vmem:[%s8 + $0x60] sm:$0xff] %v710
      %727 = vst [vmem:[%s8 + $0x68] sm:$0xff] %v711
      %728 = vst [vmem:[%s8 + $0x70] sm:$0xff] %v712
      %729 = vst [vmem:[%s8 + $0x78] sm:$0xff] %v713
      %v730 = vld [vmem:[%s7] sm:$0xff]
      %v731 = vld [vmem:[%s7 + $0x8] sm:$0xff]
      %v732 = vld [vmem:[%s7 + $0x10] sm:$0xff]
      %v733 = vld [vmem:[%s7 + $0x18] sm:$0xff]
      %v734 = vld [vmem:[%s7 + $0x20] sm:$0xff]
      %v735 = vld [vmem:[%s7 + $0x28] sm:$0xff]
      %v736 = vld [vmem:[%s7 + $0x30] sm:$0xff]
      %v737 = vld [vmem:[%s7 + $0x38] sm:$0xff]
      %v738 = vld [vmem:[%s7 + $0x40] sm:$0xff]
      %v739 = vld [vmem:[%s7 + $0x48] sm:$0xff]
      %v740 = vld [vmem:[%s7 + $0x50] sm:$0xff]
      %v741 = vld [vmem:[%s7 + $0x58] sm:$0xff]
      %v742 = vld [vmem:[%s7 + $0x60] sm:$0xff]
      %v743 = vld [vmem:[%s7 + $0x68] sm:$0xff]
      %v744 = vld [vmem:[%s7 + $0x70] sm:$0xff]
      %v745 = vld [vmem:[%s7 + $0x78] sm:$0xff]
      %v746 = vadd.f32 %v634, %v730
      %v747 = vadd.f32 %v635, %v731
      %v748 = vadd.f32 %v636, %v732
      %v749 = vadd.f32 %v637, %v733
      %v750 = vadd.f32 %v638, %v734
      %v751 = vadd.f32 %v639, %v735
      %v752 = vadd.f32 %v640, %v736
      %v753 = vadd.f32 %v641, %v737
      %v754 = vadd.f32 %v642, %v738
      %v755 = vadd.f32 %v643, %v739
      %v756 = vadd.f32 %v644, %v740
      %v757 = vadd.f32 %v645, %v741
      %v758 = vadd.f32 %v646, %v742
      %v759 = vadd.f32 %v647, %v743
      %v760 = vadd.f32 %v648, %v744
      %v761 = vadd.f32 %v649, %v745
      %762 = vst [vmem:[%s9] sm:$0xff] %v746
      %763 = vst [vmem:[%s9 + $0x8] sm:$0xff] %v747
      %764 = vst [vmem:[%s9 + $0x10] sm:$0xff] %v748
      %765 = vst [vmem:[%s9 + $0x18] sm:$0xff] %v749
      %766 = vst [vmem:[%s9 + $0x20] sm:$0xff] %v750
      %767 = vst [vmem:[%s9 + $0x28] sm:$0xff] %v751
      %768 = vst [vmem:[%s9 + $0x30] sm:$0xff] %v752
      %769 = vst [vmem:[%s9 + $0x38] sm:$0xff] %v753
      %770 = vst [vmem:[%s9 + $0x40] sm:$0xff] %v754
      %771 = vst [vmem:[%s9 + $0x48] sm:$0xff] %v755
      %772 = vst [vmem:[%s9 + $0x50] sm:$0xff] %v756
      %773 = vst [vmem:[%s9 + $0x58] sm:$0xff] %v757
      %774 = vst [vmem:[%s9 + $0x60] sm:$0xff] %v758
      %775 = vst [vmem:[%s9 + $0x68] sm:$0xff] %v759
      %776 = vst [vmem:[%s9 + $0x70] sm:$0xff] %v760
      %777 = vst [vmem:[%s9 + $0x78] sm:$0xff] %v761
    $region41: #{com_res_mlp_forward.6} parent=1 // pred_fallthru
      _
    // Predicated region
    $region42: #{com_res_mlp_forward.6} parent=1 // pred_check
      _
    $region43: #{com_res_mlp_forward.6} parent=1 // pred_check_branch
      %779 = sbr.rel (0) target = $region45
    $region44: #{com_res_mlp_forward.6} parent=1 // pred_region
      _
    $region45: #{com_res_mlp_forward.6} parent=1 // pred_fallthru
      _
    // Predicated region
    $region46: #{com_res_mlp_forward.6} parent=1 // pred_check
      _
    $region47: #{com_res_mlp_forward.6} parent=1 // pred_check_branch
      %781 = sbr.rel (0) target = $region49
    $region48: #{com_res_mlp_forward.6} parent=1 // pred_region
      _
    $region49: #{com_res_mlp_forward.6} parent=1 // pred_fallthru
      _
    // Predicated region
    $region50: #{com_res_mlp_forward.6} parent=1 // pred_check
      _
    $region51: #{com_res_mlp_forward.6} parent=1 // pred_check_branch
      %783 = sbr.rel (0) target = $region53
    $region52: #{com_res_mlp_forward.6} parent=1 // pred_region
      %s785 = ssub.s32 2048, 2048
      %786 = vsyncadd [#allocation5], %s785
      %s787 = sshll.u32 [#allocation4], 4
      %s788 = int_to_ptr.vmem [resolvable:$true] %s787
      %793 = dma.vmem_to_hbm [thread:$0]  %s788, 2048, %s10, [#allocation5], 128, 128, 8
    $region53: #{com_res_mlp_forward.6} parent=1 // pred_fallthru
      _
    // Predicated region
    $region54: #{com_res_mlp_forward.6} parent=1 // pred_check
      _
    $region55: #{com_res_mlp_forward.6} parent=1 // pred_check_branch
      %795 = sbr.rel (0) target = $region57
    $region56: #{com_res_mlp_forward.6} parent=1 // pred_region
      %s797 = ssub.s32 2048, 2048
      %798 = vsyncadd [#allocation7], %s797
      %s799 = sshll.u32 [#allocation6], 4
      %s800 = int_to_ptr.vmem [resolvable:$true] %s799
      %805 = dma.vmem_to_hbm [thread:$0]  %s800, 2048, %s11, [#allocation7], 128, 128, 8
    $region57: #{com_res_mlp_forward.6} parent=1 // pred_fallthru
      _
    // Predicated region
    $region58: #{com_res_mlp_forward.6} parent=1 // pred_check
      _
    $region59: #{com_res_mlp_forward.6} parent=1 // pred_check_branch
      %807 = sbr.rel (0) target = $region61
    $region60: #{com_res_mlp_forward.6} parent=1 // pred_region
      _
    $region61: #{com_res_mlp_forward.6} parent=1 // pred_fallthru
      _
    // Predicated region
    $region62: #{com_res_mlp_forward.6} parent=1 // pred_check
      _
    $region63: #{com_res_mlp_forward.6} parent=1 // pred_check_branch
      %809 = sbr.rel (0) target = $region65
    $region64: #{com_res_mlp_forward.6} parent=1 // pred_region
      _
    $region65: #{com_res_mlp_forward.6} parent=1 // pred_fallthru
      _
    // Predicated region
    $region66: #{com_res_mlp_forward.6} parent=1 // pred_check
      _
    $region67: #{com_res_mlp_forward.6} parent=1 // pred_check_branch
      %811 = sbr.rel (0) target = $region69
    $region68: #{com_res_mlp_forward.6} parent=1 // pred_region
      %812 = dma.done [#allocation5], 2048
    $region69: #{com_res_mlp_forward.6} parent=1 // pred_fallthru
      _
    // Predicated region
    $region70: #{com_res_mlp_forward.6} parent=1 // pred_check
      _
    $region71: #{com_res_mlp_forward.6} parent=1 // pred_check_branch
      %814 = sbr.rel (0) target = $region73
    $region72: #{com_res_mlp_forward.6} parent=1 // pred_region
      %815 = dma.done [#allocation7], 2048
    $region73: #{com_res_mlp_forward.6} parent=1 // pred_fallthru
      _
    %816 = vsyncpa [#allocation5], 1
    %817 = vsyncpa [#allocation7], 1

// kernel: com_res_mlp_forward.4
$region0: #{com_res_mlp_forward.4}
  #allocation0 [shape = 'u32[]', space=smem, size = 0x4, offset = 0x4, fixed_abs, tag = 'smem constant byte address 0x4 - core index']
  #allocation1 [shape = 'u32[144,128]{1,0:T(1,128)}', space=vmem, size = 0x12000, scoped, tag = 'internal scratch']
  #allocation2 [shape = 'f32[128,128]{1,0:T(8,128)}', space=vmem, size = 0x10000, scoped, tag = 'scratch operand']
  #allocation3 [shape = 'f32[128,128]{1,0:T(8,128)}', space=vmem, size = 0x10000, scoped, tag = 'scratch operand']
  %s0 = inlined_call_operand.vmem [shape: f32[128,128], index: 0, kind: input, shape index: {}]
  %s1 = inlined_call_operand.vmem [shape: f32[128,128], index: 1, kind: input, shape index: {}]
  %s2 = inlined_call_operand.vmem [shape: f32[128,128], index: 2, kind: input, shape index: {}]
  %s3 = inlined_call_operand.vmem [shape: f32[128,128], index: 3, kind: input, shape index: {}]
  %s4 = inlined_call_operand.vmem [shape: f32[1,128], index: 4, kind: input, shape index: {}]
  %s5 = inlined_call_operand.vmem [shape: f32[1,128], index: 5, kind: input, shape index: {}]
  %s6 = inlined_call_operand.vmem [shape: f32[128,128], index: 6, kind: output, shape index: {0}]
  %s7 = inlined_call_operand.vmem [shape: f32[128,128], index: 7, kind: output, shape index: {1}]
  %8 = xla_tuple %s6, %s7
  %s9 = sld [smem:[#allocation0]]
  $region50: #{com_res_mlp_forward.4} parent=0
    _
  %s11 = ssub.s32 1, %s9
  %s12 = scalar_select 0, %s11, %s9
  // Predicated region
  $region2: #{com_res_mlp_forward.4} parent=0 // pred_check
    _
  $region3: #{com_res_mlp_forward.4} parent=0 // pred_check_branch
    %14 = sbr.rel (0) target = $region5
  $region4: #{com_res_mlp_forward.4} parent=0 // pred_region
    _
  $region5: #{com_res_mlp_forward.4} parent=0 // pred_fallthru
    _
  // Predicated region
  $region6: #{com_res_mlp_forward.4} parent=0 // pred_check
    _
  $region7: #{com_res_mlp_forward.4} parent=0 // pred_check_branch
    %16 = sbr.rel (0) target = $region9
  $region8: #{com_res_mlp_forward.4} parent=0 // pred_region
    _
  $region9: #{com_res_mlp_forward.4} parent=0 // pred_fallthru
    _
  // Predicated region
  $region10: #{com_res_mlp_forward.4} parent=0 // pred_check
    _
  $region11: #{com_res_mlp_forward.4} parent=0 // pred_check_branch
    %18 = sbr.rel (0) target = $region13
  $region12: #{com_res_mlp_forward.4} parent=0 // pred_region
    _
  $region13: #{com_res_mlp_forward.4} parent=0 // pred_fallthru
    _
  // Predicated region
  $region14: #{com_res_mlp_forward.4} parent=0 // pred_check
    _
  $region15: #{com_res_mlp_forward.4} parent=0 // pred_check_branch
    %20 = sbr.rel (0) target = $region17
  $region16: #{com_res_mlp_forward.4} parent=0 // pred_region
    _
  $region17: #{com_res_mlp_forward.4} parent=0 // pred_fallthru
    _
  // Predicated region
  $region18: #{com_res_mlp_forward.4} parent=0 // pred_check
    _
  $region19: #{com_res_mlp_forward.4} parent=0 // pred_check_branch
    %22 = sbr.rel (0) target = $region21
  $region20: #{com_res_mlp_forward.4} parent=0 // pred_region
    _
  $region21: #{com_res_mlp_forward.4} parent=0 // pred_fallthru
    _
  // Predicated region
  $region22: #{com_res_mlp_forward.4} parent=0 // pred_check
    _
  $region23: #{com_res_mlp_forward.4} parent=0 // pred_check_branch
    %24 = sbr.rel (0) target = $region25
  $region24: #{com_res_mlp_forward.4} parent=0 // pred_region
    _
  $region25: #{com_res_mlp_forward.4} parent=0 // pred_fallthru
    _
  %p25 = scmp.eq.s32.totalorder 0, 0
  // Predicated region
  $region26: #{com_res_mlp_forward.4} parent=0 // pred_check
    %p26 = pneg %p25
  $region27: #{com_res_mlp_forward.4} parent=0 // pred_check_branch
    %28 = sbr.rel (%p26) target = $region29
  $region28: #{com_res_mlp_forward.4} parent=0 // pred_region
    %29 = vst [vmem:[#allocation2] sm:$0xff] 0.0
    %30 = vst [vmem:[#allocation2 + $0x8] sm:$0xff] 0.0
    %31 = vst [vmem:[#allocation2 + $0x10] sm:$0xff] 0.0
    %32 = vst [vmem:[#allocation2 + $0x18] sm:$0xff] 0.0
    %33 = vst [vmem:[#allocation2 + $0x20] sm:$0xff] 0.0
    %34 = vst [vmem:[#allocation2 + $0x28] sm:$0xff] 0.0
    %35 = vst [vmem:[#allocation2 + $0x30] sm:$0xff] 0.0
    %36 = vst [vmem:[#allocation2 + $0x38] sm:$0xff] 0.0
    %37 = vst [vmem:[#allocation2 + $0x40] sm:$0xff] 0.0
    %38 = vst [vmem:[#allocation2 + $0x48] sm:$0xff] 0.0
    %39 = vst [vmem:[#allocation2 + $0x50] sm:$0xff] 0.0
    %40 = vst [vmem:[#allocation2 + $0x58] sm:$0xff] 0.0
    %41 = vst [vmem:[#allocation2 + $0x60] sm:$0xff] 0.0
    %42 = vst [vmem:[#allocation2 + $0x68] sm:$0xff] 0.0
    %43 = vst [vmem:[#allocation2 + $0x70] sm:$0xff] 0.0
    %44 = vst [vmem:[#allocation2 + $0x78] sm:$0xff] 0.0
    %45 = vst [vmem:[#allocation3] sm:$0xff] 0.0
    %46 = vst [vmem:[#allocation3 + $0x8] sm:$0xff] 0.0
    %47 = vst [vmem:[#allocation3 + $0x10] sm:$0xff] 0.0
    %48 = vst [vmem:[#allocation3 + $0x18] sm:$0xff] 0.0
    %49 = vst [vmem:[#allocation3 + $0x20] sm:$0xff] 0.0
    %50 = vst [vmem:[#allocation3 + $0x28] sm:$0xff] 0.0
    %51 = vst [vmem:[#allocation3 + $0x30] sm:$0xff] 0.0
    %52 = vst [vmem:[#allocation3 + $0x38] sm:$0xff] 0.0
    %53 = vst [vmem:[#allocation3 + $0x40] sm:$0xff] 0.0
    %54 = vst [vmem:[#allocation3 + $0x48] sm:$0xff] 0.0
    %55 = vst [vmem:[#allocation3 + $0x50] sm:$0xff] 0.0
    %56 = vst [vmem:[#allocation3 + $0x58] sm:$0xff] 0.0
    %57 = vst [vmem:[#allocation3 + $0x60] sm:$0xff] 0.0
    %58 = vst [vmem:[#allocation3 + $0x68] sm:$0xff] 0.0
    %59 = vst [vmem:[#allocation3 + $0x70] sm:$0xff] 0.0
    %60 = vst [vmem:[#allocation3 + $0x78] sm:$0xff] 0.0
  $region29: #{com_res_mlp_forward.4} parent=0 // pred_fallthru
    _
  %v61 = vld [vmem:[#allocation2] sm:$0xff]
  %v62 = vld [vmem:[#allocation2 + $0x8] sm:$0xff]
  %v63 = vld [vmem:[#allocation2 + $0x10] sm:$0xff]
  %v64 = vld [vmem:[#allocation2 + $0x18] sm:$0xff]
  %v65 = vld [vmem:[#allocation2 + $0x20] sm:$0xff]
  %v66 = vld [vmem:[#allocation2 + $0x28] sm:$0xff]
  %v67 = vld [vmem:[#allocation2 + $0x30] sm:$0xff]
  %v68 = vld [vmem:[#allocation2 + $0x38] sm:$0xff]
  %v69 = vld [vmem:[#allocation2 + $0x40] sm:$0xff]
  %v70 = vld [vmem:[#allocation2 + $0x48] sm:$0xff]
  %v71 = vld [vmem:[#allocation2 + $0x50] sm:$0xff]
  %v72 = vld [vmem:[#allocation2 + $0x58] sm:$0xff]
  %v73 = vld [vmem:[#allocation2 + $0x60] sm:$0xff]
  %v74 = vld [vmem:[#allocation2 + $0x68] sm:$0xff]
  %v75 = vld [vmem:[#allocation2 + $0x70] sm:$0xff]
  %v76 = vld [vmem:[#allocation2 + $0x78] sm:$0xff]
  %v77 = vld [vmem:[%s0] sm:$0xff]
  %v78 = vld [vmem:[%s0 + $0x8] sm:$0xff]
  %v79 = vld [vmem:[%s0 + $0x10] sm:$0xff]
  %v80 = vld [vmem:[%s0 + $0x18] sm:$0xff]
  %v81 = vld [vmem:[%s0 + $0x20] sm:$0xff]
  %v82 = vld [vmem:[%s0 + $0x28] sm:$0xff]
  %v83 = vld [vmem:[%s0 + $0x30] sm:$0xff]
  %v84 = vld [vmem:[%s0 + $0x38] sm:$0xff]
  %v85 = vld [vmem:[%s0 + $0x40] sm:$0xff]
  %v86 = vld [vmem:[%s0 + $0x48] sm:$0xff]
  %v87 = vld [vmem:[%s0 + $0x50] sm:$0xff]
  %v88 = vld [vmem:[%s0 + $0x58] sm:$0xff]
  %v89 = vld [vmem:[%s0 + $0x60] sm:$0xff]
  %v90 = vld [vmem:[%s0 + $0x68] sm:$0xff]
  %v91 = vld [vmem:[%s0 + $0x70] sm:$0xff]
  %v92 = vld [vmem:[%s0 + $0x78] sm:$0xff]
  %v93 = vld [vmem:[%s2] sm:$0xff]
  %v94 = vld [vmem:[%s2 + $0x8] sm:$0xff]
  %v95 = vld [vmem:[%s2 + $0x10] sm:$0xff]
  %v96 = vld [vmem:[%s2 + $0x18] sm:$0xff]
  %v97 = vld [vmem:[%s2 + $0x20] sm:$0xff]
  %v98 = vld [vmem:[%s2 + $0x28] sm:$0xff]
  %v99 = vld [vmem:[%s2 + $0x30] sm:$0xff]
  %v100 = vld [vmem:[%s2 + $0x38] sm:$0xff]
  %v101 = vld [vmem:[%s2 + $0x40] sm:$0xff]
  %v102 = vld [vmem:[%s2 + $0x48] sm:$0xff]
  %v103 = vld [vmem:[%s2 + $0x50] sm:$0xff]
  %v104 = vld [vmem:[%s2 + $0x58] sm:$0xff]
  %v105 = vld [vmem:[%s2 + $0x60] sm:$0xff]
  %v106 = vld [vmem:[%s2 + $0x68] sm:$0xff]
  %v107 = vld [vmem:[%s2 + $0x70] sm:$0xff]
  %v108 = vld [vmem:[%s2 + $0x78] sm:$0xff]
  %109 = vmatprep.subr.mxu0 0.0
  %110 = vmatpush1.msra.mxu0 %v108
  %111 = vmatprep.subr.mxu0 0.0
  %112 = vmatpush1.msra.mxu0 %v107
  %113 = vmatprep.subr.mxu0 0.0
  %114 = vmatpush1.msra.mxu0 %v106
  %115 = vmatprep.subr.mxu0 0.0
  %116 = vmatpush1.msra.mxu0 %v105
  %117 = vmatprep.subr.mxu0 0.0
  %118 = vmatpush1.msra.mxu0 %v104
  %119 = vmatprep.subr.mxu0 0.0
  %120 = vmatpush1.msra.mxu0 %v103
  %121 = vmatprep.subr.mxu0 0.0
  %122 = vmatpush1.msra.mxu0 %v102
  %123 = vmatprep.subr.mxu0 0.0
  %124 = vmatpush1.msra.mxu0 %v101
  %125 = vmatprep.subr.mxu0 0.0
  %126 = vmatpush1.msra.mxu0 %v100
  %127 = vmatprep.subr.mxu0 0.0
  %128 = vmatpush1.msra.mxu0 %v99
  %129 = vmatprep.subr.mxu0 0.0
  %130 = vmatpush1.msra.mxu0 %v98
  %131 = vmatprep.subr.mxu0 0.0
  %132 = vmatpush1.msra.mxu0 %v97
  %133 = vmatprep.subr.mxu0 0.0
  %134 = vmatpush1.msra.mxu0 %v96
  %135 = vmatprep.subr.mxu0 0.0
  %136 = vmatpush1.msra.mxu0 %v95
  %137 = vmatprep.subr.mxu0 0.0
  %138 = vmatpush1.msra.mxu0 %v94
  %139 = vmatprep.subr.mxu0 0.0
  %140 = vmatpush1.msra.mxu0 %v93
  %141 = vmatprep.subr.mxu0 0.0
  %142 = vmatpush2.msra.mxu0 0.0
  %143 = vmatprep.subr.mxu0 0.0
  %144 = vmatpush2.msra.mxu0 0.0
  %145 = vmatprep.subr.mxu0 0.0
  %146 = vmatpush2.msra.mxu0 0.0
  %147 = vmatprep.subr.mxu0 0.0
  %148 = vmatpush2.msra.mxu0 0.0
  %149 = vmatprep.subr.mxu0 0.0
  %150 = vmatpush2.msra.mxu0 0.0
  %151 = vmatprep.subr.mxu0 0.0
  %152 = vmatpush2.msra.mxu0 0.0
  %153 = vmatprep.subr.mxu0 0.0
  %154 = vmatpush2.msra.mxu0 0.0
  %155 = vmatprep.subr.mxu0 0.0
  %156 = vmatpush2.msra.mxu0 0.0
  %157 = vmatprep.subr.mxu0 0.0
  %158 = vmatpush2.msra.mxu0 0.0
  %159 = vmatprep.subr.mxu0 0.0
  %160 = vmatpush2.msra.mxu0 0.0
  %161 = vmatprep.subr.mxu0 0.0
  %162 = vmatpush2.msra.mxu0 0.0
  %163 = vmatprep.subr.mxu0 0.0
  %164 = vmatpush2.msra.mxu0 0.0
  %165 = vmatprep.subr.mxu0 0.0
  %166 = vmatpush2.msra.mxu0 0.0
  %167 = vmatprep.subr.mxu0 0.0
  %168 = vmatpush2.msra.mxu0 0.0
  %169 = vmatprep.subr.mxu0 0.0
  %170 = vmatpush2.msra.mxu0 0.0
  %171 = vmatprep.subr.mxu0 0.0
  %172 = vmatpush2.msra.mxu0 0.0
  %173 = vmatprep.mubr.f32.mxu0 0.0
  %174 = vmatmul.mubr.f32.gmra.mxu0 %v77
  %v175 = vpop.f32.mrf.mxu0
  %v176 = vadd.f32 0.0, %v175
  %v177 = vpop.f32.mrf.mxu0
  %178 = vmatprep.mubr.f32.mxu0 0.0
  %179 = vmatmul.mubr.f32.gmra.mxu0 %v78
  %v180 = vpop.f32.mrf.mxu0
  %v181 = vadd.f32 0.0, %v180
  %v182 = vpop.f32.mrf.mxu0
  %183 = vmatprep.mubr.f32.mxu0 0.0
  %184 = vmatmul.mubr.f32.gmra.mxu0 %v79
  %v185 = vpop.f32.mrf.mxu0
  %v186 = vadd.f32 0.0, %v185
  %v187 = vpop.f32.mrf.mxu0
  %188 = vmatprep.mubr.f32.mxu0 0.0
  %189 = vmatmul.mubr.f32.gmra.mxu0 %v80
  %v190 = vpop.f32.mrf.mxu0
  %v191 = vadd.f32 0.0, %v190
  %v192 = vpop.f32.mrf.mxu0
  %193 = vmatprep.mubr.f32.mxu0 0.0
  %194 = vmatmul.mubr.f32.gmra.mxu0 %v81
  %v195 = vpop.f32.mrf.mxu0
  %v196 = vadd.f32 0.0, %v195
  %v197 = vpop.f32.mrf.mxu0
  %198 = vmatprep.mubr.f32.mxu0 0.0
  %199 = vmatmul.mubr.f32.gmra.mxu0 %v82
  %v200 = vpop.f32.mrf.mxu0
  %v201 = vadd.f32 0.0, %v200
  %v202 = vpop.f32.mrf.mxu0
  %203 = vmatprep.mubr.f32.mxu0 0.0
  %204 = vmatmul.mubr.f32.gmra.mxu0 %v83
  %v205 = vpop.f32.mrf.mxu0
  %v206 = vadd.f32 0.0, %v205
  %v207 = vpop.f32.mrf.mxu0
  %208 = vmatprep.mubr.f32.mxu0 0.0
  %209 = vmatmul.mubr.f32.gmra.mxu0 %v84
  %v210 = vpop.f32.mrf.mxu0
  %v211 = vadd.f32 0.0, %v210
  %v212 = vpop.f32.mrf.mxu0
  %213 = vmatprep.mubr.f32.mxu0 0.0
  %214 = vmatmul.mubr.f32.gmra.mxu0 %v85
  %v215 = vpop.f32.mrf.mxu0
  %v216 = vadd.f32 0.0, %v215
  %v217 = vpop.f32.mrf.mxu0
  %218 = vmatprep.mubr.f32.mxu0 0.0
  %219 = vmatmul.mubr.f32.gmra.mxu0 %v86
  %v220 = vpop.f32.mrf.mxu0
  %v221 = vadd.f32 0.0, %v220
  %v222 = vpop.f32.mrf.mxu0
  %223 = vmatprep.mubr.f32.mxu0 0.0
  %224 = vmatmul.mubr.f32.gmra.mxu0 %v87
  %v225 = vpop.f32.mrf.mxu0
  %v226 = vadd.f32 0.0, %v225
  %v227 = vpop.f32.mrf.mxu0
  %228 = vmatprep.mubr.f32.mxu0 0.0
  %229 = vmatmul.mubr.f32.gmra.mxu0 %v88
  %v230 = vpop.f32.mrf.mxu0
  %v231 = vadd.f32 0.0, %v230
  %v232 = vpop.f32.mrf.mxu0
  %233 = vmatprep.mubr.f32.mxu0 0.0
  %234 = vmatmul.mubr.f32.gmra.mxu0 %v89
  %v235 = vpop.f32.mrf.mxu0
  %v236 = vadd.f32 0.0, %v235
  %v237 = vpop.f32.mrf.mxu0
  %238 = vmatprep.mubr.f32.mxu0 0.0
  %239 = vmatmul.mubr.f32.gmra.mxu0 %v90
  %v240 = vpop.f32.mrf.mxu0
  %v241 = vadd.f32 0.0, %v240
  %v242 = vpop.f32.mrf.mxu0
  %243 = vmatprep.mubr.f32.mxu0 0.0
  %244 = vmatmul.mubr.f32.gmra.mxu0 %v91
  %v245 = vpop.f32.mrf.mxu0
  %v246 = vadd.f32 0.0, %v245
  %v247 = vpop.f32.mrf.mxu0
  %248 = vmatprep.mubr.f32.mxu0 0.0
  %249 = vmatmul.mubr.f32.gmra.mxu0 %v92
  %v250 = vpop.f32.mrf.mxu0
  %v251 = vadd.f32 0.0, %v250
  %v252 = vpop.f32.mrf.mxu0
  %253 = vdwg.mxu0
  %v254 = vadd.f32 %v61, %v176
  %v255 = vadd.f32 %v62, %v181
  %v256 = vadd.f32 %v63, %v186
  %v257 = vadd.f32 %v64, %v191
  %v258 = vadd.f32 %v65, %v196
  %v259 = vadd.f32 %v66, %v201
  %v260 = vadd.f32 %v67, %v206
  %v261 = vadd.f32 %v68, %v211
  %v262 = vadd.f32 %v69, %v216
  %v263 = vadd.f32 %v70, %v221
  %v264 = vadd.f32 %v71, %v226
  %v265 = vadd.f32 %v72, %v231
  %v266 = vadd.f32 %v73, %v236
  %v267 = vadd.f32 %v74, %v241
  %v268 = vadd.f32 %v75, %v246
  %v269 = vadd.f32 %v76, %v251
  %270 = vst [vmem:[#allocation2] sm:$0xff] %v254
  %271 = vst [vmem:[#allocation2 + $0x8] sm:$0xff] %v255
  %272 = vst [vmem:[#allocation2 + $0x10] sm:$0xff] %v256
  %273 = vst [vmem:[#allocation2 + $0x18] sm:$0xff] %v257
  %274 = vst [vmem:[#allocation2 + $0x20] sm:$0xff] %v258
  %275 = vst [vmem:[#allocation2 + $0x28] sm:$0xff] %v259
  %276 = vst [vmem:[#allocation2 + $0x30] sm:$0xff] %v260
  %277 = vst [vmem:[#allocation2 + $0x38] sm:$0xff] %v261
  %278 = vst [vmem:[#allocation2 + $0x40] sm:$0xff] %v262
  %279 = vst [vmem:[#allocation2 + $0x48] sm:$0xff] %v263
  %280 = vst [vmem:[#allocation2 + $0x50] sm:$0xff] %v264
  %281 = vst [vmem:[#allocation2 + $0x58] sm:$0xff] %v265
  %282 = vst [vmem:[#allocation2 + $0x60] sm:$0xff] %v266
  %283 = vst [vmem:[#allocation2 + $0x68] sm:$0xff] %v267
  %284 = vst [vmem:[#allocation2 + $0x70] sm:$0xff] %v268
  %285 = vst [vmem:[#allocation2 + $0x78] sm:$0xff] %v269
  %v286 = vld [vmem:[#allocation3] sm:$0xff]
  %v287 = vld [vmem:[#allocation3 + $0x8] sm:$0xff]
  %v288 = vld [vmem:[#allocation3 + $0x10] sm:$0xff]
  %v289 = vld [vmem:[#allocation3 + $0x18] sm:$0xff]
  %v290 = vld [vmem:[#allocation3 + $0x20] sm:$0xff]
  %v291 = vld [vmem:[#allocation3 + $0x28] sm:$0xff]
  %v292 = vld [vmem:[#allocation3 + $0x30] sm:$0xff]
  %v293 = vld [vmem:[#allocation3 + $0x38] sm:$0xff]
  %v294 = vld [vmem:[#allocation3 + $0x40] sm:$0xff]
  %v295 = vld [vmem:[#allocation3 + $0x48] sm:$0xff]
  %v296 = vld [vmem:[#allocation3 + $0x50] sm:$0xff]
  %v297 = vld [vmem:[#allocation3 + $0x58] sm:$0xff]
  %v298 = vld [vmem:[#allocation3 + $0x60] sm:$0xff]
  %v299 = vld [vmem:[#allocation3 + $0x68] sm:$0xff]
  %v300 = vld [vmem:[#allocation3 + $0x70] sm:$0xff]
  %v301 = vld [vmem:[#allocation3 + $0x78] sm:$0xff]
  %v302 = vld [vmem:[%s1] sm:$0xff]
  %v303 = vld [vmem:[%s1 + $0x8] sm:$0xff]
  %v304 = vld [vmem:[%s1 + $0x10] sm:$0xff]
  %v305 = vld [vmem:[%s1 + $0x18] sm:$0xff]
  %v306 = vld [vmem:[%s1 + $0x20] sm:$0xff]
  %v307 = vld [vmem:[%s1 + $0x28] sm:$0xff]
  %v308 = vld [vmem:[%s1 + $0x30] sm:$0xff]
  %v309 = vld [vmem:[%s1 + $0x38] sm:$0xff]
  %v310 = vld [vmem:[%s1 + $0x40] sm:$0xff]
  %v311 = vld [vmem:[%s1 + $0x48] sm:$0xff]
  %v312 = vld [vmem:[%s1 + $0x50] sm:$0xff]
  %v313 = vld [vmem:[%s1 + $0x58] sm:$0xff]
  %v314 = vld [vmem:[%s1 + $0x60] sm:$0xff]
  %v315 = vld [vmem:[%s1 + $0x68] sm:$0xff]
  %v316 = vld [vmem:[%s1 + $0x70] sm:$0xff]
  %v317 = vld [vmem:[%s1 + $0x78] sm:$0xff]
  %v318 = vld [vmem:[%s3] sm:$0xff]
  %v319 = vld [vmem:[%s3 + $0x8] sm:$0xff]
  %v320 = vld [vmem:[%s3 + $0x10] sm:$0xff]
  %v321 = vld [vmem:[%s3 + $0x18] sm:$0xff]
  %v322 = vld [vmem:[%s3 + $0x20] sm:$0xff]
  %v323 = vld [vmem:[%s3 + $0x28] sm:$0xff]
  %v324 = vld [vmem:[%s3 + $0x30] sm:$0xff]
  %v325 = vld [vmem:[%s3 + $0x38] sm:$0xff]
  %v326 = vld [vmem:[%s3 + $0x40] sm:$0xff]
  %v327 = vld [vmem:[%s3 + $0x48] sm:$0xff]
  %v328 = vld [vmem:[%s3 + $0x50] sm:$0xff]
  %v329 = vld [vmem:[%s3 + $0x58] sm:$0xff]
  %v330 = vld [vmem:[%s3 + $0x60] sm:$0xff]
  %v331 = vld [vmem:[%s3 + $0x68] sm:$0xff]
  %v332 = vld [vmem:[%s3 + $0x70] sm:$0xff]
  %v333 = vld [vmem:[%s3 + $0x78] sm:$0xff]
  %334 = vmatprep.subr.mxu0 0.0
  %335 = vmatpush1.msra.mxu0 %v333
  %336 = vmatprep.subr.mxu0 0.0
  %337 = vmatpush1.msra.mxu0 %v332
  %338 = vmatprep.subr.mxu0 0.0
  %339 = vmatpush1.msra.mxu0 %v331
  %340 = vmatprep.subr.mxu0 0.0
  %341 = vmatpush1.msra.mxu0 %v330
  %342 = vmatprep.subr.mxu0 0.0
  %343 = vmatpush1.msra.mxu0 %v329
  %344 = vmatprep.subr.mxu0 0.0
  %345 = vmatpush1.msra.mxu0 %v328
  %346 = vmatprep.subr.mxu0 0.0
  %347 = vmatpush1.msra.mxu0 %v327
  %348 = vmatprep.subr.mxu0 0.0
  %349 = vmatpush1.msra.mxu0 %v326
  %350 = vmatprep.subr.mxu0 0.0
  %351 = vmatpush1.msra.mxu0 %v325
  %352 = vmatprep.subr.mxu0 0.0
  %353 = vmatpush1.msra.mxu0 %v324
  %354 = vmatprep.subr.mxu0 0.0
  %355 = vmatpush1.msra.mxu0 %v323
  %356 = vmatprep.subr.mxu0 0.0
  %357 = vmatpush1.msra.mxu0 %v322
  %358 = vmatprep.subr.mxu0 0.0
  %359 = vmatpush1.msra.mxu0 %v321
  %360 = vmatprep.subr.mxu0 0.0
  %361 = vmatpush1.msra.mxu0 %v320
  %362 = vmatprep.subr.mxu0 0.0
  %363 = vmatpush1.msra.mxu0 %v319
  %364 = vmatprep.subr.mxu0 0.0
  %365 = vmatpush1.msra.mxu0 %v318
  %366 = vmatprep.subr.mxu0 0.0
  %367 = vmatpush2.msra.mxu0 0.0
  %368 = vmatprep.subr.mxu0 0.0
  %369 = vmatpush2.msra.mxu0 0.0
  %370 = vmatprep.subr.mxu0 0.0
  %371 = vmatpush2.msra.mxu0 0.0
  %372 = vmatprep.subr.mxu0 0.0
  %373 = vmatpush2.msra.mxu0 0.0
  %374 = vmatprep.subr.mxu0 0.0
  %375 = vmatpush2.msra.mxu0 0.0
  %376 = vmatprep.subr.mxu0 0.0
  %377 = vmatpush2.msra.mxu0 0.0
  %378 = vmatprep.subr.mxu0 0.0
  %379 = vmatpush2.msra.mxu0 0.0
  %380 = vmatprep.subr.mxu0 0.0
  %381 = vmatpush2.msra.mxu0 0.0
  %382 = vmatprep.subr.mxu0 0.0
  %383 = vmatpush2.msra.mxu0 0.0
  %384 = vmatprep.subr.mxu0 0.0
  %385 = vmatpush2.msra.mxu0 0.0
  %386 = vmatprep.subr.mxu0 0.0
  %387 = vmatpush2.msra.mxu0 0.0
  %388 = vmatprep.subr.mxu0 0.0
  %389 = vmatpush2.msra.mxu0 0.0
  %390 = vmatprep.subr.mxu0 0.0
  %391 = vmatpush2.msra.mxu0 0.0
  %392 = vmatprep.subr.mxu0 0.0
  %393 = vmatpush2.msra.mxu0 0.0
  %394 = vmatprep.subr.mxu0 0.0
  %395 = vmatpush2.msra.mxu0 0.0
  %396 = vmatprep.subr.mxu0 0.0
  %397 = vmatpush2.msra.mxu0 0.0
  %398 = vmatprep.mubr.f32.mxu0 0.0
  %399 = vmatmul.mubr.f32.gmra.mxu0 %v302
  %v400 = vpop.f32.mrf.mxu0
  %v401 = vadd.f32 0.0, %v400
  %v402 = vpop.f32.mrf.mxu0
  %403 = vmatprep.mubr.f32.mxu0 0.0
  %404 = vmatmul.mubr.f32.gmra.mxu0 %v303
  %v405 = vpop.f32.mrf.mxu0
  %v406 = vadd.f32 0.0, %v405
  %v407 = vpop.f32.mrf.mxu0
  %408 = vmatprep.mubr.f32.mxu0 0.0
  %409 = vmatmul.mubr.f32.gmra.mxu0 %v304
  %v410 = vpop.f32.mrf.mxu0
  %v411 = vadd.f32 0.0, %v410
  %v412 = vpop.f32.mrf.mxu0
  %413 = vmatprep.mubr.f32.mxu0 0.0
  %414 = vmatmul.mubr.f32.gmra.mxu0 %v305
  %v415 = vpop.f32.mrf.mxu0
  %v416 = vadd.f32 0.0, %v415
  %v417 = vpop.f32.mrf.mxu0
  %418 = vmatprep.mubr.f32.mxu0 0.0
  %419 = vmatmul.mubr.f32.gmra.mxu0 %v306
  %v420 = vpop.f32.mrf.mxu0
  %v421 = vadd.f32 0.0, %v420
  %v422 = vpop.f32.mrf.mxu0
  %423 = vmatprep.mubr.f32.mxu0 0.0
  %424 = vmatmul.mubr.f32.gmra.mxu0 %v307
  %v425 = vpop.f32.mrf.mxu0
  %v426 = vadd.f32 0.0, %v425
  %v427 = vpop.f32.mrf.mxu0
  %428 = vmatprep.mubr.f32.mxu0 0.0
  %429 = vmatmul.mubr.f32.gmra.mxu0 %v308
  %v430 = vpop.f32.mrf.mxu0
  %v431 = vadd.f32 0.0, %v430
  %v432 = vpop.f32.mrf.mxu0
  %433 = vmatprep.mubr.f32.mxu0 0.0
  %434 = vmatmul.mubr.f32.gmra.mxu0 %v309
  %v435 = vpop.f32.mrf.mxu0
  %v436 = vadd.f32 0.0, %v435
  %v437 = vpop.f32.mrf.mxu0
  %438 = vmatprep.mubr.f32.mxu0 0.0
  %439 = vmatmul.mubr.f32.gmra.mxu0 %v310
  %v440 = vpop.f32.mrf.mxu0
  %v441 = vadd.f32 0.0, %v440
  %v442 = vpop.f32.mrf.mxu0
  %443 = vmatprep.mubr.f32.mxu0 0.0
  %444 = vmatmul.mubr.f32.gmra.mxu0 %v311
  %v445 = vpop.f32.mrf.mxu0
  %v446 = vadd.f32 0.0, %v445
  %v447 = vpop.f32.mrf.mxu0
  %448 = vmatprep.mubr.f32.mxu0 0.0
  %449 = vmatmul.mubr.f32.gmra.mxu0 %v312
  %v450 = vpop.f32.mrf.mxu0
  %v451 = vadd.f32 0.0, %v450
  %v452 = vpop.f32.mrf.mxu0
  %453 = vmatprep.mubr.f32.mxu0 0.0
  %454 = vmatmul.mubr.f32.gmra.mxu0 %v313
  %v455 = vpop.f32.mrf.mxu0
  %v456 = vadd.f32 0.0, %v455
  %v457 = vpop.f32.mrf.mxu0
  %458 = vmatprep.mubr.f32.mxu0 0.0
  %459 = vmatmul.mubr.f32.gmra.mxu0 %v314
  %v460 = vpop.f32.mrf.mxu0
  %v461 = vadd.f32 0.0, %v460
  %v462 = vpop.f32.mrf.mxu0
  %463 = vmatprep.mubr.f32.mxu0 0.0
  %464 = vmatmul.mubr.f32.gmra.mxu0 %v315
  %v465 = vpop.f32.mrf.mxu0
  %v466 = vadd.f32 0.0, %v465
  %v467 = vpop.f32.mrf.mxu0
  %468 = vmatprep.mubr.f32.mxu0 0.0
  %469 = vmatmul.mubr.f32.gmra.mxu0 %v316
  %v470 = vpop.f32.mrf.mxu0
  %v471 = vadd.f32 0.0, %v470
  %v472 = vpop.f32.mrf.mxu0
  %473 = vmatprep.mubr.f32.mxu0 0.0
  %474 = vmatmul.mubr.f32.gmra.mxu0 %v317
  %v475 = vpop.f32.mrf.mxu0
  %v476 = vadd.f32 0.0, %v475
  %v477 = vpop.f32.mrf.mxu0
  %478 = vdwg.mxu0
  %v479 = vadd.f32 %v286, %v401
  %v480 = vadd.f32 %v287, %v406
  %v481 = vadd.f32 %v288, %v411
  %v482 = vadd.f32 %v289, %v416
  %v483 = vadd.f32 %v290, %v421
  %v484 = vadd.f32 %v291, %v426
  %v485 = vadd.f32 %v292, %v431
  %v486 = vadd.f32 %v293, %v436
  %v487 = vadd.f32 %v294, %v441
  %v488 = vadd.f32 %v295, %v446
  %v489 = vadd.f32 %v296, %v451
  %v490 = vadd.f32 %v297, %v456
  %v491 = vadd.f32 %v298, %v461
  %v492 = vadd.f32 %v299, %v466
  %v493 = vadd.f32 %v300, %v471
  %v494 = vadd.f32 %v301, %v476
  %495 = vst [vmem:[#allocation3] sm:$0xff] %v479
  %496 = vst [vmem:[#allocation3 + $0x8] sm:$0xff] %v480
  %497 = vst [vmem:[#allocation3 + $0x10] sm:$0xff] %v481
  %498 = vst [vmem:[#allocation3 + $0x18] sm:$0xff] %v482
  %499 = vst [vmem:[#allocation3 + $0x20] sm:$0xff] %v483
  %500 = vst [vmem:[#allocation3 + $0x28] sm:$0xff] %v484
  %501 = vst [vmem:[#allocation3 + $0x30] sm:$0xff] %v485
  %502 = vst [vmem:[#allocation3 + $0x38] sm:$0xff] %v486
  %503 = vst [vmem:[#allocation3 + $0x40] sm:$0xff] %v487
  %504 = vst [vmem:[#allocation3 + $0x48] sm:$0xff] %v488
  %505 = vst [vmem:[#allocation3 + $0x50] sm:$0xff] %v489
  %506 = vst [vmem:[#allocation3 + $0x58] sm:$0xff] %v490
  %507 = vst [vmem:[#allocation3 + $0x60] sm:$0xff] %v491
  %508 = vst [vmem:[#allocation3 + $0x68] sm:$0xff] %v492
  %509 = vst [vmem:[#allocation3 + $0x70] sm:$0xff] %v493
  %510 = vst [vmem:[#allocation3 + $0x78] sm:$0xff] %v494
  // Predicated region
  $region30: #{com_res_mlp_forward.4} parent=0 // pred_check
    %p511 = pneg %p25
  $region31: #{com_res_mlp_forward.4} parent=0 // pred_check_branch
    %513 = sbr.rel (%p511) target = $region33
  $region32: #{com_res_mlp_forward.4} parent=0 // pred_region
    %v514 = vld [vmem:[#allocation2] sm:$0xff]
    %v515 = vld [vmem:[#allocation2 + $0x8] sm:$0xff]
    %v516 = vld [vmem:[#allocation2 + $0x10] sm:$0xff]
    %v517 = vld [vmem:[#allocation2 + $0x18] sm:$0xff]
    %v518 = vld [vmem:[#allocation2 + $0x20] sm:$0xff]
    %v519 = vld [vmem:[#allocation2 + $0x28] sm:$0xff]
    %v520 = vld [vmem:[#allocation2 + $0x30] sm:$0xff]
    %v521 = vld [vmem:[#allocation2 + $0x38] sm:$0xff]
    %v522 = vld [vmem:[#allocation2 + $0x40] sm:$0xff]
    %v523 = vld [vmem:[#allocation2 + $0x48] sm:$0xff]
    %v524 = vld [vmem:[#allocation2 + $0x50] sm:$0xff]
    %v525 = vld [vmem:[#allocation2 + $0x58] sm:$0xff]
    %v526 = vld [vmem:[#allocation2 + $0x60] sm:$0xff]
    %v527 = vld [vmem:[#allocation2 + $0x68] sm:$0xff]
    %v528 = vld [vmem:[#allocation2 + $0x70] sm:$0xff]
    %v529 = vld [vmem:[#allocation2 + $0x78] sm:$0xff]
    %v530 = vld [vmem:[%s4] sm:$0x1]
    %v532 = vlaneseq
    %v533 = vshrl.u32 %v532, 7
    %v534 = vsub.s32 0, %v533
    %v535 = vrot.slane %v530, %v534
    %v537 = vadd.f32 %v514, %v535
    %v538 = vadd.f32 %v515, %v535
    %v539 = vadd.f32 %v516, %v535
    %v540 = vadd.f32 %v517, %v535
    %v541 = vadd.f32 %v518, %v535
    %v542 = vadd.f32 %v519, %v535
    %v543 = vadd.f32 %v520, %v535
    %v544 = vadd.f32 %v521, %v535
    %v545 = vadd.f32 %v522, %v535
    %v546 = vadd.f32 %v523, %v535
    %v547 = vadd.f32 %v524, %v535
    %v548 = vadd.f32 %v525, %v535
    %v549 = vadd.f32 %v526, %v535
    %v550 = vadd.f32 %v527, %v535
    %v551 = vadd.f32 %v528, %v535
    %v552 = vadd.f32 %v529, %v535
    %v553 = vld [vmem:[#allocation3] sm:$0xff]
    %v554 = vld [vmem:[#allocation3 + $0x8] sm:$0xff]
    %v555 = vld [vmem:[#allocation3 + $0x10] sm:$0xff]
    %v556 = vld [vmem:[#allocation3 + $0x18] sm:$0xff]
    %v557 = vld [vmem:[#allocation3 + $0x20] sm:$0xff]
    %v558 = vld [vmem:[#allocation3 + $0x28] sm:$0xff]
    %v559 = vld [vmem:[#allocation3 + $0x30] sm:$0xff]
    %v560 = vld [vmem:[#allocation3 + $0x38] sm:$0xff]
    %v561 = vld [vmem:[#allocation3 + $0x40] sm:$0xff]
    %v562 = vld [vmem:[#allocation3 + $0x48] sm:$0xff]
    %v563 = vld [vmem:[#allocation3 + $0x50] sm:$0xff]
    %v564 = vld [vmem:[#allocation3 + $0x58] sm:$0xff]
    %v565 = vld [vmem:[#allocation3 + $0x60] sm:$0xff]
    %v566 = vld [vmem:[#allocation3 + $0x68] sm:$0xff]
    %v567 = vld [vmem:[#allocation3 + $0x70] sm:$0xff]
    %v568 = vld [vmem:[#allocation3 + $0x78] sm:$0xff]
    %v569 = vld [vmem:[%s5] sm:$0x1]
    %v571 = vlaneseq
    %v572 = vshrl.u32 %v571, 7
    %v573 = vsub.s32 0, %v572
    %v574 = vrot.slane %v569, %v573
    %v576 = vadd.f32 %v553, %v574
    %v577 = vadd.f32 %v554, %v574
    %v578 = vadd.f32 %v555, %v574
    %v579 = vadd.f32 %v556, %v574
    %v580 = vadd.f32 %v557, %v574
    %v581 = vadd.f32 %v558, %v574
    %v582 = vadd.f32 %v559, %v574
    %v583 = vadd.f32 %v560, %v574
    %v584 = vadd.f32 %v561, %v574
    %v585 = vadd.f32 %v562, %v574
    %v586 = vadd.f32 %v563, %v574
    %v587 = vadd.f32 %v564, %v574
    %v588 = vadd.f32 %v565, %v574
    %v589 = vadd.f32 %v566, %v574
    %v590 = vadd.f32 %v567, %v574
    %v591 = vadd.f32 %v568, %v574
    %vm592 = vcmp.ge.f32.partialorder %v537, 0.0
    %vm593 = vcmp.ge.f32.partialorder %v538, 0.0
    %vm594 = vcmp.ge.f32.partialorder %v539, 0.0
    %vm595 = vcmp.ge.f32.partialorder %v540, 0.0
    %vm596 = vcmp.ge.f32.partialorder %v541, 0.0
    %vm597 = vcmp.ge.f32.partialorder %v542, 0.0
    %vm598 = vcmp.ge.f32.partialorder %v543, 0.0
    %vm599 = vcmp.ge.f32.partialorder %v544, 0.0
    %vm600 = vcmp.ge.f32.partialorder %v545, 0.0
    %vm601 = vcmp.ge.f32.partialorder %v546, 0.0
    %vm602 = vcmp.ge.f32.partialorder %v547, 0.0
    %vm603 = vcmp.ge.f32.partialorder %v548, 0.0
    %vm604 = vcmp.ge.f32.partialorder %v549, 0.0
    %vm605 = vcmp.ge.f32.partialorder %v550, 0.0
    %vm606 = vcmp.ge.f32.partialorder %v551, 0.0
    %vm607 = vcmp.ge.f32.partialorder %v552, 0.0
    %v608 = vsel %vm592, %v537, 0.0
    %v609 = vsel %vm593, %v538, 0.0
    %v610 = vsel %vm594, %v539, 0.0
    %v611 = vsel %vm595, %v540, 0.0
    %v612 = vsel %vm596, %v541, 0.0
    %v613 = vsel %vm597, %v542, 0.0
    %v614 = vsel %vm598, %v543, 0.0
    %v615 = vsel %vm599, %v544, 0.0
    %v616 = vsel %vm600, %v545, 0.0
    %v617 = vsel %vm601, %v546, 0.0
    %v618 = vsel %vm602, %v547, 0.0
    %v619 = vsel %vm603, %v548, 0.0
    %v620 = vsel %vm604, %v549, 0.0
    %v621 = vsel %vm605, %v550, 0.0
    %v622 = vsel %vm606, %v551, 0.0
    %v623 = vsel %vm607, %v552, 0.0
    %v624 = vsel %vm592, %v576, 0.0
    %v625 = vsel %vm593, %v577, 0.0
    %v626 = vsel %vm594, %v578, 0.0
    %v627 = vsel %vm595, %v579, 0.0
    %v628 = vsel %vm596, %v580, 0.0
    %v629 = vsel %vm597, %v581, 0.0
    %v630 = vsel %vm598, %v582, 0.0
    %v631 = vsel %vm599, %v583, 0.0
    %v632 = vsel %vm600, %v584, 0.0
    %v633 = vsel %vm601, %v585, 0.0
    %v634 = vsel %vm602, %v586, 0.0
    %v635 = vsel %vm603, %v587, 0.0
    %v636 = vsel %vm604, %v588, 0.0
    %v637 = vsel %vm605, %v589, 0.0
    %v638 = vsel %vm606, %v590, 0.0
    %v639 = vsel %vm607, %v591, 0.0
    %640 = vst [vmem:[%s6] sm:$0xff] %v608
    %641 = vst [vmem:[%s6 + $0x8] sm:$0xff] %v609
    %642 = vst [vmem:[%s6 + $0x10] sm:$0xff] %v610
    %643 = vst [vmem:[%s6 + $0x18] sm:$0xff] %v611
    %644 = vst [vmem:[%s6 + $0x20] sm:$0xff] %v612
    %645 = vst [vmem:[%s6 + $0x28] sm:$0xff] %v613
    %646 = vst [vmem:[%s6 + $0x30] sm:$0xff] %v614
    %647 = vst [vmem:[%s6 + $0x38] sm:$0xff] %v615
    %648 = vst [vmem:[%s6 + $0x40] sm:$0xff] %v616
    %649 = vst [vmem:[%s6 + $0x48] sm:$0xff] %v617
    %650 = vst [vmem:[%s6 + $0x50] sm:$0xff] %v618
    %651 = vst [vmem:[%s6 + $0x58] sm:$0xff] %v619
    %652 = vst [vmem:[%s6 + $0x60] sm:$0xff] %v620
    %653 = vst [vmem:[%s6 + $0x68] sm:$0xff] %v621
    %654 = vst [vmem:[%s6 + $0x70] sm:$0xff] %v622
    %655 = vst [vmem:[%s6 + $0x78] sm:$0xff] %v623
    %656 = vst [vmem:[%s7] sm:$0xff] %v624
    %657 = vst [vmem:[%s7 + $0x8] sm:$0xff] %v625
    %658 = vst [vmem:[%s7 + $0x10] sm:$0xff] %v626
    %659 = vst [vmem:[%s7 + $0x18] sm:$0xff] %v627
    %660 = vst [vmem:[%s7 + $0x20] sm:$0xff] %v628
    %661 = vst [vmem:[%s7 + $0x28] sm:$0xff] %v629
    %662 = vst [vmem:[%s7 + $0x30] sm:$0xff] %v630
    %663 = vst [vmem:[%s7 + $0x38] sm:$0xff] %v631
    %664 = vst [vmem:[%s7 + $0x40] sm:$0xff] %v632
    %665 = vst [vmem:[%s7 + $0x48] sm:$0xff] %v633
    %666 = vst [vmem:[%s7 + $0x50] sm:$0xff] %v634
    %667 = vst [vmem:[%s7 + $0x58] sm:$0xff] %v635
    %668 = vst [vmem:[%s7 + $0x60] sm:$0xff] %v636
    %669 = vst [vmem:[%s7 + $0x68] sm:$0xff] %v637
    %670 = vst [vmem:[%s7 + $0x70] sm:$0xff] %v638
    %671 = vst [vmem:[%s7 + $0x78] sm:$0xff] %v639
  $region33: #{com_res_mlp_forward.4} parent=0 // pred_fallthru
    _
  // Predicated region
  $region34: #{com_res_mlp_forward.4} parent=0 // pred_check
    _
  $region35: #{com_res_mlp_forward.4} parent=0 // pred_check_branch
    %673 = sbr.rel (0) target = $region37
  $region36: #{com_res_mlp_forward.4} parent=0 // pred_region
    _
  $region37: #{com_res_mlp_forward.4} parent=0 // pred_fallthru
    _
  // Predicated region
  $region38: #{com_res_mlp_forward.4} parent=0 // pred_check
    _
  $region39: #{com_res_mlp_forward.4} parent=0 // pred_check_branch
    %675 = sbr.rel (0) target = $region41
  $region40: #{com_res_mlp_forward.4} parent=0 // pred_region
    _
  $region41: #{com_res_mlp_forward.4} parent=0 // pred_fallthru
    _
  // Predicated region
  $region42: #{com_res_mlp_forward.4} parent=0 // pred_check
    _
  $region43: #{com_res_mlp_forward.4} parent=0 // pred_check_branch
    %677 = sbr.rel (0) target = $region45
  $region44: #{com_res_mlp_forward.4} parent=0 // pred_region
    _
  $region45: #{com_res_mlp_forward.4} parent=0 // pred_fallthru
    _
  // Predicated region
  $region46: #{com_res_mlp_forward.4} parent=0 // pred_check
    _
  $region47: #{com_res_mlp_forward.4} parent=0 // pred_check_branch
    %679 = sbr.rel (0) target = $region49
  $region48: #{com_res_mlp_forward.4} parent=0 // pred_region
    _
  $region49: #{com_res_mlp_forward.4} parent=0 // pred_fallthru
    _

</llo_original>
